<compile_context>
chip_gen: v7x
topology: tpu7x:2x2x1
jax: 0.10.0
libtpu: 0.0.40
codegen_flags: <defaults>
</compile_context>

<pallas_src>
import functools

import jax
import jax.numpy as jnp
from jax import lax
from jax.experimental import pallas as pl
from jax.experimental.pallas import tpu as pltpu


def _round_up(x, m):
    return (x + m - 1) // m * m


# ----------------------------------------------------------------------------
# Fused kernel: whole forward pass for ONE batch element.
# ----------------------------------------------------------------------------
def _fused_kernel(x25_ref, w1g_ref, b1_ref, w2g_ref, b2_ref,
                  wf1_ref, bf1_ref, wf2_ref, bf2_ref, o_ref,
                  *, n_shift1, n_shift2, vp1, vp2, grp1, grp2, pool, n_ch2):
    """Refs (per grid step):
      x25_ref : (25, XC)                 stride-25 phase view of the input row
      w1g_ref : (n_shift1, pool*grp1, 25)  permuted conv1 weights
      b1_ref  : (grp1, 1)
      w2g_ref : (n_shift2, pool*grp2, grp1) permuted conv2 weights
      b2_ref  : (grp2, 1)
      wf1_ref : (n_ch2, vp2, H)          fc1 weights as (channel, time, hidden)
      bf1_ref : (1, H)
      wf2_ref : (H, OUT)
      bf2_ref : (1, OUT)
      o_ref   : (1, OUT)
    """
    # ---- conv1 as matmuls over a few phase shifts of the input -------------
    z1 = None
    for a in range(n_shift1):
        t = jnp.dot(w1g_ref[a], x25_ref[:, a:a + vp1],
                    preferred_element_type=jnp.float32)
        z1 = t if z1 is None else z1 + t            # (pool*grp1, vp1)
    # max-pool(5): the 5 pool taps are consecutive grp1-row slabs (sublanes).
    m1 = z1[0:grp1]
    for j in range(1, pool):
        m1 = jnp.maximum(m1, z1[j * grp1:(j + 1) * grp1])
    # bias + ReLU once, after the pool max.
    p1 = jnp.maximum(m1 + b1_ref[...], 0.0)         # (grp1, vp1)

    # ---- conv2 (same scheme; pool1 output is already phase-decomposed) -----
    z2 = None
    for s in range(n_shift2):
        t = jnp.dot(w2g_ref[s], p1[:, s:s + vp2],
                    preferred_element_type=jnp.float32)
        z2 = t if z2 is None else z2 + t            # (pool*grp2, vp2)
    m2 = z2[0:grp2]
    for j in range(1, pool):
        m2 = jnp.maximum(m2, z2[j * grp2:(j + 1) * grp2])
    pooled2 = jnp.maximum(m2 + b2_ref[...], 0.0)    # (grp2, vp2); rows>=6 are 0

    # ---- flatten (channel-major, as torch .view) + fc1 + ReLU + fc2 + sigmoid
    h = None
    for c in range(n_ch2):
        t = jnp.dot(pooled2[c:c + 1, :], wf1_ref[c],
                    preferred_element_type=jnp.float32)
        h = t if h is None else h + t               # (1, H)
    h = jnp.maximum(h + bf1_ref[...], 0.0)
    y = jnp.dot(h, wf2_ref[...], preferred_element_type=jnp.float32)
    y = y + bf2_ref[...]
    o_ref[...] = (1.0 / (1.0 + jnp.exp(-y))).astype(o_ref.dtype)


# ----------------------------------------------------------------------------
# Wrapper: weight permutation (tiny, O(|weights|)) + pallas_call.
# ----------------------------------------------------------------------------
def conv_net_1d_2_sig_forward(x, params):
    """x: (N, 1, L) float32; replicates CONV_NET_1D_2_SIG.forward()."""
    w1, b1, w2, b2, wf1, bf1, wf2, bf2 = params
    f32 = jnp.float32
    n, _, L = x.shape

    C1, K1 = w1.shape[0], w1.shape[2]     # 3, 100
    C2, K2 = w2.shape[0], w2.shape[2]     # 6, 10
    P = 5                                 # pool kernel == stride
    H = wf1.shape[0]                      # 128
    OUT = wf2.shape[0]                    # 88

    # PyTorch shape arithmetic.
    L1 = L - K1 + 1                       # conv1 output length
    T1 = (L1 - P) // P + 1                # after pool1
    L2 = T1 - K2 + 1                      # conv2 output length
    T2 = (L2 - P) // P + 1                # after pool2
    assert C2 * T2 == wf1.shape[1], (C2, T2, wf1.shape)

    S = P * P                             # 25: overall stride of pooled2 vs x
    A1 = (P * (P - 1) + (P - 1) + (K1 - 1)) // S + 1   # conv1 phase shifts (5)
    S2 = ((P - 1) + (K2 - 1)) // P + 1                 # conv2 phase shifts (3)
    V1 = T2 + (S2 - 1)                    # pool1 phase columns needed (171)
    V25 = V1 + (A1 - 1)                   # real stride-25 columns needed (175)
    assert S * V25 <= L
    assert P * (V1 - 1) + (P - 1) <= T1 - 1

    VP2 = _round_up(T2, 128)              # 256: lane-padded pool2 length
    VP1 = _round_up(VP2 + (S2 - 1), 128)  # 384: lane-padded pool1 length
    XC = _round_up(VP1 + (A1 - 1), 128)   # 512: lane-padded x25 length
    GRP1 = _round_up(P * C1, 8)           # 16: sublane-padded pool1 slab
    GRP2 = _round_up(C2, 8)               # 8:  sublane-padded pool2 slab

    # ---- stride-25 phase view of the input: x25[n, m, v] = x[n, 0, 25v + m] -
    x25 = x[:, 0, :S * V25].astype(f32).reshape(n, V25, S).transpose(0, 2, 1)
    x25 = jnp.pad(x25, ((0, 0), (0, 0), (0, XC - V25)))            # (N, 25, XC)

    # ---- conv1 weights, permuted for the phase decomposition ----------------
    # Row j*GRP1 + b*C1 + c of shift `a` multiplies x25[m, v+a] and yields
    # conv1_preact[c, 25v + 5b + j]; entry = w1[c, 0, 25a + m - 5b - j] (0 OOB).
    w1f = w1.reshape(C1, K1).astype(f32)
    bb = jnp.arange(P)[:, None, None, None]
    aa = jnp.arange(A1)[None, :, None, None]
    jj = jnp.arange(P)[None, None, :, None]
    mm = jnp.arange(S)[None, None, None, :]
    k1 = S * aa + mm - P * bb - jj                          # (b, a, j, m)
    g1 = w1f[:, jnp.clip(k1, 0, K1 - 1)]                    # (c, b, a, j, m)
    g1 = jnp.moveaxis(g1, 0, 3)                             # (b, a, j, c, m)
    g1 = jnp.where(((k1 >= 0) & (k1 < K1))[:, :, :, None, :], g1, 0.0)
    g1 = jnp.transpose(g1, (1, 2, 0, 3, 4))                 # (a, j, b, c, m)
    g1 = g1.reshape(A1, P, P * C1, S)
    g1 = jnp.pad(g1, ((0, 0), (0, 0), (0, GRP1 - P * C1), (0, 0)))
    w1g = g1.reshape(A1, P * GRP1, S)                       # (5, 80, 25)
    b1t = jnp.pad(jnp.tile(b1.astype(f32), P).reshape(P * C1, 1),
                  ((0, GRP1 - P * C1), (0, 0)))             # (16, 1)

    # ---- conv2 weights, permuted the same way -------------------------------
    # Row j2*GRP2 + c2 of shift `s` multiplies pool1[m2*C1+ci, u+s] and yields
    # conv2_preact[c2, 5u + j2]; entry = w2[c2, ci, 5s + m2 - j2] (0 OOB).
    ss = jnp.arange(S2)[:, None, None]
    j2 = jnp.arange(P)[None, :, None]
    m2 = jnp.arange(P)[None, None, :]
    k2 = P * ss + m2 - j2                                   # (s, j2, m2)
    g2 = w2.astype(f32)[:, :, jnp.clip(k2, 0, K2 - 1)]      # (c2, ci, s, j2, m2)
    g2 = jnp.transpose(g2, (2, 3, 0, 4, 1))                 # (s, j2, c2, m2, ci)
    g2 = jnp.where(((k2 >= 0) & (k2 < K2))[:, :, None, :, None], g2, 0.0)
    g2 = g2.reshape(S2, P, C2, P * C1)
    g2 = jnp.pad(g2, ((0, 0), (0, 0), (0, GRP2 - C2), (0, GRP1 - P * C1)))
    w2g = g2.reshape(S2, P * GRP2, GRP1)                    # (3, 40, 16)
    b2t = jnp.pad(b2.astype(f32).reshape(C2, 1), ((0, GRP2 - C2), (0, 0)))

    # ---- FC weights: fc1 split per conv2 channel (matches torch .view order)
    wf1r = wf1.astype(f32).reshape(H, C2, T2)
    wf1r = jnp.transpose(wf1r, (1, 2, 0))                   # (C2, T2, H)
    wf1r = jnp.pad(wf1r, ((0, 0), (0, VP2 - T2), (0, 0)))   # (C2, VP2, H)
    wf2t = wf2.astype(f32).T                                # (H, OUT)
    bf1r = bf1.astype(f32).reshape(1, H)
    bf2r = bf2.astype(f32).reshape(1, OUT)

    kernel = functools.partial(
        _fused_kernel, n_shift1=A1, n_shift2=S2, vp1=VP1, vp2=VP2,
        grp1=GRP1, grp2=GRP2, pool=P, n_ch2=C2)

    out = pl.pallas_call(
        kernel,
        out_shape=jax.ShapeDtypeStruct((n, 1, OUT), f32),
        grid=(n,),
        in_specs=[
            pl.BlockSpec((None, S, XC), lambda i: (i, 0, 0)),
            pl.BlockSpec((A1, P * GRP1, S), lambda i: (0, 0, 0)),
            pl.BlockSpec((GRP1, 1), lambda i: (0, 0)),
            pl.BlockSpec((S2, P * GRP2, GRP1), lambda i: (0, 0, 0)),
            pl.BlockSpec((GRP2, 1), lambda i: (0, 0)),
            pl.BlockSpec((C2, VP2, H), lambda i: (0, 0, 0)),
            pl.BlockSpec((1, H), lambda i: (0, 0)),
            pl.BlockSpec((H, OUT), lambda i: (0, 0)),
            pl.BlockSpec((1, OUT), lambda i: (0, 0)),
        ],
        out_specs=pl.BlockSpec((None, 1, OUT), lambda i: (i, 0, 0)),
        compiler_params=pltpu.CompilerParams(
            dimension_semantics=("parallel",)),
    )(x25, w1g, b1t, w2g, b2t, wf1r, bf1r, wf2t, bf2r)
    return out.reshape(n, OUT)


# ----------------------------------------------------------------------------
# Pure-JAX reference (for verification).
# ----------------------------------------------------------------------------
def reference_forward(x, params):
    w1, b1, w2, b2, wf1, bf1, wf2, bf2 = params
    n = x.shape[0]
    dn = ("NCH", "OIH", "NCH")
    y = lax.conv_general_dilated(x, w1, (1,), "VALID", dimension_numbers=dn)
    y = jnp.maximum(y + b1[None, :, None], 0.0)
    t = (y.shape[2] // 5) * 5
    y = y[:, :, :t].reshape(n, 3, -1, 5).max(axis=-1)
    y = lax.conv_general_dilated(y, w2, (1,), "VALID", dimension_numbers=dn)
    y = jnp.maximum(y + b2[None, :, None], 0.0)
    t = (y.shape[2] // 5) * 5
    y = y[:, :, :t].reshape(n, 6, -1, 5).max(axis=-1)
    y = y.reshape(n, -1)
    y = jnp.maximum(y @ wf1.T + bf1, 0.0)
    return jax.nn.sigmoid(y @ wf2.T + bf2)


# ----------------------------------------------------------------------------
if __name__ == "__main__":
    # Input length chosen so the flattened feature count is exactly 1014
    # (as nn.Linear(1014, 128) requires): L=4390 -> 4291 -> 858 -> 849 -> 169.
    N, L = 2, 4390

    key = jax.random.PRNGKey(0)
    ks = jax.random.split(key, 9)
    scale = 0.05
    w1 = scale * jax.random.normal(ks[0], (3, 1, 100), jnp.float32)
    b1 = scale * jax.random.normal(ks[1], (3,), jnp.float32)
    w2 = scale * jax.random.normal(ks[2], (6, 3, 10), jnp.float32)
    b2 = scale * jax.random.normal(ks[3], (6,), jnp.float32)
    wf1 = scale * jax.random.normal(ks[4], (128, 1014), jnp.float32)
    bf1 = scale * jax.random.normal(ks[5], (128,), jnp.float32)
    wf2 = scale * jax.random.normal(ks[6], (88, 128), jnp.float32)
    bf2 = scale * jax.random.normal(ks[7], (88,), jnp.float32)
    params = (w1, b1, w2, b2, wf1, bf1, wf2, bf2)

    x = jax.random.normal(ks[8], (N, 1, L), jnp.float32)

    fwd = jax.jit(conv_net_1d_2_sig_forward)
    out = jax.block_until_ready(fwd(x, params))
    ref = jax.block_until_ready(reference_forward(x, params))

    assert out.shape == (N, 88), out.shape
    assert jnp.allclose(out, ref, rtol=2e-4, atol=2e-4), float(
        jnp.max(jnp.abs(out - ref))
    )
    print("KERNEL_OK")
</pallas_src>

<mosaic_0001>
module attributes {stable_mosaic.version = 11 : i64} {
  func.func @_fused_kernel(%arg0: i32, %arg1: memref<1x25x512xf32, #tpu.memory_space<vmem>>, %arg2: memref<5x80x25xf32, #tpu.memory_space<vmem>>, %arg3: memref<16x1xf32, #tpu.memory_space<vmem>>, %arg4: memref<3x40x16xf32, #tpu.memory_space<vmem>>, %arg5: memref<8x1xf32, #tpu.memory_space<vmem>>, %arg6: memref<6x256x128xf32, #tpu.memory_space<vmem>>, %arg7: memref<1x128xf32, #tpu.memory_space<vmem>>, %arg8: memref<128x88xf32, #tpu.memory_space<vmem>>, %arg9: memref<1x88xf32, #tpu.memory_space<vmem>>, %arg10: memref<1x1x88xf32, #tpu.memory_space<vmem>>) attributes {dimension_semantics = [#tpu.dimension_semantics<parallel>], iteration_bounds = array<i64: 2>, scalar_prefetch = 0 : i64, scratch_operands = 0 : i64, tpu.core_type = #tpu.core_type<tc>, window_params = [{transform_indices = @transform_0, window_bounds = array<i64: 1, 25, 512>}, {pipeline_mode = #tpu.pipeline_mode<synchronous>, transform_indices = @transform_1, window_bounds = array<i64: 5, 80, 25>}, {pipeline_mode = #tpu.pipeline_mode<synchronous>, transform_indices = @transform_2, window_bounds = array<i64: 16, 1>}, {pipeline_mode = #tpu.pipeline_mode<synchronous>, transform_indices = @transform_3, window_bounds = array<i64: 3, 40, 16>}, {pipeline_mode = #tpu.pipeline_mode<synchronous>, transform_indices = @transform_4, window_bounds = array<i64: 8, 1>}, {pipeline_mode = #tpu.pipeline_mode<synchronous>, transform_indices = @transform_5, window_bounds = array<i64: 6, 256, 128>}, {pipeline_mode = #tpu.pipeline_mode<synchronous>, transform_indices = @transform_6, window_bounds = array<i64: 1, 128>}, {pipeline_mode = #tpu.pipeline_mode<synchronous>, transform_indices = @transform_7, window_bounds = array<i64: 128, 88>}, {pipeline_mode = #tpu.pipeline_mode<synchronous>, transform_indices = @transform_8, window_bounds = array<i64: 1, 88>}, {transform_indices = @transform_9, window_bounds = array<i64: 1, 1, 88>}]} {
    %c0 = arith.constant 0 : index
    %c0_0 = arith.constant 0 : index
    %c0_1 = arith.constant 0 : index
    %0 = vector.load %arg2[%c0, %c0_0, %c0_1] : memref<5x80x25xf32, #tpu.memory_space<vmem>>, vector<1x80x25xf32>
    %1 = vector.shape_cast %0 : vector<1x80x25xf32> to vector<80x25xf32>
    %c0_2 = arith.constant 0 : index
    %c0_3 = arith.constant 0 : index
    %c0_4 = arith.constant 0 : index
    %2 = vector.load %arg1[%c0_2, %c0_3, %c0_4] : memref<1x25x512xf32, #tpu.memory_space<vmem>>, vector<1x25x384xf32>
    %3 = vector.shape_cast %2 : vector<1x25x384xf32> to vector<25x384xf32>
    %cst = arith.constant dense<0.000000e+00> : vector<80x384xf32>
    %4 = tpu.matmul %1, %3, %cst {dimension_numbers = #tpu.dot_dimension_numbers<[1], [0], [0], [1], [0, 0, 1, 1], [], []>} : vector<80x25xf32>, vector<25x384xf32>, vector<80x384xf32> -> vector<80x384xf32>
    %c1 = arith.constant 1 : index
    %c0_5 = arith.constant 0 : index
    %c0_6 = arith.constant 0 : index
    %5 = vector.load %arg2[%c1, %c0_5, %c0_6] : memref<5x80x25xf32, #tpu.memory_space<vmem>>, vector<1x80x25xf32>
    %6 = vector.shape_cast %5 : vector<1x80x25xf32> to vector<80x25xf32>
    %c0_7 = arith.constant 0 : index
    %c0_8 = arith.constant 0 : index
    %c1_9 = arith.constant 1 : index
    %7 = vector.load %arg1[%c0_7, %c0_8, %c1_9] : memref<1x25x512xf32, #tpu.memory_space<vmem>>, vector<1x25x384xf32>
    %8 = vector.shape_cast %7 : vector<1x25x384xf32> to vector<25x384xf32>
    %cst_10 = arith.constant dense<0.000000e+00> : vector<80x384xf32>
    %9 = tpu.matmul %6, %8, %cst_10 {dimension_numbers = #tpu.dot_dimension_numbers<[1], [0], [0], [1], [0, 0, 1, 1], [], []>} : vector<80x25xf32>, vector<25x384xf32>, vector<80x384xf32> -> vector<80x384xf32>
    %10 = arith.addf %4, %9 : vector<80x384xf32>
    %c2 = arith.constant 2 : index
    %c0_11 = arith.constant 0 : index
    %c0_12 = arith.constant 0 : index
    %11 = vector.load %arg2[%c2, %c0_11, %c0_12] : memref<5x80x25xf32, #tpu.memory_space<vmem>>, vector<1x80x25xf32>
    %12 = vector.shape_cast %11 : vector<1x80x25xf32> to vector<80x25xf32>
    %c0_13 = arith.constant 0 : index
    %c0_14 = arith.constant 0 : index
    %c2_15 = arith.constant 2 : index
    %13 = vector.load %arg1[%c0_13, %c0_14, %c2_15] : memref<1x25x512xf32, #tpu.memory_space<vmem>>, vector<1x25x384xf32>
    %14 = vector.shape_cast %13 : vector<1x25x384xf32> to vector<25x384xf32>
    %cst_16 = arith.constant dense<0.000000e+00> : vector<80x384xf32>
    %15 = tpu.matmul %12, %14, %cst_16 {dimension_numbers = #tpu.dot_dimension_numbers<[1], [0], [0], [1], [0, 0, 1, 1], [], []>} : vector<80x25xf32>, vector<25x384xf32>, vector<80x384xf32> -> vector<80x384xf32>
    %16 = arith.addf %10, %15 : vector<80x384xf32>
    %c3 = arith.constant 3 : index
    %c0_17 = arith.constant 0 : index
    %c0_18 = arith.constant 0 : index
    %17 = vector.load %arg2[%c3, %c0_17, %c0_18] : memref<5x80x25xf32, #tpu.memory_space<vmem>>, vector<1x80x25xf32>
    %18 = vector.shape_cast %17 : vector<1x80x25xf32> to vector<80x25xf32>
    %c0_19 = arith.constant 0 : index
    %c0_20 = arith.constant 0 : index
    %c3_21 = arith.constant 3 : index
    %19 = vector.load %arg1[%c0_19, %c0_20, %c3_21] : memref<1x25x512xf32, #tpu.memory_space<vmem>>, vector<1x25x384xf32>
    %20 = vector.shape_cast %19 : vector<1x25x384xf32> to vector<25x384xf32>
    %cst_22 = arith.constant dense<0.000000e+00> : vector<80x384xf32>
    %21 = tpu.matmul %18, %20, %cst_22 {dimension_numbers = #tpu.dot_dimension_numbers<[1], [0], [0], [1], [0, 0, 1, 1], [], []>} : vector<80x25xf32>, vector<25x384xf32>, vector<80x384xf32> -> vector<80x384xf32>
    %22 = arith.addf %16, %21 : vector<80x384xf32>
    %c4 = arith.constant 4 : index
    %c0_23 = arith.constant 0 : index
    %c0_24 = arith.constant 0 : index
    %23 = vector.load %arg2[%c4, %c0_23, %c0_24] : memref<5x80x25xf32, #tpu.memory_space<vmem>>, vector<1x80x25xf32>
    %24 = vector.shape_cast %23 : vector<1x80x25xf32> to vector<80x25xf32>
    %c0_25 = arith.constant 0 : index
    %c0_26 = arith.constant 0 : index
    %c4_27 = arith.constant 4 : index
    %25 = vector.load %arg1[%c0_25, %c0_26, %c4_27] : memref<1x25x512xf32, #tpu.memory_space<vmem>>, vector<1x25x384xf32>
    %26 = vector.shape_cast %25 : vector<1x25x384xf32> to vector<25x384xf32>
    %cst_28 = arith.constant dense<0.000000e+00> : vector<80x384xf32>
    %27 = tpu.matmul %24, %26, %cst_28 {dimension_numbers = #tpu.dot_dimension_numbers<[1], [0], [0], [1], [0, 0, 1, 1], [], []>} : vector<80x25xf32>, vector<25x384xf32>, vector<80x384xf32> -> vector<80x384xf32>
    %28 = arith.addf %22, %27 : vector<80x384xf32>
    %29 = vector.extract_strided_slice %28 {offsets = [0, 0], sizes = [16, 384], strides = [1, 1]} : vector<80x384xf32> to vector<16x384xf32>
    %30 = vector.extract_strided_slice %28 {offsets = [16, 0], sizes = [16, 384], strides = [1, 1]} : vector<80x384xf32> to vector<16x384xf32>
    %31 = arith.maximumf %29, %30 : vector<16x384xf32>
    %32 = vector.extract_strided_slice %28 {offsets = [32, 0], sizes = [16, 384], strides = [1, 1]} : vector<80x384xf32> to vector<16x384xf32>
    %33 = arith.maximumf %31, %32 : vector<16x384xf32>
    %34 = vector.extract_strided_slice %28 {offsets = [48, 0], sizes = [16, 384], strides = [1, 1]} : vector<80x384xf32> to vector<16x384xf32>
    %35 = arith.maximumf %33, %34 : vector<16x384xf32>
    %36 = vector.extract_strided_slice %28 {offsets = [64, 0], sizes = [16, 384], strides = [1, 1]} : vector<80x384xf32> to vector<16x384xf32>
    %37 = arith.maximumf %35, %36 : vector<16x384xf32>
    %c0_29 = arith.constant 0 : index
    %c0_30 = arith.constant 0 : index
    %38 = vector.load %arg3[%c0_29, %c0_30] : memref<16x1xf32, #tpu.memory_space<vmem>>, vector<16x1xf32>
    %39 = vector.broadcast %38 : vector<16x1xf32> to vector<16x384xf32>
    %40 = arith.addf %37, %39 : vector<16x384xf32>
    %cst_31 = arith.constant 0.000000e+00 : f32
    %41 = vector.broadcast %cst_31 : f32 to vector<16x384xf32>
    %42 = arith.maximumf %40, %41 : vector<16x384xf32>
    %c0_32 = arith.constant 0 : index
    %c0_33 = arith.constant 0 : index
    %c0_34 = arith.constant 0 : index
    %43 = vector.load %arg4[%c0_32, %c0_33, %c0_34] : memref<3x40x16xf32, #tpu.memory_space<vmem>>, vector<1x40x16xf32>
    %44 = vector.shape_cast %43 : vector<1x40x16xf32> to vector<40x16xf32>
    %45 = vector.extract_strided_slice %42 {offsets = [0, 0], sizes = [16, 256], strides = [1, 1]} : vector<16x384xf32> to vector<16x256xf32>
    %cst_35 = arith.constant dense<0.000000e+00> : vector<40x256xf32>
    %46 = tpu.matmul %44, %45, %cst_35 {dimension_numbers = #tpu.dot_dimension_numbers<[1], [0], [0], [1], [0, 0, 1, 1], [], []>} : vector<40x16xf32>, vector<16x256xf32>, vector<40x256xf32> -> vector<40x256xf32>
    %c1_36 = arith.constant 1 : index
    %c0_37 = arith.constant 0 : index
    %c0_38 = arith.constant 0 : index
    %47 = vector.load %arg4[%c1_36, %c0_37, %c0_38] : memref<3x40x16xf32, #tpu.memory_space<vmem>>, vector<1x40x16xf32>
    %48 = vector.shape_cast %47 : vector<1x40x16xf32> to vector<40x16xf32>
    %49 = vector.extract_strided_slice %42 {offsets = [0, 1], sizes = [16, 256], strides = [1, 1]} : vector<16x384xf32> to vector<16x256xf32>
    %cst_39 = arith.constant dense<0.000000e+00> : vector<40x256xf32>
    %50 = tpu.matmul %48, %49, %cst_39 {dimension_numbers = #tpu.dot_dimension_numbers<[1], [0], [0], [1], [0, 0, 1, 1], [], []>} : vector<40x16xf32>, vector<16x256xf32>, vector<40x256xf32> -> vector<40x256xf32>
    %51 = arith.addf %46, %50 : vector<40x256xf32>
    %c2_40 = arith.constant 2 : index
    %c0_41 = arith.constant 0 : index
    %c0_42 = arith.constant 0 : index
    %52 = vector.load %arg4[%c2_40, %c0_41, %c0_42] : memref<3x40x16xf32, #tpu.memory_space<vmem>>, vector<1x40x16xf32>
    %53 = vector.shape_cast %52 : vector<1x40x16xf32> to vector<40x16xf32>
    %54 = vector.extract_strided_slice %42 {offsets = [0, 2], sizes = [16, 256], strides = [1, 1]} : vector<16x384xf32> to vector<16x256xf32>
    %cst_43 = arith.constant dense<0.000000e+00> : vector<40x256xf32>
    %55 = tpu.matmul %53, %54, %cst_43 {dimension_numbers = #tpu.dot_dimension_numbers<[1], [0], [0], [1], [0, 0, 1, 1], [], []>} : vector<40x16xf32>, vector<16x256xf32>, vector<40x256xf32> -> vector<40x256xf32>
    %56 = arith.addf %51, %55 : vector<40x256xf32>
    %57 = vector.extract_strided_slice %56 {offsets = [0, 0], sizes = [8, 256], strides = [1, 1]} : vector<40x256xf32> to vector<8x256xf32>
    %58 = vector.extract_strided_slice %56 {offsets = [8, 0], sizes = [8, 256], strides = [1, 1]} : vector<40x256xf32> to vector<8x256xf32>
    %59 = arith.maximumf %57, %58 : vector<8x256xf32>
    %60 = vector.extract_strided_slice %56 {offsets = [16, 0], sizes = [8, 256], strides = [1, 1]} : vector<40x256xf32> to vector<8x256xf32>
    %61 = arith.maximumf %59, %60 : vector<8x256xf32>
    %62 = vector.extract_strided_slice %56 {offsets = [24, 0], sizes = [8, 256], strides = [1, 1]} : vector<40x256xf32> to vector<8x256xf32>
    %63 = arith.maximumf %61, %62 : vector<8x256xf32>
    %64 = vector.extract_strided_slice %56 {offsets = [32, 0], sizes = [8, 256], strides = [1, 1]} : vector<40x256xf32> to vector<8x256xf32>
    %65 = arith.maximumf %63, %64 : vector<8x256xf32>
    %c0_44 = arith.constant 0 : index
    %c0_45 = arith.constant 0 : index
    %66 = vector.load %arg5[%c0_44, %c0_45] : memref<8x1xf32, #tpu.memory_space<vmem>>, vector<8x1xf32>
    %67 = vector.broadcast %66 : vector<8x1xf32> to vector<8x256xf32>
    %68 = arith.addf %65, %67 : vector<8x256xf32>
    %cst_46 = arith.constant 0.000000e+00 : f32
    %69 = vector.broadcast %cst_46 : f32 to vector<8x256xf32>
    %70 = arith.maximumf %68, %69 : vector<8x256xf32>
    %71 = vector.extract_strided_slice %70 {offsets = [0, 0], sizes = [1, 256], strides = [1, 1]} : vector<8x256xf32> to vector<1x256xf32>
    %c0_47 = arith.constant 0 : index
    %c0_48 = arith.constant 0 : index
    %c0_49 = arith.constant 0 : index
    %72 = vector.load %arg6[%c0_47, %c0_48, %c0_49] : memref<6x256x128xf32, #tpu.memory_space<vmem>>, vector<1x256x128xf32>
    %73 = vector.shape_cast %72 : vector<1x256x128xf32> to vector<256x128xf32>
    %cst_50 = arith.constant dense<0.000000e+00> : vector<1x128xf32>
    %74 = tpu.matmul %71, %73, %cst_50 {dimension_numbers = #tpu.dot_dimension_numbers<[1], [0], [0], [1], [0, 0, 1, 1], [], []>} : vector<1x256xf32>, vector<256x128xf32>, vector<1x128xf32> -> vector<1x128xf32>
    %75 = vector.extract_strided_slice %70 {offsets = [1, 0], sizes = [1, 256], strides = [1, 1]} : vector<8x256xf32> to vector<1x256xf32>
    %c1_51 = arith.constant 1 : index
    %c0_52 = arith.constant 0 : index
    %c0_53 = arith.constant 0 : index
    %76 = vector.load %arg6[%c1_51, %c0_52, %c0_53] : memref<6x256x128xf32, #tpu.memory_space<vmem>>, vector<1x256x128xf32>
    %77 = vector.shape_cast %76 : vector<1x256x128xf32> to vector<256x128xf32>
    %cst_54 = arith.constant dense<0.000000e+00> : vector<1x128xf32>
    %78 = tpu.matmul %75, %77, %cst_54 {dimension_numbers = #tpu.dot_dimension_numbers<[1], [0], [0], [1], [0, 0, 1, 1], [], []>} : vector<1x256xf32>, vector<256x128xf32>, vector<1x128xf32> -> vector<1x128xf32>
    %79 = arith.addf %74, %78 : vector<1x128xf32>
    %80 = vector.extract_strided_slice %70 {offsets = [2, 0], sizes = [1, 256], strides = [1, 1]} : vector<8x256xf32> to vector<1x256xf32>
    %c2_55 = arith.constant 2 : index
    %c0_56 = arith.constant 0 : index
    %c0_57 = arith.constant 0 : index
    %81 = vector.load %arg6[%c2_55, %c0_56, %c0_57] : memref<6x256x128xf32, #tpu.memory_space<vmem>>, vector<1x256x128xf32>
    %82 = vector.shape_cast %81 : vector<1x256x128xf32> to vector<256x128xf32>
    %cst_58 = arith.constant dense<0.000000e+00> : vector<1x128xf32>
    %83 = tpu.matmul %80, %82, %cst_58 {dimension_numbers = #tpu.dot_dimension_numbers<[1], [0], [0], [1], [0, 0, 1, 1], [], []>} : vector<1x256xf32>, vector<256x128xf32>, vector<1x128xf32> -> vector<1x128xf32>
    %84 = arith.addf %79, %83 : vector<1x128xf32>
    %85 = vector.extract_strided_slice %70 {offsets = [3, 0], sizes = [1, 256], strides = [1, 1]} : vector<8x256xf32> to vector<1x256xf32>
    %c3_59 = arith.constant 3 : index
    %c0_60 = arith.constant 0 : index
    %c0_61 = arith.constant 0 : index
    %86 = vector.load %arg6[%c3_59, %c0_60, %c0_61] : memref<6x256x128xf32, #tpu.memory_space<vmem>>, vector<1x256x128xf32>
    %87 = vector.shape_cast %86 : vector<1x256x128xf32> to vector<256x128xf32>
    %cst_62 = arith.constant dense<0.000000e+00> : vector<1x128xf32>
    %88 = tpu.matmul %85, %87, %cst_62 {dimension_numbers = #tpu.dot_dimension_numbers<[1], [0], [0], [1], [0, 0, 1, 1], [], []>} : vector<1x256xf32>, vector<256x128xf32>, vector<1x128xf32> -> vector<1x128xf32>
    %89 = arith.addf %84, %88 : vector<1x128xf32>
    %90 = vector.extract_strided_slice %70 {offsets = [4, 0], sizes = [1, 256], strides = [1, 1]} : vector<8x256xf32> to vector<1x256xf32>
    %c4_63 = arith.constant 4 : index
    %c0_64 = arith.constant 0 : index
    %c0_65 = arith.constant 0 : index
    %91 = vector.load %arg6[%c4_63, %c0_64, %c0_65] : memref<6x256x128xf32, #tpu.memory_space<vmem>>, vector<1x256x128xf32>
    %92 = vector.shape_cast %91 : vector<1x256x128xf32> to vector<256x128xf32>
    %cst_66 = arith.constant dense<0.000000e+00> : vector<1x128xf32>
    %93 = tpu.matmul %90, %92, %cst_66 {dimension_numbers = #tpu.dot_dimension_numbers<[1], [0], [0], [1], [0, 0, 1, 1], [], []>} : vector<1x256xf32>, vector<256x128xf32>, vector<1x128xf32> -> vector<1x128xf32>
    %94 = arith.addf %89, %93 : vector<1x128xf32>
    %95 = vector.extract_strided_slice %70 {offsets = [5, 0], sizes = [1, 256], strides = [1, 1]} : vector<8x256xf32> to vector<1x256xf32>
    %c5 = arith.constant 5 : index
    %c0_67 = arith.constant 0 : index
    %c0_68 = arith.constant 0 : index
    %96 = vector.load %arg6[%c5, %c0_67, %c0_68] : memref<6x256x128xf32, #tpu.memory_space<vmem>>, vector<1x256x128xf32>
    %97 = vector.shape_cast %96 : vector<1x256x128xf32> to vector<256x128xf32>
    %cst_69 = arith.constant dense<0.000000e+00> : vector<1x128xf32>
    %98 = tpu.matmul %95, %97, %cst_69 {dimension_numbers = #tpu.dot_dimension_numbers<[1], [0], [0], [1], [0, 0, 1, 1], [], []>} : vector<1x256xf32>, vector<256x128xf32>, vector<1x128xf32> -> vector<1x128xf32>
    %99 = arith.addf %94, %98 : vector<1x128xf32>
    %c0_70 = arith.constant 0 : index
    %c0_71 = arith.constant 0 : index
    %100 = vector.load %arg7[%c0_70, %c0_71] : memref<1x128xf32, #tpu.memory_space<vmem>>, vector<1x128xf32>
    %101 = arith.addf %99, %100 : vector<1x128xf32>
    %cst_72 = arith.constant 0.000000e+00 : f32
    %102 = vector.broadcast %cst_72 : f32 to vector<1x128xf32>
    %103 = arith.maximumf %101, %102 : vector<1x128xf32>
    %c0_73 = arith.constant 0 : index
    %c0_74 = arith.constant 0 : index
    %104 = vector.load %arg8[%c0_73, %c0_74] : memref<128x88xf32, #tpu.memory_space<vmem>>, vector<128x88xf32>
    %cst_75 = arith.constant dense<0.000000e+00> : vector<1x88xf32>
    %105 = tpu.matmul %103, %104, %cst_75 {dimension_numbers = #tpu.dot_dimension_numbers<[1], [0], [0], [1], [0, 0, 1, 1], [], []>} : vector<1x128xf32>, vector<128x88xf32>, vector<1x88xf32> -> vector<1x88xf32>
    %c0_76 = arith.constant 0 : index
    %c0_77 = arith.constant 0 : index
    %106 = vector.load %arg9[%c0_76, %c0_77] : memref<1x88xf32, #tpu.memory_space<vmem>>, vector<1x88xf32>
    %107 = arith.addf %105, %106 : vector<1x88xf32>
    %cst_78 = arith.constant 0.000000e+00 : f32
    %108 = vector.broadcast %cst_78 : f32 to vector<1x88xf32>
    %109 = arith.subf %108, %107 : vector<1x88xf32>
    %110 = math.exp %109 : vector<1x88xf32>
    %cst_79 = arith.constant 1.000000e+00 : f32
    %111 = vector.broadcast %cst_79 : f32 to vector<1x88xf32>
    %112 = arith.addf %111, %110 : vector<1x88xf32>
    %cst_80 = arith.constant 1.000000e+00 : f32
    %113 = vector.broadcast %cst_80 : f32 to vector<1x88xf32>
    %114 = arith.divf %113, %112 : vector<1x88xf32>
    %c0_81 = arith.constant 0 : index
    %c0_82 = arith.constant 0 : index
    %c0_83 = arith.constant 0 : index
    %115 = vector.load %arg10[%c0_81, %c0_82, %c0_83] : memref<1x1x88xf32, #tpu.memory_space<vmem>>, vector<1x1x88xf32>
    %116 = vector.shape_cast %115 : vector<1x1x88xf32> to vector<1x88xf32>
    %117 = vector.shape_cast %114 : vector<1x88xf32> to vector<1x1x88xf32>
    tpu.vector_store %arg10[%c0_81, %c0_82, %c0_83], %117 {strides = array<i32>} : memref<1x1x88xf32, #tpu.memory_space<vmem>>, vector<1x1x88xf32>,
    return
  }
  func.func @transform_0(%arg0: i32) -> (i32, i32, i32) {
    %c0_i32 = arith.constant 0 : i32
    %c0_i32_0 = arith.constant 0 : i32
    %c0_i32_1 = arith.constant 0 : i32
    return %arg0, %c0_i32, %c0_i32_0 : i32, i32, i32
  }
  func.func @transform_1(%arg0: i32) -> (i32, i32, i32) {
    %c0_i32 = arith.constant 0 : i32
    %c0_i32_0 = arith.constant 0 : i32
    %c0_i32_1 = arith.constant 0 : i32
    %c0_i32_2 = arith.constant 0 : i32
    return %c0_i32, %c0_i32_0, %c0_i32_1 : i32, i32, i32
  }
  func.func @transform_2(%arg0: i32) -> (i32, i32) {
    %c0_i32 = arith.constant 0 : i32
    %c0_i32_0 = arith.constant 0 : i32
    %c0_i32_1 = arith.constant 0 : i32
    return %c0_i32, %c0_i32_0 : i32, i32
  }
  func.func @transform_3(%arg0: i32) -> (i32, i32, i32) {
    %c0_i32 = arith.constant 0 : i32
    %c0_i32_0 = arith.constant 0 : i32
    %c0_i32_1 = arith.constant 0 : i32
    %c0_i32_2 = arith.constant 0 : i32
    return %c0_i32, %c0_i32_0, %c0_i32_1 : i32, i32, i32
  }
  func.func @transform_4(%arg0: i32) -> (i32, i32) {
    %c0_i32 = arith.constant 0 : i32
    %c0_i32_0 = arith.constant 0 : i32
    %c0_i32_1 = arith.constant 0 : i32
    return %c0_i32, %c0_i32_0 : i32, i32
  }
  func.func @transform_5(%arg0: i32) -> (i32, i32, i32) {
    %c0_i32 = arith.constant 0 : i32
    %c0_i32_0 = arith.constant 0 : i32
    %c0_i32_1 = arith.constant 0 : i32
    %c0_i32_2 = arith.constant 0 : i32
    return %c0_i32, %c0_i32_0, %c0_i32_1 : i32, i32, i32
  }
  func.func @transform_6(%arg0: i32) -> (i32, i32) {
    %c0_i32 = arith.constant 0 : i32
    %c0_i32_0 = arith.constant 0 : i32
    %c0_i32_1 = arith.constant 0 : i32
    return %c0_i32, %c0_i32_0 : i32, i32
  }
  func.func @transform_7(%arg0: i32) -> (i32, i32) {
    %c0_i32 = arith.constant 0 : i32
    %c0_i32_0 = arith.constant 0 : i32
    %c0_i32_1 = arith.constant 0 : i32
    return %c0_i32, %c0_i32_0 : i32, i32
  }
  func.func @transform_8(%arg0: i32) -> (i32, i32) {
    %c0_i32 = arith.constant 0 : i32
    %c0_i32_0 = arith.constant 0 : i32
    %c0_i32_1 = arith.constant 0 : i32
    return %c0_i32, %c0_i32_0 : i32, i32
  }
  func.func @transform_9(%arg0: i32) -> (i32, i32, i32) {
    %c0_i32 = arith.constant 0 : i32
    %c0_i32_0 = arith.constant 0 : i32
    %c0_i32_1 = arith.constant 0 : i32
    return %arg0, %c0_i32, %c0_i32_0 : i32, i32, i32
  }
}

</mosaic_0001>

<llo_original>
// kernel: squeeze.1
$region0: #{squeeze.1}
  %s0 = inlined_call_operand.vmem [shape: f32[2,4375], index: 0, kind: input, shape index: {}]
  %s1 = inlined_call_operand.vmem [shape: f32[2,175,25], index: 1, kind: output, shape index: {}]
  $region1: #{squeeze.1} parent=0
    #allocation0 [shape = 'u8[143360]{0}', space=vmem, size = 0x23000, scoped, tag = 'scoped mem for input reshape']
    %s3 = sshllo.u32 0, 2
    %s4 = smul.addr 2, 34
    %s5 = scalar_lea.vmem %s0, %s4
    %v6 = vld [vmem:[%s5] sm:%s3]
    %s7 = scalar_lea.vmem [#allocation0], 272
    %8 = vst [vmem:[%s7] sm:%s3] %v6
    %s9 = smul.addr 2, 33
    %s10 = scalar_lea.vmem %s0, %s9
    %v11 = vld [vmem:[%s10] sm:%s3]
    %s12 = scalar_lea.vmem [#allocation0], 264
    %13 = vst [vmem:[%s12] sm:%s3] %v11
    %s14 = smul.addr 2, 32
    %s15 = scalar_lea.vmem %s0, %s14
    %v16 = vld [vmem:[%s15] sm:%s3]
    %s17 = scalar_lea.vmem [#allocation0], 256
    %18 = vst [vmem:[%s17] sm:%s3] %v16
    %s19 = smul.addr 2, 31
    %s20 = scalar_lea.vmem %s0, %s19
    %v21 = vld [vmem:[%s20] sm:%s3]
    %s22 = scalar_lea.vmem [#allocation0], 248
    %23 = vst [vmem:[%s22] sm:%s3] %v21
    %s24 = smul.addr 2, 30
    %s25 = scalar_lea.vmem %s0, %s24
    %v26 = vld [vmem:[%s25] sm:%s3]
    %s27 = scalar_lea.vmem [#allocation0], 240
    %28 = vst [vmem:[%s27] sm:%s3] %v26
    %s29 = smul.addr 2, 29
    %s30 = scalar_lea.vmem %s0, %s29
    %v31 = vld [vmem:[%s30] sm:%s3]
    %s32 = scalar_lea.vmem [#allocation0], 232
    %33 = vst [vmem:[%s32] sm:%s3] %v31
    %s34 = smul.addr 2, 28
    %s35 = scalar_lea.vmem %s0, %s34
    %v36 = vld [vmem:[%s35] sm:%s3]
    %s37 = scalar_lea.vmem [#allocation0], 224
    %38 = vst [vmem:[%s37] sm:%s3] %v36
    %s39 = smul.addr 2, 27
    %s40 = scalar_lea.vmem %s0, %s39
    %v41 = vld [vmem:[%s40] sm:%s3]
    %s42 = scalar_lea.vmem [#allocation0], 216
    %43 = vst [vmem:[%s42] sm:%s3] %v41
    %s44 = smul.addr 2, 26
    %s45 = scalar_lea.vmem %s0, %s44
    %v46 = vld [vmem:[%s45] sm:%s3]
    %s47 = scalar_lea.vmem [#allocation0], 208
    %48 = vst [vmem:[%s47] sm:%s3] %v46
    %s49 = smul.addr 2, 25
    %s50 = scalar_lea.vmem %s0, %s49
    %v51 = vld [vmem:[%s50] sm:%s3]
    %s52 = scalar_lea.vmem [#allocation0], 200
    %53 = vst [vmem:[%s52] sm:%s3] %v51
    %s54 = smul.addr 2, 24
    %s55 = scalar_lea.vmem %s0, %s54
    %v56 = vld [vmem:[%s55] sm:%s3]
    %s57 = scalar_lea.vmem [#allocation0], 192
    %58 = vst [vmem:[%s57] sm:%s3] %v56
    %s59 = smul.addr 2, 23
    %s60 = scalar_lea.vmem %s0, %s59
    %v61 = vld [vmem:[%s60] sm:%s3]
    %s62 = scalar_lea.vmem [#allocation0], 184
    %63 = vst [vmem:[%s62] sm:%s3] %v61
    %s64 = smul.addr 2, 22
    %s65 = scalar_lea.vmem %s0, %s64
    %v66 = vld [vmem:[%s65] sm:%s3]
    %s67 = scalar_lea.vmem [#allocation0], 176
    %68 = vst [vmem:[%s67] sm:%s3] %v66
    %s69 = smul.addr 2, 21
    %s70 = scalar_lea.vmem %s0, %s69
    %v71 = vld [vmem:[%s70] sm:%s3]
    %s72 = scalar_lea.vmem [#allocation0], 168
    %73 = vst [vmem:[%s72] sm:%s3] %v71
    %s74 = smul.addr 2, 20
    %s75 = scalar_lea.vmem %s0, %s74
    %v76 = vld [vmem:[%s75] sm:%s3]
    %s77 = scalar_lea.vmem [#allocation0], 160
    %78 = vst [vmem:[%s77] sm:%s3] %v76
    %s79 = smul.addr 2, 19
    %s80 = scalar_lea.vmem %s0, %s79
    %v81 = vld [vmem:[%s80] sm:%s3]
    %s82 = scalar_lea.vmem [#allocation0], 152
    %83 = vst [vmem:[%s82] sm:%s3] %v81
    %s84 = smul.addr 2, 18
    %s85 = scalar_lea.vmem %s0, %s84
    %v86 = vld [vmem:[%s85] sm:%s3]
    %s87 = scalar_lea.vmem [#allocation0], 144
    %88 = vst [vmem:[%s87] sm:%s3] %v86
    %s89 = smul.addr 2, 17
    %s90 = scalar_lea.vmem %s0, %s89
    %v91 = vld [vmem:[%s90] sm:%s3]
    %s92 = scalar_lea.vmem [#allocation0], 136
    %93 = vst [vmem:[%s92] sm:%s3] %v91
    %s94 = smul.addr 2, 16
    %s95 = scalar_lea.vmem %s0, %s94
    %v96 = vld [vmem:[%s95] sm:%s3]
    %s97 = scalar_lea.vmem [#allocation0], 128
    %98 = vst [vmem:[%s97] sm:%s3] %v96
    %s99 = smul.addr 2, 15
    %s100 = scalar_lea.vmem %s0, %s99
    %v101 = vld [vmem:[%s100] sm:%s3]
    %s102 = scalar_lea.vmem [#allocation0], 120
    %103 = vst [vmem:[%s102] sm:%s3] %v101
    %s104 = smul.addr 2, 14
    %s105 = scalar_lea.vmem %s0, %s104
    %v106 = vld [vmem:[%s105] sm:%s3]
    %s107 = scalar_lea.vmem [#allocation0], 112
    %108 = vst [vmem:[%s107] sm:%s3] %v106
    %s109 = smul.addr 2, 13
    %s110 = scalar_lea.vmem %s0, %s109
    %v111 = vld [vmem:[%s110] sm:%s3]
    %s112 = scalar_lea.vmem [#allocation0], 104
    %113 = vst [vmem:[%s112] sm:%s3] %v111
    %s114 = smul.addr 2, 12
    %s115 = scalar_lea.vmem %s0, %s114
    %v116 = vld [vmem:[%s115] sm:%s3]
    %s117 = scalar_lea.vmem [#allocation0], 96
    %118 = vst [vmem:[%s117] sm:%s3] %v116
    %s119 = smul.addr 2, 11
    %s120 = scalar_lea.vmem %s0, %s119
    %v121 = vld [vmem:[%s120] sm:%s3]
    %s122 = scalar_lea.vmem [#allocation0], 88
    %123 = vst [vmem:[%s122] sm:%s3] %v121
    %s124 = smul.addr 2, 10
    %s125 = scalar_lea.vmem %s0, %s124
    %v126 = vld [vmem:[%s125] sm:%s3]
    %s127 = scalar_lea.vmem [#allocation0], 80
    %128 = vst [vmem:[%s127] sm:%s3] %v126
    %s129 = smul.addr 2, 9
    %s130 = scalar_lea.vmem %s0, %s129
    %v131 = vld [vmem:[%s130] sm:%s3]
    %s132 = scalar_lea.vmem [#allocation0], 72
    %133 = vst [vmem:[%s132] sm:%s3] %v131
    %s134 = smul.addr 2, 8
    %s135 = scalar_lea.vmem %s0, %s134
    %v136 = vld [vmem:[%s135] sm:%s3]
    %s137 = scalar_lea.vmem [#allocation0], 64
    %138 = vst [vmem:[%s137] sm:%s3] %v136
    %s139 = smul.addr 2, 7
    %s140 = scalar_lea.vmem %s0, %s139
    %v141 = vld [vmem:[%s140] sm:%s3]
    %s142 = scalar_lea.vmem [#allocation0], 56
    %143 = vst [vmem:[%s142] sm:%s3] %v141
    %s144 = smul.addr 2, 6
    %s145 = scalar_lea.vmem %s0, %s144
    %v146 = vld [vmem:[%s145] sm:%s3]
    %s147 = scalar_lea.vmem [#allocation0], 48
    %148 = vst [vmem:[%s147] sm:%s3] %v146
    %s149 = smul.addr 2, 5
    %s150 = scalar_lea.vmem %s0, %s149
    %v151 = vld [vmem:[%s150] sm:%s3]
    %s152 = scalar_lea.vmem [#allocation0], 40
    %153 = vst [vmem:[%s152] sm:%s3] %v151
    %s154 = smul.addr 2, 4
    %s155 = scalar_lea.vmem %s0, %s154
    %v156 = vld [vmem:[%s155] sm:%s3]
    %s157 = scalar_lea.vmem [#allocation0], 32
    %158 = vst [vmem:[%s157] sm:%s3] %v156
    %s159 = smul.addr 2, 3
    %s160 = scalar_lea.vmem %s0, %s159
    %v161 = vld [vmem:[%s160] sm:%s3]
    %s162 = scalar_lea.vmem [#allocation0], 24
    %163 = vst [vmem:[%s162] sm:%s3] %v161
    %s164 = smul.addr 2, 2
    %s165 = scalar_lea.vmem %s0, %s164
    %v166 = vld [vmem:[%s165] sm:%s3]
    %s167 = scalar_lea.vmem [#allocation0], 16
    %168 = vst [vmem:[%s167] sm:%s3] %v166
    %s169 = scalar_lea.vmem %s0, 2
    %v170 = vld [vmem:[%s169] sm:%s3]
    %s171 = scalar_lea.vmem [#allocation0], 8
    %172 = vst [vmem:[%s171] sm:%s3] %v170
    %v173 = vld [vmem:[%s0] sm:%s3]
    %174 = vst [vmem:[#allocation0] sm:%s3] %v173
    %v175 = vld [vmem:[#allocation0] sm:$0x3]
    %vm176 = vcmask 203776
    %177 = vst.msk [vmem:[%s1] ss:$176 sm:$0x3] %vm176, %v175
    %s178 = scalar_lea.vmem [#allocation0], 200
    %v179 = vld [vmem:[%s178] sm:$0x3]
    %vm180 = vcmask 203776
    %s181 = scalar_lea.vmem %s1, 128
    %182 = vst.msk [vmem:[%s181] ss:$176 sm:$0x3] %vm180, %v179
    %s183 = scalar_lea.vmem [#allocation0], 64
    %v184 = vld [vmem:[%s183] sm:$0x3]
    %s185 = scalar_lea.vmem [#allocation0], 262
    %v186 = vld [vmem:[%s185] sm:$0xc]
    %vm187 = vcmask 1043458
    %v188 = vsel %vm187, %v186, %v184
    %189 = vrot.lane.b32.xlu0 %v188, 127
    %v190 = vpop.permute.xlu0 %189
    %vm191 = vcmask 203776
    %s192 = scalar_lea.vmem %s1, 41
    %193 = vst.msk [vmem:[%s192] ss:$176 sm:$0x3] %vm191, %v190
    %s194 = scalar_lea.vmem %s1, 4294967113
    %195 = vst.msk [vmem:[%s194] ss:$176 sm:$0xc] %vm191, %v190
    %s196 = scalar_lea.vmem [#allocation0], 129
    %s197 = smov 3
    %v198 = vld [vmem:[%s196] ss:$-1 sm:%s197]
    %199 = vrot.lane.b32.xlu0 %v198, 126
    %v200 = vpop.permute.xlu0 %199
    %vm201 = vcmask 203776
    %s202 = scalar_lea.vmem %s1, 258
    %203 = vst.msk [vmem:[%s202] ss:$-176 sm:$0x3] %vm201, %v200
    %s204 = scalar_lea.vmem [#allocation0], 193
    %s205 = smov 3
    %v206 = vld [vmem:[%s204] ss:$-1 sm:%s205]
    %207 = vrot.lane.b32.xlu0 %v206, 125
    %v208 = vpop.permute.xlu0 %207
    %vm209 = vcmask 203776
    %s210 = scalar_lea.vmem %s1, 299
    %211 = vst.msk [vmem:[%s210] ss:$-176 sm:$0x3] %vm209, %v208
    %s212 = scalar_lea.vmem [#allocation0], 56
    %v213 = vld [vmem:[%s212] sm:$0x3]
    %s214 = scalar_lea.vmem [#allocation0], 254
    %v215 = vld [vmem:[%s214] sm:$0xc]
    %vm216 = vcmask 1043458
    %v217 = vsel %vm216, %v215, %v213
    %218 = vrot.lane.b32.xlu0 %v217, 124
    %v219 = vpop.permute.xlu0 %218
    %vm220 = vcmask 203776
    %s221 = scalar_lea.vmem %s1, 36
    %222 = vst.msk [vmem:[%s221] ss:$176 sm:$0x3] %vm220, %v219
    %s223 = scalar_lea.vmem %s1, 4294967108
    %224 = vst.msk [vmem:[%s223] ss:$176 sm:$0xc] %vm220, %v219
    %s225 = scalar_lea.vmem [#allocation0], 120
    %v226 = vld [vmem:[%s225] sm:$0x3]
    %227 = vrot.lane.b32.xlu0 %v226, 123
    %v228 = vpop.permute.xlu0 %227
    %vm229 = vcmask 203776
    %s230 = scalar_lea.vmem %s1, 77
    %231 = vst.msk [vmem:[%s230] ss:$176 sm:$0x3] %vm229, %v228
    %s232 = scalar_lea.vmem [#allocation0], 185
    %s233 = smov 3
    %v234 = vld [vmem:[%s232] ss:$-1 sm:%s233]
    %235 = vrot.lane.b32.xlu0 %v234, 122
    %v236 = vpop.permute.xlu0 %235
    %vm237 = vcmask 203776
    %s238 = scalar_lea.vmem %s1, 294
    %239 = vst.msk [vmem:[%s238] ss:$-176 sm:$0x3] %vm237, %v236
    %s240 = scalar_lea.vmem [#allocation0], 49
    %s241 = smov 3
    %v242 = vld [vmem:[%s240] ss:$-1 sm:%s241]
    %s243 = scalar_lea.vmem [#allocation0], 251
    %s244 = smov 12
    %v245 = vld [vmem:[%s243] ss:$-1 sm:%s244]
    %vm246 = vcmask 1043458
    %v247 = vsel %vm246, %v245, %v242
    %248 = vrot.lane.b32.xlu0 %v247, 121
    %v249 = vpop.permute.xlu0 %248
    %vm250 = vcmask 203776
    %s251 = scalar_lea.vmem %s1, 207
    %252 = vst.msk [vmem:[%s251] ss:$-176 sm:$0x3] %vm250, %v249
    %s253 = scalar_lea.vmem %s1, 687
    %254 = vst.msk [vmem:[%s253] ss:$-176 sm:$0xc] %vm250, %v249
    %s255 = scalar_lea.vmem [#allocation0], 112
    %v256 = vld [vmem:[%s255] sm:$0x3]
    %257 = vrot.lane.b32.xlu0 %v256, 120
    %v258 = vpop.permute.xlu0 %257
    %vm259 = vcmask 203776
    %s260 = scalar_lea.vmem %s1, 72
    %261 = vst.msk [vmem:[%s260] ss:$176 sm:$0x3] %vm259, %v258
    %s262 = scalar_lea.vmem [#allocation0], 177
    %s263 = smov 3
    %v264 = vld [vmem:[%s262] ss:$-1 sm:%s263]
    %265 = vrot.lane.b32.xlu0 %v264, 119
    %v266 = vpop.permute.xlu0 %265
    %vm267 = vcmask 203776
    %s268 = scalar_lea.vmem %s1, 289
    %269 = vst.msk [vmem:[%s268] ss:$-176 sm:$0x3] %vm267, %v266
    %s270 = scalar_lea.vmem [#allocation0], 41
    %s271 = smov 3
    %v272 = vld [vmem:[%s270] ss:$-1 sm:%s271]
    %s273 = scalar_lea.vmem [#allocation0], 243
    %s274 = smov 12
    %v275 = vld [vmem:[%s273] ss:$-1 sm:%s274]
    %vm276 = vcmask 1043458
    %v277 = vsel %vm276, %v275, %v272
    %278 = vrot.lane.b32.xlu0 %v277, 118
    %v279 = vpop.permute.xlu0 %278
    %vm280 = vcmask 203776
    %s281 = scalar_lea.vmem %s1, 202
    %282 = vst.msk [vmem:[%s281] ss:$-176 sm:$0x3] %vm280, %v279
    %s283 = scalar_lea.vmem %s1, 682
    %284 = vst.msk [vmem:[%s283] ss:$-176 sm:$0xc] %vm280, %v279
    %s285 = scalar_lea.vmem [#allocation0], 104
    %v286 = vld [vmem:[%s285] sm:$0x3]
    %287 = vrot.lane.b32.xlu0 %v286, 117
    %v288 = vpop.permute.xlu0 %287
    %vm289 = vcmask 203776
    %s290 = scalar_lea.vmem %s1, 67
    %291 = vst.msk [vmem:[%s290] ss:$176 sm:$0x3] %vm289, %v288
    %s292 = scalar_lea.vmem [#allocation0], 168
    %v293 = vld [vmem:[%s292] sm:$0x3]
    %294 = vrot.lane.b32.xlu0 %v293, 116
    %v295 = vpop.permute.xlu0 %294
    %vm296 = vcmask 203776
    %s297 = scalar_lea.vmem %s1, 108
    %298 = vst.msk [vmem:[%s297] ss:$176 sm:$0x3] %vm296, %v295
    %s299 = scalar_lea.vmem [#allocation0], 33
    %s300 = smov 3
    %v301 = vld [vmem:[%s299] ss:$-1 sm:%s300]
    %s302 = scalar_lea.vmem [#allocation0], 235
    %s303 = smov 12
    %v304 = vld [vmem:[%s302] ss:$-1 sm:%s303]
    %vm305 = vcmask 1043458
    %v306 = vsel %vm305, %v304, %v301
    %307 = vrot.lane.b32.xlu0 %v306, 115
    %v308 = vpop.permute.xlu0 %307
    %vm309 = vcmask 203776
    %s310 = scalar_lea.vmem %s1, 197
    %311 = vst.msk [vmem:[%s310] ss:$-176 sm:$0x3] %vm309, %v308
    %s312 = scalar_lea.vmem %s1, 677
    %313 = vst.msk [vmem:[%s312] ss:$-176 sm:$0xc] %vm309, %v308
    %s314 = scalar_lea.vmem [#allocation0], 97
    %s315 = smov 3
    %v316 = vld [vmem:[%s314] ss:$-1 sm:%s315]
    %317 = vrot.lane.b32.xlu0 %v316, 114
    %v318 = vpop.permute.xlu0 %317
    %vm319 = vcmask 203776
    %s320 = scalar_lea.vmem %s1, 238
    %321 = vst.msk [vmem:[%s320] ss:$-176 sm:$0x3] %vm319, %v318
    %s322 = scalar_lea.vmem [#allocation0], 160
    %v323 = vld [vmem:[%s322] sm:$0x3]
    %324 = vrot.lane.b32.xlu0 %v323, 113
    %v325 = vpop.permute.xlu0 %324
    %vm326 = vcmask 203776
    %s327 = scalar_lea.vmem %s1, 103
    %328 = vst.msk [vmem:[%s327] ss:$176 sm:$0x3] %vm326, %v325
    %s329 = scalar_lea.vmem [#allocation0], 25
    %s330 = smov 3
    %v331 = vld [vmem:[%s329] ss:$-1 sm:%s330]
    %s332 = scalar_lea.vmem [#allocation0], 227
    %s333 = smov 12
    %v334 = vld [vmem:[%s332] ss:$-1 sm:%s333]
    %vm335 = vcmask 1043458
    %v336 = vsel %vm335, %v334, %v331
    %337 = vrot.lane.b32.xlu0 %v336, 112
    %v338 = vpop.permute.xlu0 %337
    %vm339 = vcmask 203776
    %s340 = scalar_lea.vmem %s1, 192
    %341 = vst.msk [vmem:[%s340] ss:$-176 sm:$0x3] %vm339, %v338
    %s342 = scalar_lea.vmem %s1, 672
    %343 = vst.msk [vmem:[%s342] ss:$-176 sm:$0xc] %vm339, %v338
    %s344 = scalar_lea.vmem [#allocation0], 89
    %s345 = smov 3
    %v346 = vld [vmem:[%s344] ss:$-1 sm:%s345]
    %347 = vrot.lane.b32.xlu0 %v346, 111
    %v348 = vpop.permute.xlu0 %347
    %vm349 = vcmask 203776
    %s350 = scalar_lea.vmem %s1, 233
    %351 = vst.msk [vmem:[%s350] ss:$-176 sm:$0x3] %vm349, %v348
    %s352 = scalar_lea.vmem [#allocation0], 152
    %v353 = vld [vmem:[%s352] sm:$0x3]
    %354 = vrot.lane.b32.xlu0 %v353, 110
    %v355 = vpop.permute.xlu0 %354
    %vm356 = vcmask 203776
    %s357 = scalar_lea.vmem %s1, 98
    %358 = vst.msk [vmem:[%s357] ss:$176 sm:$0x3] %vm356, %v355
    %s359 = scalar_lea.vmem [#allocation0], 16
    %v360 = vld [vmem:[%s359] sm:$0x3]
    %s361 = scalar_lea.vmem [#allocation0], 214
    %v362 = vld [vmem:[%s361] sm:$0xc]
    %vm363 = vcmask 1043458
    %v364 = vsel %vm363, %v362, %v360
    %365 = vrot.lane.b32.xlu0 %v364, 109
    %v366 = vpop.permute.xlu0 %365
    %vm367 = vcmask 203776
    %s368 = scalar_lea.vmem %s1, 11
    %369 = vst.msk [vmem:[%s368] ss:$176 sm:$0x3] %vm367, %v366
    %s370 = scalar_lea.vmem %s1, 4294967083
    %371 = vst.msk [vmem:[%s370] ss:$176 sm:$0xc] %vm367, %v366
    %s372 = scalar_lea.vmem [#allocation0], 81
    %s373 = smov 3
    %v374 = vld [vmem:[%s372] ss:$-1 sm:%s373]
    %375 = vrot.lane.b32.xlu0 %v374, 108
    %v376 = vpop.permute.xlu0 %375
    %vm377 = vcmask 203776
    %s378 = scalar_lea.vmem %s1, 228
    %379 = vst.msk [vmem:[%s378] ss:$-176 sm:$0x3] %vm377, %v376
    %s380 = scalar_lea.vmem [#allocation0], 145
    %s381 = smov 3
    %v382 = vld [vmem:[%s380] ss:$-1 sm:%s381]
    %383 = vrot.lane.b32.xlu0 %v382, 107
    %v384 = vpop.permute.xlu0 %383
    %vm385 = vcmask 203776
    %s386 = scalar_lea.vmem %s1, 269
    %387 = vst.msk [vmem:[%s386] ss:$-176 sm:$0x3] %vm385, %v384
    %s388 = scalar_lea.vmem [#allocation0], 8
    %v389 = vld [vmem:[%s388] sm:$0x3]
    %s390 = scalar_lea.vmem [#allocation0], 206
    %v391 = vld [vmem:[%s390] sm:$0xc]
    %vm392 = vcmask 1043458
    %v393 = vsel %vm392, %v391, %v389
    %394 = vrot.lane.b32.xlu0 %v393, 106
    %v395 = vpop.permute.xlu0 %394
    %vm396 = vcmask 203776
    %s397 = scalar_lea.vmem %s1, 6
    %398 = vst.msk [vmem:[%s397] ss:$176 sm:$0x3] %vm396, %v395
    %s399 = scalar_lea.vmem %s1, 4294967078
    %400 = vst.msk [vmem:[%s399] ss:$176 sm:$0xc] %vm396, %v395
    %s401 = scalar_lea.vmem [#allocation0], 72
    %v402 = vld [vmem:[%s401] sm:$0x3]
    %403 = vrot.lane.b32.xlu0 %v402, 105
    %v404 = vpop.permute.xlu0 %403
    %vm405 = vcmask 203776
    %s406 = scalar_lea.vmem %s1, 47
    %407 = vst.msk [vmem:[%s406] ss:$176 sm:$0x3] %vm405, %v404
    %s408 = scalar_lea.vmem [#allocation0], 137
    %s409 = smov 3
    %v410 = vld [vmem:[%s408] ss:$-1 sm:%s409]
    %411 = vrot.lane.b32.xlu0 %v410, 104
    %v412 = vpop.permute.xlu0 %411
    %vm413 = vcmask 203776
    %s414 = scalar_lea.vmem %s1, 264
    %415 = vst.msk [vmem:[%s414] ss:$-176 sm:$0x3] %vm413, %v412
    %v416 = vld [vmem:[#allocation0] sm:$0x3]
    %s417 = scalar_lea.vmem [#allocation0], 198
    %v418 = vld [vmem:[%s417] sm:$0xc]
    %vm419 = vcmask 1043458
    %v420 = vsel %vm419, %v418, %v416
    %421 = vrot.lane.b32.xlu0 %v420, 103
    %v422 = vpop.permute.xlu0 %421
    %vm423 = vcmask 203776
    %s424 = scalar_lea.vmem %s1, 1
    %425 = vst.msk [vmem:[%s424] ss:$176 sm:$0x3] %vm423, %v422
    %s426 = scalar_lea.vmem %s1, 4294967073
    %427 = vst.msk [vmem:[%s426] ss:$176 sm:$0xc] %vm423, %v422
    %s428 = scalar_lea.vmem [#allocation0], 64
    %v429 = vld [vmem:[%s428] sm:$0x3]
    %s430 = scalar_lea.vmem [#allocation0], 262
    %v431 = vld [vmem:[%s430] sm:$0xc]
    %vm432 = vcmask 1043458
    %v433 = vsel %vm432, %v431, %v429
    %434 = vrot.lane.b32.xlu0 %v433, 102
    %v435 = vpop.permute.xlu0 %434
    %vm436 = vcmask 203776
    %s437 = scalar_lea.vmem %s1, 42
    %438 = vst.msk [vmem:[%s437] ss:$176 sm:$0x3] %vm436, %v435
    %s439 = scalar_lea.vmem %s1, 4294967114
    %440 = vst.msk [vmem:[%s439] ss:$176 sm:$0xc] %vm436, %v435
    %s441 = scalar_lea.vmem [#allocation0], 129
    %s442 = smov 3
    %v443 = vld [vmem:[%s441] ss:$-1 sm:%s442]
    %444 = vrot.lane.b32.xlu0 %v443, 101
    %v445 = vpop.permute.xlu0 %444
    %vm446 = vcmask 203776
    %s447 = scalar_lea.vmem %s1, 259
    %448 = vst.msk [vmem:[%s447] ss:$-176 sm:$0x3] %vm446, %v445
    %s449 = scalar_lea.vmem [#allocation0], 193
    %s450 = smov 3
    %v451 = vld [vmem:[%s449] ss:$-1 sm:%s450]
    %452 = vrot.lane.b32.xlu0 %v451, 100
    %v453 = vpop.permute.xlu0 %452
    %vm454 = vcmask 203776
    %s455 = scalar_lea.vmem %s1, 300
    %456 = vst.msk [vmem:[%s455] ss:$-176 sm:$0x3] %vm454, %v453
    %s457 = scalar_lea.vmem [#allocation0], 56
    %v458 = vld [vmem:[%s457] sm:$0x3]
    %s459 = scalar_lea.vmem [#allocation0], 254
    %v460 = vld [vmem:[%s459] sm:$0xc]
    %vm461 = vcmask 1043458
    %v462 = vsel %vm461, %v460, %v458
    %463 = vrot.lane.b32.xlu0 %v462, 99
    %v464 = vpop.permute.xlu0 %463
    %vm465 = vcmask 203776
    %s466 = scalar_lea.vmem %s1, 37
    %467 = vst.msk [vmem:[%s466] ss:$176 sm:$0x3] %vm465, %v464
    %s468 = scalar_lea.vmem %s1, 4294967109
    %469 = vst.msk [vmem:[%s468] ss:$176 sm:$0xc] %vm465, %v464
    %s470 = scalar_lea.vmem [#allocation0], 120
    %v471 = vld [vmem:[%s470] sm:$0x3]
    %472 = vrot.lane.b32.xlu0 %v471, 98
    %v473 = vpop.permute.xlu0 %472
    %vm474 = vcmask 203776
    %s475 = scalar_lea.vmem %s1, 78
    %476 = vst.msk [vmem:[%s475] ss:$176 sm:$0x3] %vm474, %v473
    %s477 = scalar_lea.vmem [#allocation0], 185
    %s478 = smov 3
    %v479 = vld [vmem:[%s477] ss:$-1 sm:%s478]
    %480 = vrot.lane.b32.xlu0 %v479, 97
    %v481 = vpop.permute.xlu0 %480
    %vm482 = vcmask 203776
    %s483 = scalar_lea.vmem %s1, 295
    %484 = vst.msk [vmem:[%s483] ss:$-176 sm:$0x3] %vm482, %v481
    %s485 = scalar_lea.vmem [#allocation0], 48
    %v486 = vld [vmem:[%s485] sm:$0x3]
    %s487 = scalar_lea.vmem [#allocation0], 246
    %v488 = vld [vmem:[%s487] sm:$0xc]
    %vm489 = vcmask 1043458
    %v490 = vsel %vm489, %v488, %v486
    %491 = vrot.lane.b32.xlu0 %v490, 96
    %v492 = vpop.permute.xlu0 %491
    %vm493 = vcmask 203776
    %s494 = scalar_lea.vmem %s1, 32
    %495 = vst.msk [vmem:[%s494] ss:$176 sm:$0x3] %vm493, %v492
    %s496 = scalar_lea.vmem %s1, 4294967104
    %497 = vst.msk [vmem:[%s496] ss:$176 sm:$0xc] %vm493, %v492
    %s498 = scalar_lea.vmem [#allocation0], 112
    %v499 = vld [vmem:[%s498] sm:$0x3]
    %500 = vrot.lane.b32.xlu0 %v499, 95
    %v501 = vpop.permute.xlu0 %500
    %vm502 = vcmask 203776
    %s503 = scalar_lea.vmem %s1, 73
    %504 = vst.msk [vmem:[%s503] ss:$176 sm:$0x3] %vm502, %v501
    %s505 = scalar_lea.vmem [#allocation0], 177
    %s506 = smov 3
    %v507 = vld [vmem:[%s505] ss:$-1 sm:%s506]
    %508 = vrot.lane.b32.xlu0 %v507, 94
    %v509 = vpop.permute.xlu0 %508
    %vm510 = vcmask 203776
    %s511 = scalar_lea.vmem %s1, 290
    %512 = vst.msk [vmem:[%s511] ss:$-176 sm:$0x3] %vm510, %v509
    %s513 = scalar_lea.vmem [#allocation0], 41
    %s514 = smov 3
    %v515 = vld [vmem:[%s513] ss:$-1 sm:%s514]
    %s516 = scalar_lea.vmem [#allocation0], 243
    %s517 = smov 12
    %v518 = vld [vmem:[%s516] ss:$-1 sm:%s517]
    %vm519 = vcmask 1043458
    %v520 = vsel %vm519, %v518, %v515
    %521 = vrot.lane.b32.xlu0 %v520, 93
    %v522 = vpop.permute.xlu0 %521
    %vm523 = vcmask 203776
    %s524 = scalar_lea.vmem %s1, 203
    %525 = vst.msk [vmem:[%s524] ss:$-176 sm:$0x3] %vm523, %v522
    %s526 = scalar_lea.vmem %s1, 683
    %527 = vst.msk [vmem:[%s526] ss:$-176 sm:$0xc] %vm523, %v522
    %s528 = scalar_lea.vmem [#allocation0], 104
    %v529 = vld [vmem:[%s528] sm:$0x3]
    %530 = vrot.lane.b32.xlu0 %v529, 92
    %v531 = vpop.permute.xlu0 %530
    %vm532 = vcmask 203776
    %s533 = scalar_lea.vmem %s1, 68
    %534 = vst.msk [vmem:[%s533] ss:$176 sm:$0x3] %vm532, %v531
    %s535 = scalar_lea.vmem [#allocation0], 168
    %v536 = vld [vmem:[%s535] sm:$0x3]
    %537 = vrot.lane.b32.xlu0 %v536, 91
    %v538 = vpop.permute.xlu0 %537
    %vm539 = vcmask 203776
    %s540 = scalar_lea.vmem %s1, 109
    %541 = vst.msk [vmem:[%s540] ss:$176 sm:$0x3] %vm539, %v538
    %s542 = scalar_lea.vmem [#allocation0], 33
    %s543 = smov 3
    %v544 = vld [vmem:[%s542] ss:$-1 sm:%s543]
    %s545 = scalar_lea.vmem [#allocation0], 235
    %s546 = smov 12
    %v547 = vld [vmem:[%s545] ss:$-1 sm:%s546]
    %vm548 = vcmask 1043458
    %v549 = vsel %vm548, %v547, %v544
    %550 = vrot.lane.b32.xlu0 %v549, 90
    %v551 = vpop.permute.xlu0 %550
    %vm552 = vcmask 203776
    %s553 = scalar_lea.vmem %s1, 198
    %554 = vst.msk [vmem:[%s553] ss:$-176 sm:$0x3] %vm552, %v551
    %s555 = scalar_lea.vmem %s1, 678
    %556 = vst.msk [vmem:[%s555] ss:$-176 sm:$0xc] %vm552, %v551
    %s557 = scalar_lea.vmem [#allocation0], 97
    %s558 = smov 3
    %v559 = vld [vmem:[%s557] ss:$-1 sm:%s558]
    %560 = vrot.lane.b32.xlu0 %v559, 89
    %v561 = vpop.permute.xlu0 %560
    %vm562 = vcmask 203776
    %s563 = scalar_lea.vmem %s1, 239
    %564 = vst.msk [vmem:[%s563] ss:$-176 sm:$0x3] %vm562, %v561
    %s565 = scalar_lea.vmem [#allocation0], 160
    %v566 = vld [vmem:[%s565] sm:$0x3]
    %567 = vrot.lane.b32.xlu0 %v566, 88
    %v568 = vpop.permute.xlu0 %567
    %vm569 = vcmask 203776
    %s570 = scalar_lea.vmem %s1, 104
    %571 = vst.msk [vmem:[%s570] ss:$176 sm:$0x3] %vm569, %v568
    %s572 = scalar_lea.vmem [#allocation0], 25
    %s573 = smov 3
    %v574 = vld [vmem:[%s572] ss:$-1 sm:%s573]
    %s575 = scalar_lea.vmem [#allocation0], 227
    %s576 = smov 12
    %v577 = vld [vmem:[%s575] ss:$-1 sm:%s576]
    %vm578 = vcmask 1043458
    %v579 = vsel %vm578, %v577, %v574
    %580 = vrot.lane.b32.xlu0 %v579, 87
    %v581 = vpop.permute.xlu0 %580
    %vm582 = vcmask 203776
    %s583 = scalar_lea.vmem %s1, 193
    %584 = vst.msk [vmem:[%s583] ss:$-176 sm:$0x3] %vm582, %v581
    %s585 = scalar_lea.vmem %s1, 673
    %586 = vst.msk [vmem:[%s585] ss:$-176 sm:$0xc] %vm582, %v581
    %s587 = scalar_lea.vmem [#allocation0], 89
    %s588 = smov 3
    %v589 = vld [vmem:[%s587] ss:$-1 sm:%s588]
    %590 = vrot.lane.b32.xlu0 %v589, 86
    %v591 = vpop.permute.xlu0 %590
    %vm592 = vcmask 203776
    %s593 = scalar_lea.vmem %s1, 234
    %594 = vst.msk [vmem:[%s593] ss:$-176 sm:$0x3] %vm592, %v591
    %s595 = scalar_lea.vmem [#allocation0], 152
    %v596 = vld [vmem:[%s595] sm:$0x3]
    %597 = vrot.lane.b32.xlu0 %v596, 85
    %v598 = vpop.permute.xlu0 %597
    %vm599 = vcmask 203776
    %s600 = scalar_lea.vmem %s1, 99
    %601 = vst.msk [vmem:[%s600] ss:$176 sm:$0x3] %vm599, %v598
    %s602 = scalar_lea.vmem [#allocation0], 16
    %v603 = vld [vmem:[%s602] sm:$0x3]
    %s604 = scalar_lea.vmem [#allocation0], 214
    %v605 = vld [vmem:[%s604] sm:$0xc]
    %vm606 = vcmask 1043458
    %v607 = vsel %vm606, %v605, %v603
    %608 = vrot.lane.b32.xlu0 %v607, 84
    %v609 = vpop.permute.xlu0 %608
    %vm610 = vcmask 203776
    %s611 = scalar_lea.vmem %s1, 12
    %612 = vst.msk [vmem:[%s611] ss:$176 sm:$0x3] %vm610, %v609
    %s613 = scalar_lea.vmem %s1, 4294967084
    %614 = vst.msk [vmem:[%s613] ss:$176 sm:$0xc] %vm610, %v609
    %s615 = scalar_lea.vmem [#allocation0], 81
    %s616 = smov 3
    %v617 = vld [vmem:[%s615] ss:$-1 sm:%s616]
    %618 = vrot.lane.b32.xlu0 %v617, 83
    %v619 = vpop.permute.xlu0 %618
    %vm620 = vcmask 203776
    %s621 = scalar_lea.vmem %s1, 229
    %622 = vst.msk [vmem:[%s621] ss:$-176 sm:$0x3] %vm620, %v619
    %s623 = scalar_lea.vmem [#allocation0], 145
    %s624 = smov 3
    %v625 = vld [vmem:[%s623] ss:$-1 sm:%s624]
    %626 = vrot.lane.b32.xlu0 %v625, 82
    %v627 = vpop.permute.xlu0 %626
    %vm628 = vcmask 203776
    %s629 = scalar_lea.vmem %s1, 270
    %630 = vst.msk [vmem:[%s629] ss:$-176 sm:$0x3] %vm628, %v627
    %s631 = scalar_lea.vmem [#allocation0], 8
    %v632 = vld [vmem:[%s631] sm:$0x3]
    %s633 = scalar_lea.vmem [#allocation0], 206
    %v634 = vld [vmem:[%s633] sm:$0xc]
    %vm635 = vcmask 1043458
    %v636 = vsel %vm635, %v634, %v632
    %637 = vrot.lane.b32.xlu0 %v636, 81
    %v638 = vpop.permute.xlu0 %637
    %vm639 = vcmask 203776
    %s640 = scalar_lea.vmem %s1, 7
    %641 = vst.msk [vmem:[%s640] ss:$176 sm:$0x3] %vm639, %v638
    %s642 = scalar_lea.vmem %s1, 4294967079
    %643 = vst.msk [vmem:[%s642] ss:$176 sm:$0xc] %vm639, %v638
    %s644 = scalar_lea.vmem [#allocation0], 73
    %s645 = smov 3
    %v646 = vld [vmem:[%s644] ss:$-1 sm:%s645]
    %647 = vrot.lane.b32.xlu0 %v646, 80
    %v648 = vpop.permute.xlu0 %647
    %vm649 = vcmask 203776
    %s650 = scalar_lea.vmem %s1, 224
    %651 = vst.msk [vmem:[%s650] ss:$-176 sm:$0x3] %vm649, %v648
    %s652 = scalar_lea.vmem [#allocation0], 137
    %s653 = smov 3
    %v654 = vld [vmem:[%s652] ss:$-1 sm:%s653]
    %655 = vrot.lane.b32.xlu0 %v654, 79
    %v656 = vpop.permute.xlu0 %655
    %vm657 = vcmask 203776
    %s658 = scalar_lea.vmem %s1, 265
    %659 = vst.msk [vmem:[%s658] ss:$-176 sm:$0x3] %vm657, %v656
    %v660 = vld [vmem:[#allocation0] sm:$0x3]
    %s661 = scalar_lea.vmem [#allocation0], 198
    %v662 = vld [vmem:[%s661] sm:$0xc]
    %vm663 = vcmask 1043458
    %v664 = vsel %vm663, %v662, %v660
    %665 = vrot.lane.b32.xlu0 %v664, 78
    %v666 = vpop.permute.xlu0 %665
    %vm667 = vcmask 203776
    %s668 = scalar_lea.vmem %s1, 2
    %669 = vst.msk [vmem:[%s668] ss:$176 sm:$0x3] %vm667, %v666
    %s670 = scalar_lea.vmem %s1, 4294967074
    %671 = vst.msk [vmem:[%s670] ss:$176 sm:$0xc] %vm667, %v666
    %s672 = scalar_lea.vmem [#allocation0], 64
    %v673 = vld [vmem:[%s672] sm:$0x3]
    %s674 = scalar_lea.vmem [#allocation0], 262
    %v675 = vld [vmem:[%s674] sm:$0xc]
    %vm676 = vcmask 1043458
    %v677 = vsel %vm676, %v675, %v673
    %678 = vrot.lane.b32.xlu0 %v677, 77
    %v679 = vpop.permute.xlu0 %678
    %vm680 = vcmask 203776
    %s681 = scalar_lea.vmem %s1, 43
    %682 = vst.msk [vmem:[%s681] ss:$176 sm:$0x3] %vm680, %v679
    %s683 = scalar_lea.vmem %s1, 4294967115
    %684 = vst.msk [vmem:[%s683] ss:$176 sm:$0xc] %vm680, %v679
    %s685 = scalar_lea.vmem [#allocation0], 129
    %s686 = smov 3
    %v687 = vld [vmem:[%s685] ss:$-1 sm:%s686]
    %688 = vrot.lane.b32.xlu0 %v687, 76
    %v689 = vpop.permute.xlu0 %688
    %vm690 = vcmask 203776
    %s691 = scalar_lea.vmem %s1, 260
    %692 = vst.msk [vmem:[%s691] ss:$-176 sm:$0x3] %vm690, %v689
    %s693 = scalar_lea.vmem [#allocation0], 193
    %s694 = smov 3
    %v695 = vld [vmem:[%s693] ss:$-1 sm:%s694]
    %696 = vrot.lane.b32.xlu0 %v695, 75
    %v697 = vpop.permute.xlu0 %696
    %vm698 = vcmask 203776
    %s699 = scalar_lea.vmem %s1, 301
    %700 = vst.msk [vmem:[%s699] ss:$-176 sm:$0x3] %vm698, %v697
    %s701 = scalar_lea.vmem [#allocation0], 56
    %v702 = vld [vmem:[%s701] sm:$0x3]
    %s703 = scalar_lea.vmem [#allocation0], 254
    %v704 = vld [vmem:[%s703] sm:$0xc]
    %vm705 = vcmask 1043458
    %v706 = vsel %vm705, %v704, %v702
    %707 = vrot.lane.b32.xlu0 %v706, 74
    %v708 = vpop.permute.xlu0 %707
    %vm709 = vcmask 203776
    %s710 = scalar_lea.vmem %s1, 38
    %711 = vst.msk [vmem:[%s710] ss:$176 sm:$0x3] %vm709, %v708
    %s712 = scalar_lea.vmem %s1, 4294967110
    %713 = vst.msk [vmem:[%s712] ss:$176 sm:$0xc] %vm709, %v708
    %s714 = scalar_lea.vmem [#allocation0], 120
    %v715 = vld [vmem:[%s714] sm:$0x3]
    %716 = vrot.lane.b32.xlu0 %v715, 73
    %v717 = vpop.permute.xlu0 %716
    %vm718 = vcmask 203776
    %s719 = scalar_lea.vmem %s1, 79
    %720 = vst.msk [vmem:[%s719] ss:$176 sm:$0x3] %vm718, %v717
    %s721 = scalar_lea.vmem [#allocation0], 185
    %s722 = smov 3
    %v723 = vld [vmem:[%s721] ss:$-1 sm:%s722]
    %724 = vrot.lane.b32.xlu0 %v723, 72
    %v725 = vpop.permute.xlu0 %724
    %vm726 = vcmask 203776
    %s727 = scalar_lea.vmem %s1, 296
    %728 = vst.msk [vmem:[%s727] ss:$-176 sm:$0x3] %vm726, %v725
    %s729 = scalar_lea.vmem [#allocation0], 48
    %v730 = vld [vmem:[%s729] sm:$0x3]
    %s731 = scalar_lea.vmem [#allocation0], 246
    %v732 = vld [vmem:[%s731] sm:$0xc]
    %vm733 = vcmask 1043458
    %v734 = vsel %vm733, %v732, %v730
    %735 = vrot.lane.b32.xlu0 %v734, 71
    %v736 = vpop.permute.xlu0 %735
    %vm737 = vcmask 203776
    %s738 = scalar_lea.vmem %s1, 33
    %739 = vst.msk [vmem:[%s738] ss:$176 sm:$0x3] %vm737, %v736
    %s740 = scalar_lea.vmem %s1, 4294967105
    %741 = vst.msk [vmem:[%s740] ss:$176 sm:$0xc] %vm737, %v736
    %s742 = scalar_lea.vmem [#allocation0], 112
    %v743 = vld [vmem:[%s742] sm:$0x3]
    %744 = vrot.lane.b32.xlu0 %v743, 70
    %v745 = vpop.permute.xlu0 %744
    %vm746 = vcmask 203776
    %s747 = scalar_lea.vmem %s1, 74
    %748 = vst.msk [vmem:[%s747] ss:$176 sm:$0x3] %vm746, %v745
    %s749 = scalar_lea.vmem [#allocation0], 177
    %s750 = smov 3
    %v751 = vld [vmem:[%s749] ss:$-1 sm:%s750]
    %752 = vrot.lane.b32.xlu0 %v751, 69
    %v753 = vpop.permute.xlu0 %752
    %vm754 = vcmask 203776
    %s755 = scalar_lea.vmem %s1, 291
    %756 = vst.msk [vmem:[%s755] ss:$-176 sm:$0x3] %vm754, %v753
    %s757 = scalar_lea.vmem [#allocation0], 41
    %s758 = smov 3
    %v759 = vld [vmem:[%s757] ss:$-1 sm:%s758]
    %s760 = scalar_lea.vmem [#allocation0], 243
    %s761 = smov 12
    %v762 = vld [vmem:[%s760] ss:$-1 sm:%s761]
    %vm763 = vcmask 1043458
    %v764 = vsel %vm763, %v762, %v759
    %765 = vrot.lane.b32.xlu0 %v764, 68
    %v766 = vpop.permute.xlu0 %765
    %vm767 = vcmask 203776
    %s768 = scalar_lea.vmem %s1, 204
    %769 = vst.msk [vmem:[%s768] ss:$-176 sm:$0x3] %vm767, %v766
    %s770 = scalar_lea.vmem %s1, 684
    %771 = vst.msk [vmem:[%s770] ss:$-176 sm:$0xc] %vm767, %v766
    %s772 = scalar_lea.vmem [#allocation0], 104
    %v773 = vld [vmem:[%s772] sm:$0x3]
    %774 = vrot.lane.b32.xlu0 %v773, 67
    %v775 = vpop.permute.xlu0 %774
    %vm776 = vcmask 203776
    %s777 = scalar_lea.vmem %s1, 69
    %778 = vst.msk [vmem:[%s777] ss:$176 sm:$0x3] %vm776, %v775
    %s779 = scalar_lea.vmem [#allocation0], 168
    %v780 = vld [vmem:[%s779] sm:$0x3]
    %781 = vrot.lane.b32.xlu0 %v780, 66
    %v782 = vpop.permute.xlu0 %781
    %vm783 = vcmask 203776
    %s784 = scalar_lea.vmem %s1, 110
    %785 = vst.msk [vmem:[%s784] ss:$176 sm:$0x3] %vm783, %v782
    %s786 = scalar_lea.vmem [#allocation0], 33
    %s787 = smov 3
    %v788 = vld [vmem:[%s786] ss:$-1 sm:%s787]
    %s789 = scalar_lea.vmem [#allocation0], 235
    %s790 = smov 12
    %v791 = vld [vmem:[%s789] ss:$-1 sm:%s790]
    %vm792 = vcmask 1043458
    %v793 = vsel %vm792, %v791, %v788
    %794 = vrot.lane.b32.xlu0 %v793, 65
    %v795 = vpop.permute.xlu0 %794
    %vm796 = vcmask 203776
    %s797 = scalar_lea.vmem %s1, 199
    %798 = vst.msk [vmem:[%s797] ss:$-176 sm:$0x3] %vm796, %v795
    %s799 = scalar_lea.vmem %s1, 679
    %800 = vst.msk [vmem:[%s799] ss:$-176 sm:$0xc] %vm796, %v795
    %s801 = scalar_lea.vmem [#allocation0], 96
    %v802 = vld [vmem:[%s801] sm:$0x3]
    %803 = vrot.lane.b32.xlu0 %v802, 64
    %v804 = vpop.permute.xlu0 %803
    %vm805 = vcmask 203776
    %s806 = scalar_lea.vmem %s1, 64
    %807 = vst.msk [vmem:[%s806] ss:$176 sm:$0x3] %vm805, %v804
    %s808 = scalar_lea.vmem [#allocation0], 160
    %v809 = vld [vmem:[%s808] sm:$0x3]
    %810 = vrot.lane.b32.xlu0 %v809, 63
    %v811 = vpop.permute.xlu0 %810
    %vm812 = vcmask 203776
    %s813 = scalar_lea.vmem %s1, 105
    %814 = vst.msk [vmem:[%s813] ss:$176 sm:$0x3] %vm812, %v811
    %s815 = scalar_lea.vmem [#allocation0], 25
    %s816 = smov 3
    %v817 = vld [vmem:[%s815] ss:$-1 sm:%s816]
    %s818 = scalar_lea.vmem [#allocation0], 227
    %s819 = smov 12
    %v820 = vld [vmem:[%s818] ss:$-1 sm:%s819]
    %vm821 = vcmask 1043458
    %v822 = vsel %vm821, %v820, %v817
    %823 = vrot.lane.b32.xlu0 %v822, 62
    %v824 = vpop.permute.xlu0 %823
    %vm825 = vcmask 203776
    %s826 = scalar_lea.vmem %s1, 194
    %827 = vst.msk [vmem:[%s826] ss:$-176 sm:$0x3] %vm825, %v824
    %s828 = scalar_lea.vmem %s1, 674
    %829 = vst.msk [vmem:[%s828] ss:$-176 sm:$0xc] %vm825, %v824
    %s830 = scalar_lea.vmem [#allocation0], 89
    %s831 = smov 3
    %v832 = vld [vmem:[%s830] ss:$-1 sm:%s831]
    %833 = vrot.lane.b32.xlu0 %v832, 61
    %v834 = vpop.permute.xlu0 %833
    %vm835 = vcmask 203776
    %s836 = scalar_lea.vmem %s1, 235
    %837 = vst.msk [vmem:[%s836] ss:$-176 sm:$0x3] %vm835, %v834
    %s838 = scalar_lea.vmem [#allocation0], 152
    %v839 = vld [vmem:[%s838] sm:$0x3]
    %840 = vrot.lane.b32.xlu0 %v839, 60
    %v841 = vpop.permute.xlu0 %840
    %vm842 = vcmask 203776
    %s843 = scalar_lea.vmem %s1, 100
    %844 = vst.msk [vmem:[%s843] ss:$176 sm:$0x3] %vm842, %v841
    %s845 = scalar_lea.vmem [#allocation0], 16
    %v846 = vld [vmem:[%s845] sm:$0x3]
    %s847 = scalar_lea.vmem [#allocation0], 214
    %v848 = vld [vmem:[%s847] sm:$0xc]
    %vm849 = vcmask 1043458
    %v850 = vsel %vm849, %v848, %v846
    %851 = vrot.lane.b32.xlu0 %v850, 59
    %v852 = vpop.permute.xlu0 %851
    %vm853 = vcmask 203776
    %s854 = scalar_lea.vmem %s1, 13
    %855 = vst.msk [vmem:[%s854] ss:$176 sm:$0x3] %vm853, %v852
    %s856 = scalar_lea.vmem %s1, 4294967085
    %857 = vst.msk [vmem:[%s856] ss:$176 sm:$0xc] %vm853, %v852
    %s858 = scalar_lea.vmem [#allocation0], 81
    %s859 = smov 3
    %v860 = vld [vmem:[%s858] ss:$-1 sm:%s859]
    %861 = vrot.lane.b32.xlu0 %v860, 58
    %v862 = vpop.permute.xlu0 %861
    %vm863 = vcmask 203776
    %s864 = scalar_lea.vmem %s1, 230
    %865 = vst.msk [vmem:[%s864] ss:$-176 sm:$0x3] %vm863, %v862
    %s866 = scalar_lea.vmem [#allocation0], 145
    %s867 = smov 3
    %v868 = vld [vmem:[%s866] ss:$-1 sm:%s867]
    %869 = vrot.lane.b32.xlu0 %v868, 57
    %v870 = vpop.permute.xlu0 %869
    %vm871 = vcmask 203776
    %s872 = scalar_lea.vmem %s1, 271
    %873 = vst.msk [vmem:[%s872] ss:$-176 sm:$0x3] %vm871, %v870
    %s874 = scalar_lea.vmem [#allocation0], 8
    %v875 = vld [vmem:[%s874] sm:$0x3]
    %s876 = scalar_lea.vmem [#allocation0], 206
    %v877 = vld [vmem:[%s876] sm:$0xc]
    %vm878 = vcmask 1043458
    %v879 = vsel %vm878, %v877, %v875
    %880 = vrot.lane.b32.xlu0 %v879, 56
    %v881 = vpop.permute.xlu0 %880
    %vm882 = vcmask 203776
    %s883 = scalar_lea.vmem %s1, 8
    %884 = vst.msk [vmem:[%s883] ss:$176 sm:$0x3] %vm882, %v881
    %s885 = scalar_lea.vmem %s1, 4294967080
    %886 = vst.msk [vmem:[%s885] ss:$176 sm:$0xc] %vm882, %v881
    %s887 = scalar_lea.vmem [#allocation0], 73
    %s888 = smov 3
    %v889 = vld [vmem:[%s887] ss:$-1 sm:%s888]
    %890 = vrot.lane.b32.xlu0 %v889, 55
    %v891 = vpop.permute.xlu0 %890
    %vm892 = vcmask 203776
    %s893 = scalar_lea.vmem %s1, 225
    %894 = vst.msk [vmem:[%s893] ss:$-176 sm:$0x3] %vm892, %v891
    %s895 = scalar_lea.vmem [#allocation0], 137
    %s896 = smov 3
    %v897 = vld [vmem:[%s895] ss:$-1 sm:%s896]
    %898 = vrot.lane.b32.xlu0 %v897, 54
    %v899 = vpop.permute.xlu0 %898
    %vm900 = vcmask 203776
    %s901 = scalar_lea.vmem %s1, 266
    %902 = vst.msk [vmem:[%s901] ss:$-176 sm:$0x3] %vm900, %v899
    %v903 = vld [vmem:[#allocation0] sm:$0x3]
    %s904 = scalar_lea.vmem [#allocation0], 198
    %v905 = vld [vmem:[%s904] sm:$0xc]
    %vm906 = vcmask 1043458
    %v907 = vsel %vm906, %v905, %v903
    %908 = vrot.lane.b32.xlu0 %v907, 53
    %v909 = vpop.permute.xlu0 %908
    %vm910 = vcmask 203776
    %s911 = scalar_lea.vmem %s1, 3
    %912 = vst.msk [vmem:[%s911] ss:$176 sm:$0x3] %vm910, %v909
    %s913 = scalar_lea.vmem %s1, 4294967075
    %914 = vst.msk [vmem:[%s913] ss:$176 sm:$0xc] %vm910, %v909
    %s915 = scalar_lea.vmem [#allocation0], 64
    %v916 = vld [vmem:[%s915] sm:$0x3]
    %s917 = scalar_lea.vmem [#allocation0], 262
    %v918 = vld [vmem:[%s917] sm:$0xc]
    %vm919 = vcmask 1043458
    %v920 = vsel %vm919, %v918, %v916
    %921 = vrot.lane.b32.xlu0 %v920, 52
    %v922 = vpop.permute.xlu0 %921
    %vm923 = vcmask 203776
    %s924 = scalar_lea.vmem %s1, 44
    %925 = vst.msk [vmem:[%s924] ss:$176 sm:$0x3] %vm923, %v922
    %s926 = scalar_lea.vmem %s1, 4294967116
    %927 = vst.msk [vmem:[%s926] ss:$176 sm:$0xc] %vm923, %v922
    %s928 = scalar_lea.vmem [#allocation0], 129
    %s929 = smov 3
    %v930 = vld [vmem:[%s928] ss:$-1 sm:%s929]
    %931 = vrot.lane.b32.xlu0 %v930, 51
    %v932 = vpop.permute.xlu0 %931
    %vm933 = vcmask 203776
    %s934 = scalar_lea.vmem %s1, 261
    %935 = vst.msk [vmem:[%s934] ss:$-176 sm:$0x3] %vm933, %v932
    %s936 = scalar_lea.vmem [#allocation0], 193
    %s937 = smov 3
    %v938 = vld [vmem:[%s936] ss:$-1 sm:%s937]
    %939 = vrot.lane.b32.xlu0 %v938, 50
    %v940 = vpop.permute.xlu0 %939
    %vm941 = vcmask 203776
    %s942 = scalar_lea.vmem %s1, 302
    %943 = vst.msk [vmem:[%s942] ss:$-176 sm:$0x3] %vm941, %v940
    %s944 = scalar_lea.vmem [#allocation0], 56
    %v945 = vld [vmem:[%s944] sm:$0x3]
    %s946 = scalar_lea.vmem [#allocation0], 254
    %v947 = vld [vmem:[%s946] sm:$0xc]
    %vm948 = vcmask 1043458
    %v949 = vsel %vm948, %v947, %v945
    %950 = vrot.lane.b32.xlu0 %v949, 49
    %v951 = vpop.permute.xlu0 %950
    %vm952 = vcmask 203776
    %s953 = scalar_lea.vmem %s1, 39
    %954 = vst.msk [vmem:[%s953] ss:$176 sm:$0x3] %vm952, %v951
    %s955 = scalar_lea.vmem %s1, 4294967111
    %956 = vst.msk [vmem:[%s955] ss:$176 sm:$0xc] %vm952, %v951
    %s957 = scalar_lea.vmem [#allocation0], 121
    %s958 = smov 3
    %v959 = vld [vmem:[%s957] ss:$-1 sm:%s958]
    %960 = vrot.lane.b32.xlu0 %v959, 48
    %v961 = vpop.permute.xlu0 %960
    %vm962 = vcmask 203776
    %s963 = scalar_lea.vmem %s1, 256
    %964 = vst.msk [vmem:[%s963] ss:$-176 sm:$0x3] %vm962, %v961
    %s965 = scalar_lea.vmem [#allocation0], 185
    %s966 = smov 3
    %v967 = vld [vmem:[%s965] ss:$-1 sm:%s966]
    %968 = vrot.lane.b32.xlu0 %v967, 47
    %v969 = vpop.permute.xlu0 %968
    %vm970 = vcmask 203776
    %s971 = scalar_lea.vmem %s1, 297
    %972 = vst.msk [vmem:[%s971] ss:$-176 sm:$0x3] %vm970, %v969
    %s973 = scalar_lea.vmem [#allocation0], 48
    %v974 = vld [vmem:[%s973] sm:$0x3]
    %s975 = scalar_lea.vmem [#allocation0], 246
    %v976 = vld [vmem:[%s975] sm:$0xc]
    %vm977 = vcmask 1043458
    %v978 = vsel %vm977, %v976, %v974
    %979 = vrot.lane.b32.xlu0 %v978, 46
    %v980 = vpop.permute.xlu0 %979
    %vm981 = vcmask 203776
    %s982 = scalar_lea.vmem %s1, 34
    %983 = vst.msk [vmem:[%s982] ss:$176 sm:$0x3] %vm981, %v980
    %s984 = scalar_lea.vmem %s1, 4294967106
    %985 = vst.msk [vmem:[%s984] ss:$176 sm:$0xc] %vm981, %v980
    %s986 = scalar_lea.vmem [#allocation0], 112
    %v987 = vld [vmem:[%s986] sm:$0x3]
    %988 = vrot.lane.b32.xlu0 %v987, 45
    %v989 = vpop.permute.xlu0 %988
    %vm990 = vcmask 203776
    %s991 = scalar_lea.vmem %s1, 75
    %992 = vst.msk [vmem:[%s991] ss:$176 sm:$0x3] %vm990, %v989
    %s993 = scalar_lea.vmem [#allocation0], 177
    %s994 = smov 3
    %v995 = vld [vmem:[%s993] ss:$-1 sm:%s994]
    %996 = vrot.lane.b32.xlu0 %v995, 44
    %v997 = vpop.permute.xlu0 %996
    %vm998 = vcmask 203776
    %s999 = scalar_lea.vmem %s1, 292
    %1000 = vst.msk [vmem:[%s999] ss:$-176 sm:$0x3] %vm998, %v997
    %s1001 = scalar_lea.vmem [#allocation0], 41
    %s1002 = smov 3
    %v1003 = vld [vmem:[%s1001] ss:$-1 sm:%s1002]
    %s1004 = scalar_lea.vmem [#allocation0], 243
    %s1005 = smov 12
    %v1006 = vld [vmem:[%s1004] ss:$-1 sm:%s1005]
    %vm1007 = vcmask 1043458
    %v1008 = vsel %vm1007, %v1006, %v1003
    %1009 = vrot.lane.b32.xlu0 %v1008, 43
    %v1010 = vpop.permute.xlu0 %1009
    %vm1011 = vcmask 203776
    %s1012 = scalar_lea.vmem %s1, 205
    %1013 = vst.msk [vmem:[%s1012] ss:$-176 sm:$0x3] %vm1011, %v1010
    %s1014 = scalar_lea.vmem %s1, 685
    %1015 = vst.msk [vmem:[%s1014] ss:$-176 sm:$0xc] %vm1011, %v1010
    %s1016 = scalar_lea.vmem [#allocation0], 104
    %v1017 = vld [vmem:[%s1016] sm:$0x3]
    %1018 = vrot.lane.b32.xlu0 %v1017, 42
    %v1019 = vpop.permute.xlu0 %1018
    %vm1020 = vcmask 203776
    %s1021 = scalar_lea.vmem %s1, 70
    %1022 = vst.msk [vmem:[%s1021] ss:$176 sm:$0x3] %vm1020, %v1019
    %s1023 = scalar_lea.vmem [#allocation0], 168
    %v1024 = vld [vmem:[%s1023] sm:$0x3]
    %1025 = vrot.lane.b32.xlu0 %v1024, 41
    %v1026 = vpop.permute.xlu0 %1025
    %vm1027 = vcmask 203776
    %s1028 = scalar_lea.vmem %s1, 111
    %1029 = vst.msk [vmem:[%s1028] ss:$176 sm:$0x3] %vm1027, %v1026
    %s1030 = scalar_lea.vmem [#allocation0], 33
    %s1031 = smov 3
    %v1032 = vld [vmem:[%s1030] ss:$-1 sm:%s1031]
    %s1033 = scalar_lea.vmem [#allocation0], 235
    %s1034 = smov 12
    %v1035 = vld [vmem:[%s1033] ss:$-1 sm:%s1034]
    %vm1036 = vcmask 1043458
    %v1037 = vsel %vm1036, %v1035, %v1032
    %1038 = vrot.lane.b32.xlu0 %v1037, 40
    %v1039 = vpop.permute.xlu0 %1038
    %vm1040 = vcmask 203776
    %s1041 = scalar_lea.vmem %s1, 200
    %1042 = vst.msk [vmem:[%s1041] ss:$-176 sm:$0x3] %vm1040, %v1039
    %s1043 = scalar_lea.vmem %s1, 680
    %1044 = vst.msk [vmem:[%s1043] ss:$-176 sm:$0xc] %vm1040, %v1039
    %s1045 = scalar_lea.vmem [#allocation0], 96
    %v1046 = vld [vmem:[%s1045] sm:$0x3]
    %1047 = vrot.lane.b32.xlu0 %v1046, 39
    %v1048 = vpop.permute.xlu0 %1047
    %vm1049 = vcmask 203776
    %s1050 = scalar_lea.vmem %s1, 65
    %1051 = vst.msk [vmem:[%s1050] ss:$176 sm:$0x3] %vm1049, %v1048
    %s1052 = scalar_lea.vmem [#allocation0], 160
    %v1053 = vld [vmem:[%s1052] sm:$0x3]
    %1054 = vrot.lane.b32.xlu0 %v1053, 38
    %v1055 = vpop.permute.xlu0 %1054
    %vm1056 = vcmask 203776
    %s1057 = scalar_lea.vmem %s1, 106
    %1058 = vst.msk [vmem:[%s1057] ss:$176 sm:$0x3] %vm1056, %v1055
    %s1059 = scalar_lea.vmem [#allocation0], 25
    %s1060 = smov 3
    %v1061 = vld [vmem:[%s1059] ss:$-1 sm:%s1060]
    %s1062 = scalar_lea.vmem [#allocation0], 227
    %s1063 = smov 12
    %v1064 = vld [vmem:[%s1062] ss:$-1 sm:%s1063]
    %vm1065 = vcmask 1043458
    %v1066 = vsel %vm1065, %v1064, %v1061
    %1067 = vrot.lane.b32.xlu0 %v1066, 37
    %v1068 = vpop.permute.xlu0 %1067
    %vm1069 = vcmask 203776
    %s1070 = scalar_lea.vmem %s1, 195
    %1071 = vst.msk [vmem:[%s1070] ss:$-176 sm:$0x3] %vm1069, %v1068
    %s1072 = scalar_lea.vmem %s1, 675
    %1073 = vst.msk [vmem:[%s1072] ss:$-176 sm:$0xc] %vm1069, %v1068
    %s1074 = scalar_lea.vmem [#allocation0], 89
    %s1075 = smov 3
    %v1076 = vld [vmem:[%s1074] ss:$-1 sm:%s1075]
    %1077 = vrot.lane.b32.xlu0 %v1076, 36
    %v1078 = vpop.permute.xlu0 %1077
    %vm1079 = vcmask 203776
    %s1080 = scalar_lea.vmem %s1, 236
    %1081 = vst.msk [vmem:[%s1080] ss:$-176 sm:$0x3] %vm1079, %v1078
    %s1082 = scalar_lea.vmem [#allocation0], 152
    %v1083 = vld [vmem:[%s1082] sm:$0x3]
    %1084 = vrot.lane.b32.xlu0 %v1083, 35
    %v1085 = vpop.permute.xlu0 %1084
    %vm1086 = vcmask 203776
    %s1087 = scalar_lea.vmem %s1, 101
    %1088 = vst.msk [vmem:[%s1087] ss:$176 sm:$0x3] %vm1086, %v1085
    %s1089 = scalar_lea.vmem [#allocation0], 16
    %v1090 = vld [vmem:[%s1089] sm:$0x3]
    %s1091 = scalar_lea.vmem [#allocation0], 214
    %v1092 = vld [vmem:[%s1091] sm:$0xc]
    %vm1093 = vcmask 1043458
    %v1094 = vsel %vm1093, %v1092, %v1090
    %1095 = vrot.lane.b32.xlu0 %v1094, 34
    %v1096 = vpop.permute.xlu0 %1095
    %vm1097 = vcmask 203776
    %s1098 = scalar_lea.vmem %s1, 14
    %1099 = vst.msk [vmem:[%s1098] ss:$176 sm:$0x3] %vm1097, %v1096
    %s1100 = scalar_lea.vmem %s1, 4294967086
    %1101 = vst.msk [vmem:[%s1100] ss:$176 sm:$0xc] %vm1097, %v1096
    %s1102 = scalar_lea.vmem [#allocation0], 81
    %s1103 = smov 3
    %v1104 = vld [vmem:[%s1102] ss:$-1 sm:%s1103]
    %1105 = vrot.lane.b32.xlu0 %v1104, 33
    %v1106 = vpop.permute.xlu0 %1105
    %vm1107 = vcmask 203776
    %s1108 = scalar_lea.vmem %s1, 231
    %1109 = vst.msk [vmem:[%s1108] ss:$-176 sm:$0x3] %vm1107, %v1106
    %s1110 = scalar_lea.vmem [#allocation0], 144
    %v1111 = vld [vmem:[%s1110] sm:$0x3]
    %1112 = vrot.lane.b32.xlu0 %v1111, 32
    %v1113 = vpop.permute.xlu0 %1112
    %vm1114 = vcmask 203776
    %s1115 = scalar_lea.vmem %s1, 96
    %1116 = vst.msk [vmem:[%s1115] ss:$176 sm:$0x3] %vm1114, %v1113
    %s1117 = scalar_lea.vmem [#allocation0], 8
    %v1118 = vld [vmem:[%s1117] sm:$0x3]
    %s1119 = scalar_lea.vmem [#allocation0], 206
    %v1120 = vld [vmem:[%s1119] sm:$0xc]
    %vm1121 = vcmask 1043458
    %v1122 = vsel %vm1121, %v1120, %v1118
    %1123 = vrot.lane.b32.xlu0 %v1122, 31
    %v1124 = vpop.permute.xlu0 %1123
    %vm1125 = vcmask 203776
    %s1126 = scalar_lea.vmem %s1, 9
    %1127 = vst.msk [vmem:[%s1126] ss:$176 sm:$0x3] %vm1125, %v1124
    %s1128 = scalar_lea.vmem %s1, 4294967081
    %1129 = vst.msk [vmem:[%s1128] ss:$176 sm:$0xc] %vm1125, %v1124
    %s1130 = scalar_lea.vmem [#allocation0], 73
    %s1131 = smov 3
    %v1132 = vld [vmem:[%s1130] ss:$-1 sm:%s1131]
    %1133 = vrot.lane.b32.xlu0 %v1132, 30
    %v1134 = vpop.permute.xlu0 %1133
    %vm1135 = vcmask 203776
    %s1136 = scalar_lea.vmem %s1, 226
    %1137 = vst.msk [vmem:[%s1136] ss:$-176 sm:$0x3] %vm1135, %v1134
    %s1138 = scalar_lea.vmem [#allocation0], 137
    %s1139 = smov 3
    %v1140 = vld [vmem:[%s1138] ss:$-1 sm:%s1139]
    %1141 = vrot.lane.b32.xlu0 %v1140, 29
    %v1142 = vpop.permute.xlu0 %1141
    %vm1143 = vcmask 203776
    %s1144 = scalar_lea.vmem %s1, 267
    %1145 = vst.msk [vmem:[%s1144] ss:$-176 sm:$0x3] %vm1143, %v1142
    %v1146 = vld [vmem:[#allocation0] sm:$0x3]
    %s1147 = scalar_lea.vmem [#allocation0], 198
    %v1148 = vld [vmem:[%s1147] sm:$0xc]
    %vm1149 = vcmask 1043458
    %v1150 = vsel %vm1149, %v1148, %v1146
    %1151 = vrot.lane.b32.xlu0 %v1150, 28
    %v1152 = vpop.permute.xlu0 %1151
    %vm1153 = vcmask 203776
    %s1154 = scalar_lea.vmem %s1, 4
    %1155 = vst.msk [vmem:[%s1154] ss:$176 sm:$0x3] %vm1153, %v1152
    %s1156 = scalar_lea.vmem %s1, 4294967076
    %1157 = vst.msk [vmem:[%s1156] ss:$176 sm:$0xc] %vm1153, %v1152
    %s1158 = scalar_lea.vmem [#allocation0], 64
    %v1159 = vld [vmem:[%s1158] sm:$0x3]
    %s1160 = scalar_lea.vmem [#allocation0], 262
    %v1161 = vld [vmem:[%s1160] sm:$0xc]
    %vm1162 = vcmask 1043458
    %v1163 = vsel %vm1162, %v1161, %v1159
    %1164 = vrot.lane.b32.xlu0 %v1163, 27
    %v1165 = vpop.permute.xlu0 %1164
    %vm1166 = vcmask 203776
    %s1167 = scalar_lea.vmem %s1, 45
    %1168 = vst.msk [vmem:[%s1167] ss:$176 sm:$0x3] %vm1166, %v1165
    %s1169 = scalar_lea.vmem %s1, 4294967117
    %1170 = vst.msk [vmem:[%s1169] ss:$176 sm:$0xc] %vm1166, %v1165
    %s1171 = scalar_lea.vmem [#allocation0], 129
    %s1172 = smov 3
    %v1173 = vld [vmem:[%s1171] ss:$-1 sm:%s1172]
    %1174 = vrot.lane.b32.xlu0 %v1173, 26
    %v1175 = vpop.permute.xlu0 %1174
    %vm1176 = vcmask 203776
    %s1177 = scalar_lea.vmem %s1, 262
    %1178 = vst.msk [vmem:[%s1177] ss:$-176 sm:$0x3] %vm1176, %v1175
    %s1179 = scalar_lea.vmem [#allocation0], 193
    %s1180 = smov 3
    %v1181 = vld [vmem:[%s1179] ss:$-1 sm:%s1180]
    %1182 = vrot.lane.b32.xlu0 %v1181, 25
    %v1183 = vpop.permute.xlu0 %1182
    %vm1184 = vcmask 203776
    %s1185 = scalar_lea.vmem %s1, 303
    %1186 = vst.msk [vmem:[%s1185] ss:$-176 sm:$0x3] %vm1184, %v1183
    %s1187 = scalar_lea.vmem [#allocation0], 56
    %v1188 = vld [vmem:[%s1187] sm:$0x3]
    %s1189 = scalar_lea.vmem [#allocation0], 254
    %v1190 = vld [vmem:[%s1189] sm:$0xc]
    %vm1191 = vcmask 1043458
    %v1192 = vsel %vm1191, %v1190, %v1188
    %s1193 = scalar_lea.vmem [#allocation0], 64
    %v1194 = vld [vmem:[%s1193] sm:$0x3]
    %s1195 = scalar_lea.vmem [#allocation0], 262
    %v1196 = vld [vmem:[%s1195] sm:$0xc]
    %vm1197 = vcmask 1043458
    %v1198 = vsel %vm1197, %v1196, %v1194
    %vm1199 = vcmask 850944
    %v1200 = vsel %vm1199, %v1198, %v1192
    %1201 = vrot.lane.b32.xlu0 %v1200, 24
    %v1202 = vpop.permute.xlu0 %1201
    %vm1203 = vcmask 195584
    %s1204 = scalar_lea.vmem %s1, 40
    %1205 = vst.msk [vmem:[%s1204] ss:$176 sm:$0x3] %vm1203, %v1202
    %s1206 = scalar_lea.vmem %s1, 4294967112
    %1207 = vst.msk [vmem:[%s1206] ss:$176 sm:$0xc] %vm1203, %v1202
    %vm1208 = vcmask 203968
    %s1209 = scalar_lea.vmem %s1, 40
    %1210 = vst.msk [vmem:[%s1209] ss:$176 sm:$0x3] %vm1208, %v1202
    %s1211 = scalar_lea.vmem %s1, 4294967112
    %1212 = vst.msk [vmem:[%s1211] ss:$176 sm:$0xc] %vm1208, %v1202
    %s1213 = scalar_lea.vmem [#allocation0], 121
    %s1214 = smov 3
    %v1215 = vld [vmem:[%s1213] ss:$-1 sm:%s1214]
    %s1216 = scalar_lea.vmem [#allocation0], 129
    %s1217 = smov 3
    %v1218 = vld [vmem:[%s1216] ss:$-1 sm:%s1217]
    %vm1219 = vcmask 859136
    %v1220 = vsel %vm1219, %v1218, %v1215
    %1221 = vrot.lane.b32.xlu0 %v1220, 23
    %v1222 = vpop.permute.xlu0 %1221
    %vm1223 = vcmask 187392
    %s1224 = scalar_lea.vmem %s1, 257
    %1225 = vst.msk [vmem:[%s1224] ss:$-176 sm:$0x3] %vm1223, %v1222
    %vm1226 = vcmask 203960
    %s1227 = scalar_lea.vmem %s1, 257
    %1228 = vst.msk [vmem:[%s1227] ss:$-176 sm:$0x3] %vm1226, %v1222
    %s1229 = scalar_lea.vmem [#allocation0], 185
    %s1230 = smov 3
    %v1231 = vld [vmem:[%s1229] ss:$-1 sm:%s1230]
    %s1232 = scalar_lea.vmem [#allocation0], 193
    %s1233 = smov 3
    %v1234 = vld [vmem:[%s1232] ss:$-1 sm:%s1233]
    %vm1235 = vcmask 867328
    %v1236 = vsel %vm1235, %v1234, %v1231
    %1237 = vrot.lane.b32.xlu0 %v1236, 22
    %v1238 = vpop.permute.xlu0 %1237
    %vm1239 = vcmask 179200
    %s1240 = scalar_lea.vmem %s1, 298
    %1241 = vst.msk [vmem:[%s1240] ss:$-176 sm:$0x3] %vm1239, %v1238
    %vm1242 = vcmask 203952
    %s1243 = scalar_lea.vmem %s1, 298
    %1244 = vst.msk [vmem:[%s1243] ss:$-176 sm:$0x3] %vm1242, %v1238
    %s1245 = scalar_lea.vmem [#allocation0], 48
    %v1246 = vld [vmem:[%s1245] sm:$0x3]
    %s1247 = scalar_lea.vmem [#allocation0], 246
    %v1248 = vld [vmem:[%s1247] sm:$0xc]
    %vm1249 = vcmask 1043458
    %v1250 = vsel %vm1249, %v1248, %v1246
    %s1251 = scalar_lea.vmem [#allocation0], 56
    %v1252 = vld [vmem:[%s1251] sm:$0x3]
    %s1253 = scalar_lea.vmem [#allocation0], 254
    %v1254 = vld [vmem:[%s1253] sm:$0xc]
    %vm1255 = vcmask 1043458
    %v1256 = vsel %vm1255, %v1254, %v1252
    %vm1257 = vcmask 875520
    %v1258 = vsel %vm1257, %v1256, %v1250
    %1259 = vrot.lane.b32.xlu0 %v1258, 21
    %v1260 = vpop.permute.xlu0 %1259
    %vm1261 = vcmask 171008
    %s1262 = scalar_lea.vmem %s1, 35
    %1263 = vst.msk [vmem:[%s1262] ss:$176 sm:$0x3] %vm1261, %v1260
    %s1264 = scalar_lea.vmem %s1, 4294967107
    %1265 = vst.msk [vmem:[%s1264] ss:$176 sm:$0xc] %vm1261, %v1260
    %vm1266 = vcmask 203944
    %s1267 = scalar_lea.vmem %s1, 35
    %1268 = vst.msk [vmem:[%s1267] ss:$176 sm:$0x3] %vm1266, %v1260
    %s1269 = scalar_lea.vmem %s1, 4294967107
    %1270 = vst.msk [vmem:[%s1269] ss:$176 sm:$0xc] %vm1266, %v1260
    %s1271 = scalar_lea.vmem [#allocation0], 112
    %v1272 = vld [vmem:[%s1271] sm:$0x3]
    %s1273 = scalar_lea.vmem [#allocation0], 120
    %v1274 = vld [vmem:[%s1273] sm:$0x3]
    %vm1275 = vcmask 883712
    %v1276 = vsel %vm1275, %v1274, %v1272
    %1277 = vrot.lane.b32.xlu0 %v1276, 20
    %v1278 = vpop.permute.xlu0 %1277
    %vm1279 = vcmask 162816
    %s1280 = scalar_lea.vmem %s1, 76
    %1281 = vst.msk [vmem:[%s1280] ss:$176 sm:$0x3] %vm1279, %v1278
    %vm1282 = vcmask 203936
    %s1283 = scalar_lea.vmem %s1, 76
    %1284 = vst.msk [vmem:[%s1283] ss:$176 sm:$0x3] %vm1282, %v1278
    %s1285 = scalar_lea.vmem [#allocation0], 177
    %s1286 = smov 3
    %v1287 = vld [vmem:[%s1285] ss:$-1 sm:%s1286]
    %s1288 = scalar_lea.vmem [#allocation0], 185
    %s1289 = smov 3
    %v1290 = vld [vmem:[%s1288] ss:$-1 sm:%s1289]
    %vm1291 = vcmask 891904
    %v1292 = vsel %vm1291, %v1290, %v1287
    %1293 = vrot.lane.b32.xlu0 %v1292, 19
    %v1294 = vpop.permute.xlu0 %1293
    %vm1295 = vcmask 154624
    %s1296 = scalar_lea.vmem %s1, 293
    %1297 = vst.msk [vmem:[%s1296] ss:$-176 sm:$0x3] %vm1295, %v1294
    %vm1298 = vcmask 203928
    %s1299 = scalar_lea.vmem %s1, 293
    %1300 = vst.msk [vmem:[%s1299] ss:$-176 sm:$0x3] %vm1298, %v1294
    %s1301 = scalar_lea.vmem [#allocation0], 41
    %s1302 = smov 3
    %v1303 = vld [vmem:[%s1301] ss:$-1 sm:%s1302]
    %s1304 = scalar_lea.vmem [#allocation0], 243
    %s1305 = smov 12
    %v1306 = vld [vmem:[%s1304] ss:$-1 sm:%s1305]
    %vm1307 = vcmask 1043458
    %v1308 = vsel %vm1307, %v1306, %v1303
    %s1309 = scalar_lea.vmem [#allocation0], 49
    %s1310 = smov 3
    %v1311 = vld [vmem:[%s1309] ss:$-1 sm:%s1310]
    %s1312 = scalar_lea.vmem [#allocation0], 251
    %s1313 = smov 12
    %v1314 = vld [vmem:[%s1312] ss:$-1 sm:%s1313]
    %vm1315 = vcmask 1043458
    %v1316 = vsel %vm1315, %v1314, %v1311
    %vm1317 = vcmask 900096
    %v1318 = vsel %vm1317, %v1316, %v1308
    %1319 = vrot.lane.b32.xlu0 %v1318, 18
    %v1320 = vpop.permute.xlu0 %1319
    %vm1321 = vcmask 146432
    %s1322 = scalar_lea.vmem %s1, 206
    %1323 = vst.msk [vmem:[%s1322] ss:$-176 sm:$0x3] %vm1321, %v1320
    %s1324 = scalar_lea.vmem %s1, 686
    %1325 = vst.msk [vmem:[%s1324] ss:$-176 sm:$0xc] %vm1321, %v1320
    %vm1326 = vcmask 203920
    %s1327 = scalar_lea.vmem %s1, 206
    %1328 = vst.msk [vmem:[%s1327] ss:$-176 sm:$0x3] %vm1326, %v1320
    %s1329 = scalar_lea.vmem %s1, 686
    %1330 = vst.msk [vmem:[%s1329] ss:$-176 sm:$0xc] %vm1326, %v1320
    %s1331 = scalar_lea.vmem [#allocation0], 104
    %v1332 = vld [vmem:[%s1331] sm:$0x3]
    %s1333 = scalar_lea.vmem [#allocation0], 112
    %v1334 = vld [vmem:[%s1333] sm:$0x3]
    %vm1335 = vcmask 908288
    %v1336 = vsel %vm1335, %v1334, %v1332
    %1337 = vrot.lane.b32.xlu0 %v1336, 17
    %v1338 = vpop.permute.xlu0 %1337
    %vm1339 = vcmask 138240
    %s1340 = scalar_lea.vmem %s1, 71
    %1341 = vst.msk [vmem:[%s1340] ss:$176 sm:$0x3] %vm1339, %v1338
    %vm1342 = vcmask 203912
    %s1343 = scalar_lea.vmem %s1, 71
    %1344 = vst.msk [vmem:[%s1343] ss:$176 sm:$0x3] %vm1342, %v1338
    %s1345 = scalar_lea.vmem [#allocation0], 169
    %s1346 = smov 3
    %v1347 = vld [vmem:[%s1345] ss:$-1 sm:%s1346]
    %s1348 = scalar_lea.vmem [#allocation0], 177
    %s1349 = smov 3
    %v1350 = vld [vmem:[%s1348] ss:$-1 sm:%s1349]
    %vm1351 = vcmask 916480
    %v1352 = vsel %vm1351, %v1350, %v1347
    %1353 = vrot.lane.b32.xlu0 %v1352, 16
    %v1354 = vpop.permute.xlu0 %1353
    %vm1355 = vcmask 130048
    %s1356 = scalar_lea.vmem %s1, 288
    %1357 = vst.msk [vmem:[%s1356] ss:$-176 sm:$0x3] %vm1355, %v1354
    %vm1358 = vcmask 203904
    %s1359 = scalar_lea.vmem %s1, 288
    %1360 = vst.msk [vmem:[%s1359] ss:$-176 sm:$0x3] %vm1358, %v1354
    %s1361 = scalar_lea.vmem [#allocation0], 33
    %s1362 = smov 3
    %v1363 = vld [vmem:[%s1361] ss:$-1 sm:%s1362]
    %s1364 = scalar_lea.vmem [#allocation0], 235
    %s1365 = smov 12
    %v1366 = vld [vmem:[%s1364] ss:$-1 sm:%s1365]
    %vm1367 = vcmask 1043458
    %v1368 = vsel %vm1367, %v1366, %v1363
    %s1369 = scalar_lea.vmem [#allocation0], 41
    %s1370 = smov 3
    %v1371 = vld [vmem:[%s1369] ss:$-1 sm:%s1370]
    %s1372 = scalar_lea.vmem [#allocation0], 243
    %s1373 = smov 12
    %v1374 = vld [vmem:[%s1372] ss:$-1 sm:%s1373]
    %vm1375 = vcmask 1043458
    %v1376 = vsel %vm1375, %v1374, %v1371
    %vm1377 = vcmask 924672
    %v1378 = vsel %vm1377, %v1376, %v1368
    %1379 = vrot.lane.b32.xlu0 %v1378, 15
    %v1380 = vpop.permute.xlu0 %1379
    %vm1381 = vcmask 121856
    %s1382 = scalar_lea.vmem %s1, 201
    %1383 = vst.msk [vmem:[%s1382] ss:$-176 sm:$0x3] %vm1381, %v1380
    %s1384 = scalar_lea.vmem %s1, 681
    %1385 = vst.msk [vmem:[%s1384] ss:$-176 sm:$0xc] %vm1381, %v1380
    %vm1386 = vcmask 203896
    %s1387 = scalar_lea.vmem %s1, 201
    %1388 = vst.msk [vmem:[%s1387] ss:$-176 sm:$0x3] %vm1386, %v1380
    %s1389 = scalar_lea.vmem %s1, 681
    %1390 = vst.msk [vmem:[%s1389] ss:$-176 sm:$0xc] %vm1386, %v1380
    %s1391 = scalar_lea.vmem [#allocation0], 96
    %v1392 = vld [vmem:[%s1391] sm:$0x3]
    %s1393 = scalar_lea.vmem [#allocation0], 104
    %v1394 = vld [vmem:[%s1393] sm:$0x3]
    %vm1395 = vcmask 932864
    %v1396 = vsel %vm1395, %v1394, %v1392
    %1397 = vrot.lane.b32.xlu0 %v1396, 14
    %v1398 = vpop.permute.xlu0 %1397
    %vm1399 = vcmask 113664
    %s1400 = scalar_lea.vmem %s1, 66
    %1401 = vst.msk [vmem:[%s1400] ss:$176 sm:$0x3] %vm1399, %v1398
    %vm1402 = vcmask 203888
    %s1403 = scalar_lea.vmem %s1, 66
    %1404 = vst.msk [vmem:[%s1403] ss:$176 sm:$0x3] %vm1402, %v1398
    %s1405 = scalar_lea.vmem [#allocation0], 160
    %v1406 = vld [vmem:[%s1405] sm:$0x3]
    %s1407 = scalar_lea.vmem [#allocation0], 168
    %v1408 = vld [vmem:[%s1407] sm:$0x3]
    %vm1409 = vcmask 941056
    %v1410 = vsel %vm1409, %v1408, %v1406
    %1411 = vrot.lane.b32.xlu0 %v1410, 13
    %v1412 = vpop.permute.xlu0 %1411
    %vm1413 = vcmask 105472
    %s1414 = scalar_lea.vmem %s1, 107
    %1415 = vst.msk [vmem:[%s1414] ss:$176 sm:$0x3] %vm1413, %v1412
    %vm1416 = vcmask 203880
    %s1417 = scalar_lea.vmem %s1, 107
    %1418 = vst.msk [vmem:[%s1417] ss:$176 sm:$0x3] %vm1416, %v1412
    %s1419 = scalar_lea.vmem [#allocation0], 25
    %s1420 = smov 3
    %v1421 = vld [vmem:[%s1419] ss:$-1 sm:%s1420]
    %s1422 = scalar_lea.vmem [#allocation0], 227
    %s1423 = smov 12
    %v1424 = vld [vmem:[%s1422] ss:$-1 sm:%s1423]
    %vm1425 = vcmask 1043458
    %v1426 = vsel %vm1425, %v1424, %v1421
    %s1427 = scalar_lea.vmem [#allocation0], 33
    %s1428 = smov 3
    %v1429 = vld [vmem:[%s1427] ss:$-1 sm:%s1428]
    %s1430 = scalar_lea.vmem [#allocation0], 235
    %s1431 = smov 12
    %v1432 = vld [vmem:[%s1430] ss:$-1 sm:%s1431]
    %vm1433 = vcmask 1043458
    %v1434 = vsel %vm1433, %v1432, %v1429
    %vm1435 = vcmask 949248
    %v1436 = vsel %vm1435, %v1434, %v1426
    %1437 = vrot.lane.b32.xlu0 %v1436, 12
    %v1438 = vpop.permute.xlu0 %1437
    %vm1439 = vcmask 97280
    %s1440 = scalar_lea.vmem %s1, 196
    %1441 = vst.msk [vmem:[%s1440] ss:$-176 sm:$0x3] %vm1439, %v1438
    %s1442 = scalar_lea.vmem %s1, 676
    %1443 = vst.msk [vmem:[%s1442] ss:$-176 sm:$0xc] %vm1439, %v1438
    %vm1444 = vcmask 203872
    %s1445 = scalar_lea.vmem %s1, 196
    %1446 = vst.msk [vmem:[%s1445] ss:$-176 sm:$0x3] %vm1444, %v1438
    %s1447 = scalar_lea.vmem %s1, 676
    %1448 = vst.msk [vmem:[%s1447] ss:$-176 sm:$0xc] %vm1444, %v1438
    %s1449 = scalar_lea.vmem [#allocation0], 89
    %s1450 = smov 3
    %v1451 = vld [vmem:[%s1449] ss:$-1 sm:%s1450]
    %s1452 = scalar_lea.vmem [#allocation0], 97
    %s1453 = smov 3
    %v1454 = vld [vmem:[%s1452] ss:$-1 sm:%s1453]
    %vm1455 = vcmask 957440
    %v1456 = vsel %vm1455, %v1454, %v1451
    %1457 = vrot.lane.b32.xlu0 %v1456, 11
    %v1458 = vpop.permute.xlu0 %1457
    %vm1459 = vcmask 89088
    %s1460 = scalar_lea.vmem %s1, 237
    %1461 = vst.msk [vmem:[%s1460] ss:$-176 sm:$0x3] %vm1459, %v1458
    %vm1462 = vcmask 203864
    %s1463 = scalar_lea.vmem %s1, 237
    %1464 = vst.msk [vmem:[%s1463] ss:$-176 sm:$0x3] %vm1462, %v1458
    %s1465 = scalar_lea.vmem [#allocation0], 152
    %v1466 = vld [vmem:[%s1465] sm:$0x3]
    %s1467 = scalar_lea.vmem [#allocation0], 160
    %v1468 = vld [vmem:[%s1467] sm:$0x3]
    %vm1469 = vcmask 965632
    %v1470 = vsel %vm1469, %v1468, %v1466
    %1471 = vrot.lane.b32.xlu0 %v1470, 10
    %v1472 = vpop.permute.xlu0 %1471
    %vm1473 = vcmask 80896
    %s1474 = scalar_lea.vmem %s1, 102
    %1475 = vst.msk [vmem:[%s1474] ss:$176 sm:$0x3] %vm1473, %v1472
    %vm1476 = vcmask 203856
    %s1477 = scalar_lea.vmem %s1, 102
    %1478 = vst.msk [vmem:[%s1477] ss:$176 sm:$0x3] %vm1476, %v1472
    %s1479 = scalar_lea.vmem [#allocation0], 16
    %v1480 = vld [vmem:[%s1479] sm:$0x3]
    %s1481 = scalar_lea.vmem [#allocation0], 214
    %v1482 = vld [vmem:[%s1481] sm:$0xc]
    %vm1483 = vcmask 1043458
    %v1484 = vsel %vm1483, %v1482, %v1480
    %s1485 = scalar_lea.vmem [#allocation0], 24
    %v1486 = vld [vmem:[%s1485] sm:$0x3]
    %s1487 = scalar_lea.vmem [#allocation0], 222
    %v1488 = vld [vmem:[%s1487] sm:$0xc]
    %vm1489 = vcmask 1043458
    %v1490 = vsel %vm1489, %v1488, %v1486
    %vm1491 = vcmask 973824
    %v1492 = vsel %vm1491, %v1490, %v1484
    %1493 = vrot.lane.b32.xlu0 %v1492, 9
    %v1494 = vpop.permute.xlu0 %1493
    %vm1495 = vcmask 72704
    %s1496 = scalar_lea.vmem %s1, 15
    %1497 = vst.msk [vmem:[%s1496] ss:$176 sm:$0x3] %vm1495, %v1494
    %s1498 = scalar_lea.vmem %s1, 4294967087
    %1499 = vst.msk [vmem:[%s1498] ss:$176 sm:$0xc] %vm1495, %v1494
    %vm1500 = vcmask 203848
    %s1501 = scalar_lea.vmem %s1, 15
    %1502 = vst.msk [vmem:[%s1501] ss:$176 sm:$0x3] %vm1500, %v1494
    %s1503 = scalar_lea.vmem %s1, 4294967087
    %1504 = vst.msk [vmem:[%s1503] ss:$176 sm:$0xc] %vm1500, %v1494
    %s1505 = scalar_lea.vmem [#allocation0], 81
    %s1506 = smov 3
    %v1507 = vld [vmem:[%s1505] ss:$-1 sm:%s1506]
    %s1508 = scalar_lea.vmem [#allocation0], 89
    %s1509 = smov 3
    %v1510 = vld [vmem:[%s1508] ss:$-1 sm:%s1509]
    %vm1511 = vcmask 982016
    %v1512 = vsel %vm1511, %v1510, %v1507
    %1513 = vrot.lane.b32.xlu0 %v1512, 8
    %v1514 = vpop.permute.xlu0 %1513
    %vm1515 = vcmask 64512
    %s1516 = scalar_lea.vmem %s1, 232
    %1517 = vst.msk [vmem:[%s1516] ss:$-176 sm:$0x3] %vm1515, %v1514
    %vm1518 = vcmask 203840
    %s1519 = scalar_lea.vmem %s1, 232
    %1520 = vst.msk [vmem:[%s1519] ss:$-176 sm:$0x3] %vm1518, %v1514
    %s1521 = scalar_lea.vmem [#allocation0], 144
    %v1522 = vld [vmem:[%s1521] sm:$0x3]
    %s1523 = scalar_lea.vmem [#allocation0], 152
    %v1524 = vld [vmem:[%s1523] sm:$0x3]
    %vm1525 = vcmask 990208
    %v1526 = vsel %vm1525, %v1524, %v1522
    %1527 = vrot.lane.b32.xlu0 %v1526, 7
    %v1528 = vpop.permute.xlu0 %1527
    %vm1529 = vcmask 56320
    %s1530 = scalar_lea.vmem %s1, 97
    %1531 = vst.msk [vmem:[%s1530] ss:$176 sm:$0x3] %vm1529, %v1528
    %vm1532 = vcmask 203832
    %s1533 = scalar_lea.vmem %s1, 97
    %1534 = vst.msk [vmem:[%s1533] ss:$176 sm:$0x3] %vm1532, %v1528
    %s1535 = scalar_lea.vmem [#allocation0], 8
    %v1536 = vld [vmem:[%s1535] sm:$0x3]
    %s1537 = scalar_lea.vmem [#allocation0], 206
    %v1538 = vld [vmem:[%s1537] sm:$0xc]
    %vm1539 = vcmask 1043458
    %v1540 = vsel %vm1539, %v1538, %v1536
    %s1541 = scalar_lea.vmem [#allocation0], 16
    %v1542 = vld [vmem:[%s1541] sm:$0x3]
    %s1543 = scalar_lea.vmem [#allocation0], 214
    %v1544 = vld [vmem:[%s1543] sm:$0xc]
    %vm1545 = vcmask 1043458
    %v1546 = vsel %vm1545, %v1544, %v1542
    %vm1547 = vcmask 998400
    %v1548 = vsel %vm1547, %v1546, %v1540
    %1549 = vrot.lane.b32.xlu0 %v1548, 6
    %v1550 = vpop.permute.xlu0 %1549
    %vm1551 = vcmask 48128
    %s1552 = scalar_lea.vmem %s1, 10
    %1553 = vst.msk [vmem:[%s1552] ss:$176 sm:$0x3] %vm1551, %v1550
    %s1554 = scalar_lea.vmem %s1, 4294967082
    %1555 = vst.msk [vmem:[%s1554] ss:$176 sm:$0xc] %vm1551, %v1550
    %vm1556 = vcmask 203824
    %s1557 = scalar_lea.vmem %s1, 10
    %1558 = vst.msk [vmem:[%s1557] ss:$176 sm:$0x3] %vm1556, %v1550
    %s1559 = scalar_lea.vmem %s1, 4294967082
    %1560 = vst.msk [vmem:[%s1559] ss:$176 sm:$0xc] %vm1556, %v1550
    %s1561 = scalar_lea.vmem [#allocation0], 73
    %s1562 = smov 3
    %v1563 = vld [vmem:[%s1561] ss:$-1 sm:%s1562]
    %s1564 = scalar_lea.vmem [#allocation0], 81
    %s1565 = smov 3
    %v1566 = vld [vmem:[%s1564] ss:$-1 sm:%s1565]
    %vm1567 = vcmask 1006592
    %v1568 = vsel %vm1567, %v1566, %v1563
    %1569 = vrot.lane.b32.xlu0 %v1568, 5
    %v1570 = vpop.permute.xlu0 %1569
    %vm1571 = vcmask 39936
    %s1572 = scalar_lea.vmem %s1, 227
    %1573 = vst.msk [vmem:[%s1572] ss:$-176 sm:$0x3] %vm1571, %v1570
    %vm1574 = vcmask 203816
    %s1575 = scalar_lea.vmem %s1, 227
    %1576 = vst.msk [vmem:[%s1575] ss:$-176 sm:$0x3] %vm1574, %v1570
    %s1577 = scalar_lea.vmem [#allocation0], 137
    %s1578 = smov 3
    %v1579 = vld [vmem:[%s1577] ss:$-1 sm:%s1578]
    %s1580 = scalar_lea.vmem [#allocation0], 145
    %s1581 = smov 3
    %v1582 = vld [vmem:[%s1580] ss:$-1 sm:%s1581]
    %vm1583 = vcmask 1014784
    %v1584 = vsel %vm1583, %v1582, %v1579
    %1585 = vrot.lane.b32.xlu0 %v1584, 4
    %v1586 = vpop.permute.xlu0 %1585
    %vm1587 = vcmask 31744
    %s1588 = scalar_lea.vmem %s1, 268
    %1589 = vst.msk [vmem:[%s1588] ss:$-176 sm:$0x3] %vm1587, %v1586
    %vm1590 = vcmask 203808
    %s1591 = scalar_lea.vmem %s1, 268
    %1592 = vst.msk [vmem:[%s1591] ss:$-176 sm:$0x3] %vm1590, %v1586
    %v1593 = vld [vmem:[#allocation0] sm:$0x3]
    %s1594 = scalar_lea.vmem [#allocation0], 198
    %v1595 = vld [vmem:[%s1594] sm:$0xc]
    %vm1596 = vcmask 1043458
    %v1597 = vsel %vm1596, %v1595, %v1593
    %s1598 = scalar_lea.vmem [#allocation0], 8
    %v1599 = vld [vmem:[%s1598] sm:$0x3]
    %s1600 = scalar_lea.vmem [#allocation0], 206
    %v1601 = vld [vmem:[%s1600] sm:$0xc]
    %vm1602 = vcmask 1043458
    %v1603 = vsel %vm1602, %v1601, %v1599
    %vm1604 = vcmask 1022976
    %v1605 = vsel %vm1604, %v1603, %v1597
    %1606 = vrot.lane.b32.xlu0 %v1605, 3
    %v1607 = vpop.permute.xlu0 %1606
    %vm1608 = vcmask 23552
    %s1609 = scalar_lea.vmem %s1, 5
    %1610 = vst.msk [vmem:[%s1609] ss:$176 sm:$0x3] %vm1608, %v1607
    %s1611 = scalar_lea.vmem %s1, 4294967077
    %1612 = vst.msk [vmem:[%s1611] ss:$176 sm:$0xc] %vm1608, %v1607
    %vm1613 = vcmask 203800
    %s1614 = scalar_lea.vmem %s1, 5
    %1615 = vst.msk [vmem:[%s1614] ss:$176 sm:$0x3] %vm1613, %v1607
    %s1616 = scalar_lea.vmem %s1, 4294967077
    %1617 = vst.msk [vmem:[%s1616] ss:$176 sm:$0xc] %vm1613, %v1607
    %s1618 = scalar_lea.vmem [#allocation0], 64
    %v1619 = vld [vmem:[%s1618] sm:$0x3]
    %s1620 = scalar_lea.vmem [#allocation0], 262
    %v1621 = vld [vmem:[%s1620] sm:$0xc]
    %vm1622 = vcmask 1043458
    %v1623 = vsel %vm1622, %v1621, %v1619
    %s1624 = scalar_lea.vmem [#allocation0], 72
    %v1625 = vld [vmem:[%s1624] sm:$0x3]
    %s1626 = scalar_lea.vmem [#allocation0], 270
    %v1627 = vld [vmem:[%s1626] sm:$0xc]
    %vm1628 = vcmask 1043458
    %v1629 = vsel %vm1628, %v1627, %v1625
    %vm1630 = vcmask 1031168
    %v1631 = vsel %vm1630, %v1629, %v1623
    %1632 = vrot.lane.b32.xlu0 %v1631, 2
    %v1633 = vpop.permute.xlu0 %1632
    %vm1634 = vcmask 15360
    %s1635 = scalar_lea.vmem %s1, 46
    %1636 = vst.msk [vmem:[%s1635] ss:$176 sm:$0x3] %vm1634, %v1633
    %s1637 = scalar_lea.vmem %s1, 4294967118
    %1638 = vst.msk [vmem:[%s1637] ss:$176 sm:$0xc] %vm1634, %v1633
    %vm1639 = vcmask 203792
    %s1640 = scalar_lea.vmem %s1, 46
    %1641 = vst.msk [vmem:[%s1640] ss:$176 sm:$0x3] %vm1639, %v1633
    %s1642 = scalar_lea.vmem %s1, 4294967118
    %1643 = vst.msk [vmem:[%s1642] ss:$176 sm:$0xc] %vm1639, %v1633
    %s1644 = scalar_lea.vmem [#allocation0], 129
    %s1645 = smov 3
    %v1646 = vld [vmem:[%s1644] ss:$-1 sm:%s1645]
    %s1647 = scalar_lea.vmem [#allocation0], 137
    %s1648 = smov 3
    %v1649 = vld [vmem:[%s1647] ss:$-1 sm:%s1648]
    %vm1650 = vcmask 1039360
    %v1651 = vsel %vm1650, %v1649, %v1646
    %1652 = vrot.lane.b32.xlu0 %v1651, 1
    %v1653 = vpop.permute.xlu0 %1652
    %vm1654 = vcmask 7168
    %s1655 = scalar_lea.vmem %s1, 263
    %1656 = vst.msk [vmem:[%s1655] ss:$-176 sm:$0x3] %vm1654, %v1653
    %vm1657 = vcmask 203784
    %s1658 = scalar_lea.vmem %s1, 263
    %1659 = vst.msk [vmem:[%s1658] ss:$-176 sm:$0x3] %vm1657, %v1653

// kernel: tile.8
$region0: #{tile.8}
  #allocation0 [shape = 's32[1]{0}', space=sflag, size = 0x4, scoped, tag = 'scoped memory for tile.8']
  %s0 = inlined_call_operand.vmem [shape: f32[3], index: 0, kind: input, shape index: {}]
  %s1 = inlined_call_operand.vmem [shape: f32[5,3], index: 1, kind: output, shape index: {}]
  // Predicated region
  $region2: #{tile.8} parent=0 // pred_check
    _
  $region3: #{tile.8} parent=0 // pred_check_branch
    %3 = sbr.rel (0) target = $region5
  $region4: #{tile.8} parent=0 // pred_region
    _
  $region5: #{tile.8} parent=0 // pred_fallthru
    _
  %v4 = vld [vmem:[%s0] ss:$0 sm:$0xff]
  %5 = vst [vmem:[%s1] sm:$0xff] %v4

// kernel: tile.0
$region0: #{tile.0}
  %s0 = inlined_call_operand.vmem [shape: f32[5,3], index: 0, kind: input, shape index: {}]
  %s1 = inlined_call_operand.vmem [shape: f32[15,1], index: 1, kind: output, shape index: {}]
  %v2 = vld [vmem:[%s0] sm:$0x1f]
  %vm3 = vcmask 7168
  %4 = vst.msk [vmem:[%s1] ss:$3 sm:$0x1f] %vm3, %v2
  %v5 = vld [vmem:[%s0] sm:$0x1f]
  %6 = vrot.lane.b32.xlu0 %v5, 127
  %v7 = vpop.permute.xlu0 %6
  %vm8 = vcmask 7168
  %s9 = scalar_lea.vmem %s1, 1
  %10 = vst.msk [vmem:[%s9] ss:$3 sm:$0x1f] %vm8, %v7
  %v11 = vld [vmem:[%s0] sm:$0x1f]
  %12 = vrot.lane.b32.xlu0 %v11, 126
  %v13 = vpop.permute.xlu0 %12
  %vm14 = vcmask 7168
  %s15 = scalar_lea.vmem %s1, 2
  %16 = vst.msk [vmem:[%s15] ss:$3 sm:$0x1f] %vm14, %v13

// kernel: conv_net_1d_2_sig_forward.1
$region0: #{conv_net_1d_2_sig_forward.1}
  #allocation0 [shape = 'u32[]', space=smem, size = 0x4, offset = 0x4, fixed_abs, tag = 'smem constant byte address 0x4 - core index']
  #allocation1 [shape = 'u32[144,128]{1,0:T(1,128)}', space=vmem, size = 0x12000, scoped, tag = 'internal scratch']
  %s0 = inlined_call_operand.vmem [shape: f32[2,25,512], index: 0, kind: input, shape index: {}]
  %s1 = inlined_call_operand.vmem [shape: f32[5,80,25], index: 1, kind: input, shape index: {}]
  %s2 = inlined_call_operand.vmem [shape: f32[16,1], index: 2, kind: input, shape index: {}]
  %s3 = inlined_call_operand.vmem [shape: f32[3,40,16], index: 3, kind: input, shape index: {}]
  %s4 = inlined_call_operand.vmem [shape: f32[8,1], index: 4, kind: input, shape index: {}]
  %s5 = inlined_call_operand.vmem [shape: f32[6,256,128], index: 5, kind: input, shape index: {}]
  %s6 = inlined_call_operand.vmem [shape: f32[1,128], index: 6, kind: input, shape index: {}]
  %s7 = inlined_call_operand.vmem [shape: f32[128,88], index: 7, kind: input, shape index: {}]
  %s8 = inlined_call_operand.vmem [shape: f32[1,88], index: 8, kind: input, shape index: {}]
  %s9 = inlined_call_operand.hbm [shape: f32[2,1,88], index: 9, kind: output, shape index: {}]
  %s10 = sld [smem:[#allocation0]]
  $region69: #{conv_net_1d_2_sig_forward.1} parent=0
    _
  %s12 = ssub.s32 1, %s10
  %s13 = scalar_select 0, %s12, %s10
  $region1: #{conv_net_1d_2_sig_forward.1} parent=0
    #allocation2 [shape = 'u8[1024]{0}', space=vmem, size = 0x400, scoped, tag = 'output window, operand 0']
    #allocation3 [shape = 's32[2]{0}', space=sflag, size = 0x8, scoped, tag = 'scoped memory for conv_net_1d_2_sig_forward.1']
    %14 = vsyncpa [#allocation3], 0
    %s15 = scalar_lea.sflag [#allocation3], 1
    %16 = vsyncpa %s15, 0
    loop: start=0, step=1, limit=4
    $region2: #{conv_net_1d_2_sig_forward.1} parent=1 // loop_pre_header
      _
    $region3: #{conv_net_1d_2_sig_forward.1} parent=1 // loop_header
      %s18 = sphi 0, %s22
      %p19 = scmp.ge.s32.totalorder %s18, 4
      %s28 = sphi 0, %s30
      %s31 = sphi 0, %s28
      %s32 = sphi 0, %s31
      %s48 = sphi 0, %s32
      %s52 = sphi 0, %s52
      %s54 = sphi 0, %s52
      %s55 = sphi 0, %s54
      %s69 = sphi 0, %s55
      %s73 = sphi 0, %s73
      %s75 = sphi 0, %s73
      %s76 = sphi 0, %s75
      %s90 = sphi 0, %s76
      %s94 = sphi 0, %s94
      %s96 = sphi 0, %s94
      %s97 = sphi 0, %s96
      %s111 = sphi 0, %s97
      %s115 = sphi 0, %s115
      %s117 = sphi 0, %s115
      %s118 = sphi 0, %s117
      %s132 = sphi 0, %s118
      %s136 = sphi 0, %s136
      %s138 = sphi 0, %s136
      %s139 = sphi 0, %s138
      %s153 = sphi 0, %s139
      %s157 = sphi 0, %s157
      %s159 = sphi 0, %s157
      %s160 = sphi 0, %s159
      %s174 = sphi 0, %s160
      %s178 = sphi 0, %s178
      %s180 = sphi 0, %s178
      %s181 = sphi 0, %s180
      %s195 = sphi 0, %s181
      %s199 = sphi 0, %s199
      %s201 = sphi 0, %s199
      %s202 = sphi 0, %s201
      %s216 = sphi 0, %s202
      %s222 = sphi 0, %s224
      %s225 = sphi 0, %s222
      %s226 = sphi 0, %s225
      %s242 = sphi 0, %s226
    $region4: #{conv_net_1d_2_sig_forward.1} parent=1 // loop_header_branch
      %21 = sbr.rel (%p19) target = $region8
    $region5: #{conv_net_1d_2_sig_forward.1} parent=1 // loop_body
      %s23 = ssub.s32 %s18, 1
      %s24 = ssub.s32 %s18, 2
      %s25 = sadd.s32 %s18, 1
      %s26 = ssub.s32 %s18, %s25
      %p27 = scmp.eq.s32.totalorder %s26, 0
      %s29 = sadd.s32 %s28, 1
      %s30 = scalar_select %p27, %s28, %s29
      %p33 = pneg %p27
      %p34 = scmp.eq.s32.totalorder %s18, 1
      %p35 = por %p33, %p34
      %p36 = scmp.ne.s32.totalorder %s28, %s31
      %p37 = scmp.eq.s32.totalorder %s18, 0
      %p38 = por %p36, %p37
      %p39 = scmp.ne.s32.totalorder %s28, %s31
      %p40 = scmp.eq.s32.totalorder %s23, 1
      %p41 = por %p39, %p40
      %p42 = scmp.ne.s32.totalorder %s31, %s32
      %p43 = scmp.eq.s32.totalorder %s23, 0
      %p44 = por %p42, %p43
      %p45 = scmp.ne.s32.totalorder %s31, %s32
      %p46 = scmp.eq.s32.totalorder %s24, 1
      %p47 = por %p45, %p46
      %p49 = scmp.ne.s32.totalorder %s32, %s48
      %p50 = scmp.eq.s32.totalorder %s24, 0
      %p51 = por %p49, %p50
      %s53 = sadd.s32 %s52, 1
      %p56 = scmp.eq.s32.totalorder %s18, 1
      %p57 = scmp.ne.s32.totalorder %s52, %s54
      %p58 = scmp.eq.s32.totalorder %s18, 0
      %p59 = por %p57, %p58
      %p60 = scmp.ne.s32.totalorder %s52, %s54
      %p61 = scmp.eq.s32.totalorder %s23, 1
      %p62 = por %p60, %p61
      %p63 = scmp.ne.s32.totalorder %s54, %s55
      %p64 = scmp.eq.s32.totalorder %s23, 0
      %p65 = por %p63, %p64
      %p66 = scmp.ne.s32.totalorder %s54, %s55
      %p67 = scmp.eq.s32.totalorder %s24, 1
      %p68 = por %p66, %p67
      %p70 = scmp.ne.s32.totalorder %s55, %s69
      %p71 = scmp.eq.s32.totalorder %s24, 0
      %p72 = por %p70, %p71
      %s74 = sadd.s32 %s73, 1
      %p77 = scmp.eq.s32.totalorder %s18, 1
      %p78 = scmp.ne.s32.totalorder %s73, %s75
      %p79 = scmp.eq.s32.totalorder %s18, 0
      %p80 = por %p78, %p79
      %p81 = scmp.ne.s32.totalorder %s73, %s75
      %p82 = scmp.eq.s32.totalorder %s23, 1
      %p83 = por %p81, %p82
      %p84 = scmp.ne.s32.totalorder %s75, %s76
      %p85 = scmp.eq.s32.totalorder %s23, 0
      %p86 = por %p84, %p85
      %p87 = scmp.ne.s32.totalorder %s75, %s76
      %p88 = scmp.eq.s32.totalorder %s24, 1
      %p89 = por %p87, %p88
      %p91 = scmp.ne.s32.totalorder %s76, %s90
      %p92 = scmp.eq.s32.totalorder %s24, 0
      %p93 = por %p91, %p92
      %s95 = sadd.s32 %s94, 1
      %p98 = scmp.eq.s32.totalorder %s18, 1
      %p99 = scmp.ne.s32.totalorder %s94, %s96
      %p100 = scmp.eq.s32.totalorder %s18, 0
      %p101 = por %p99, %p100
      %p102 = scmp.ne.s32.totalorder %s94, %s96
      %p103 = scmp.eq.s32.totalorder %s23, 1
      %p104 = por %p102, %p103
      %p105 = scmp.ne.s32.totalorder %s96, %s97
      %p106 = scmp.eq.s32.totalorder %s23, 0
      %p107 = por %p105, %p106
      %p108 = scmp.ne.s32.totalorder %s96, %s97
      %p109 = scmp.eq.s32.totalorder %s24, 1
      %p110 = por %p108, %p109
      %p112 = scmp.ne.s32.totalorder %s97, %s111
      %p113 = scmp.eq.s32.totalorder %s24, 0
      %p114 = por %p112, %p113
      %s116 = sadd.s32 %s115, 1
      %p119 = scmp.eq.s32.totalorder %s18, 1
      %p120 = scmp.ne.s32.totalorder %s115, %s117
      %p121 = scmp.eq.s32.totalorder %s18, 0
      %p122 = por %p120, %p121
      %p123 = scmp.ne.s32.totalorder %s115, %s117
      %p124 = scmp.eq.s32.totalorder %s23, 1
      %p125 = por %p123, %p124
      %p126 = scmp.ne.s32.totalorder %s117, %s118
      %p127 = scmp.eq.s32.totalorder %s23, 0
      %p128 = por %p126, %p127
      %p129 = scmp.ne.s32.totalorder %s117, %s118
      %p130 = scmp.eq.s32.totalorder %s24, 1
      %p131 = por %p129, %p130
      %p133 = scmp.ne.s32.totalorder %s118, %s132
      %p134 = scmp.eq.s32.totalorder %s24, 0
      %p135 = por %p133, %p134
      %s137 = sadd.s32 %s136, 1
      %p140 = scmp.eq.s32.totalorder %s18, 1
      %p141 = scmp.ne.s32.totalorder %s136, %s138
      %p142 = scmp.eq.s32.totalorder %s18, 0
      %p143 = por %p141, %p142
      %p144 = scmp.ne.s32.totalorder %s136, %s138
      %p145 = scmp.eq.s32.totalorder %s23, 1
      %p146 = por %p144, %p145
      %p147 = scmp.ne.s32.totalorder %s138, %s139
      %p148 = scmp.eq.s32.totalorder %s23, 0
      %p149 = por %p147, %p148
      %p150 = scmp.ne.s32.totalorder %s138, %s139
      %p151 = scmp.eq.s32.totalorder %s24, 1
      %p152 = por %p150, %p151
      %p154 = scmp.ne.s32.totalorder %s139, %s153
      %p155 = scmp.eq.s32.totalorder %s24, 0
      %p156 = por %p154, %p155
      %s158 = sadd.s32 %s157, 1
      %p161 = scmp.eq.s32.totalorder %s18, 1
      %p162 = scmp.ne.s32.totalorder %s157, %s159
      %p163 = scmp.eq.s32.totalorder %s18, 0
      %p164 = por %p162, %p163
      %p165 = scmp.ne.s32.totalorder %s157, %s159
      %p166 = scmp.eq.s32.totalorder %s23, 1
      %p167 = por %p165, %p166
      %p168 = scmp.ne.s32.totalorder %s159, %s160
      %p169 = scmp.eq.s32.totalorder %s23, 0
      %p170 = por %p168, %p169
      %p171 = scmp.ne.s32.totalorder %s159, %s160
      %p172 = scmp.eq.s32.totalorder %s24, 1
      %p173 = por %p171, %p172
      %p175 = scmp.ne.s32.totalorder %s160, %s174
      %p176 = scmp.eq.s32.totalorder %s24, 0
      %p177 = por %p175, %p176
      %s179 = sadd.s32 %s178, 1
      %p182 = scmp.eq.s32.totalorder %s18, 1
      %p183 = scmp.ne.s32.totalorder %s178, %s180
      %p184 = scmp.eq.s32.totalorder %s18, 0
      %p185 = por %p183, %p184
      %p186 = scmp.ne.s32.totalorder %s178, %s180
      %p187 = scmp.eq.s32.totalorder %s23, 1
      %p188 = por %p186, %p187
      %p189 = scmp.ne.s32.totalorder %s180, %s181
      %p190 = scmp.eq.s32.totalorder %s23, 0
      %p191 = por %p189, %p190
      %p192 = scmp.ne.s32.totalorder %s180, %s181
      %p193 = scmp.eq.s32.totalorder %s24, 1
      %p194 = por %p192, %p193
      %p196 = scmp.ne.s32.totalorder %s181, %s195
      %p197 = scmp.eq.s32.totalorder %s24, 0
      %p198 = por %p196, %p197
      %s200 = sadd.s32 %s199, 1
      %p203 = scmp.eq.s32.totalorder %s18, 1
      %p204 = scmp.ne.s32.totalorder %s199, %s201
      %p205 = scmp.eq.s32.totalorder %s18, 0
      %p206 = por %p204, %p205
      %p207 = scmp.ne.s32.totalorder %s199, %s201
      %p208 = scmp.eq.s32.totalorder %s23, 1
      %p209 = por %p207, %p208
      %p210 = scmp.ne.s32.totalorder %s201, %s202
      %p211 = scmp.eq.s32.totalorder %s23, 0
      %p212 = por %p210, %p211
      %p213 = scmp.ne.s32.totalorder %s201, %s202
      %p214 = scmp.eq.s32.totalorder %s24, 1
      %p215 = por %p213, %p214
      %p217 = scmp.ne.s32.totalorder %s202, %s216
      %p218 = scmp.eq.s32.totalorder %s24, 0
      %p219 = por %p217, %p218
      %s220 = ssub.s32 %s18, %s25
      %p221 = scmp.eq.s32.totalorder %s220, 0
      %s223 = sadd.s32 %s222, 1
      %s224 = scalar_select %p221, %s222, %s223
      %p227 = pneg %p221
      %p228 = scmp.eq.s32.totalorder %s18, 1
      %p229 = por %p227, %p228
      %p230 = scmp.ne.s32.totalorder %s222, %s225
      %p231 = scmp.eq.s32.totalorder %s18, 0
      %p232 = por %p230, %p231
      %p233 = scmp.ne.s32.totalorder %s222, %s225
      %p234 = scmp.eq.s32.totalorder %s23, 1
      %p235 = por %p233, %p234
      %p236 = scmp.ne.s32.totalorder %s225, %s226
      %p237 = scmp.eq.s32.totalorder %s23, 0
      %p238 = por %p236, %p237
      %p239 = scmp.ne.s32.totalorder %s225, %s226
      %p240 = scmp.eq.s32.totalorder %s24, 1
      %p241 = por %p239, %p240
      %p243 = scmp.ne.s32.totalorder %s226, %s242
      %p244 = scmp.eq.s32.totalorder %s24, 0
      %p245 = por %p243, %p244
      %p246 = scmp.le.s32.totalorder 1, %s18
      %p247 = scmp.lt.s32.totalorder %s18, 3
      %p248 = pnand %p246, %p247
      %p249 = pneg %p248
      // Predicated region
      $region9: #{conv_net_1d_2_sig_forward.1} parent=5 // pred_check
        _
      $region10: #{conv_net_1d_2_sig_forward.1} parent=5 // pred_check_branch
        %251 = sbr.rel (%p248) target = $region12
      $region11: #{conv_net_1d_2_sig_forward.1} parent=5 // pred_region
        %s252 = ssub.s32 %s18, 1
        // Predicated region
        $region13: #{conv_net_1d_2_sig_forward.1} parent=11 // pred_check
          %p253 = pneg %p65
        $region14: #{conv_net_1d_2_sig_forward.1} parent=11 // pred_check_branch
          %255 = sbr.rel (%p253) target = $region16
        $region15: #{conv_net_1d_2_sig_forward.1} parent=11 // pred_region
          _
        $region16: #{conv_net_1d_2_sig_forward.1} parent=11 // pred_fallthru
          _
        // Predicated region
        $region17: #{conv_net_1d_2_sig_forward.1} parent=11 // pred_check
          %p256 = pneg %p86
        $region18: #{conv_net_1d_2_sig_forward.1} parent=11 // pred_check_branch
          %258 = sbr.rel (%p256) target = $region20
        $region19: #{conv_net_1d_2_sig_forward.1} parent=11 // pred_region
          _
        $region20: #{conv_net_1d_2_sig_forward.1} parent=11 // pred_fallthru
          _
        // Predicated region
        $region21: #{conv_net_1d_2_sig_forward.1} parent=11 // pred_check
          %p259 = pneg %p107
        $region22: #{conv_net_1d_2_sig_forward.1} parent=11 // pred_check_branch
          %261 = sbr.rel (%p259) target = $region24
        $region23: #{conv_net_1d_2_sig_forward.1} parent=11 // pred_region
          _
        $region24: #{conv_net_1d_2_sig_forward.1} parent=11 // pred_fallthru
          _
        // Predicated region
        $region25: #{conv_net_1d_2_sig_forward.1} parent=11 // pred_check
          %p262 = pneg %p128
        $region26: #{conv_net_1d_2_sig_forward.1} parent=11 // pred_check_branch
          %264 = sbr.rel (%p262) target = $region28
        $region27: #{conv_net_1d_2_sig_forward.1} parent=11 // pred_region
          _
        $region28: #{conv_net_1d_2_sig_forward.1} parent=11 // pred_fallthru
          _
        // Predicated region
        $region29: #{conv_net_1d_2_sig_forward.1} parent=11 // pred_check
          %p265 = pneg %p149
        $region30: #{conv_net_1d_2_sig_forward.1} parent=11 // pred_check_branch
          %267 = sbr.rel (%p265) target = $region32
        $region31: #{conv_net_1d_2_sig_forward.1} parent=11 // pred_region
          _
        $region32: #{conv_net_1d_2_sig_forward.1} parent=11 // pred_fallthru
          _
        // Predicated region
        $region33: #{conv_net_1d_2_sig_forward.1} parent=11 // pred_check
          %p268 = pneg %p170
        $region34: #{conv_net_1d_2_sig_forward.1} parent=11 // pred_check_branch
          %270 = sbr.rel (%p268) target = $region36
        $region35: #{conv_net_1d_2_sig_forward.1} parent=11 // pred_region
          _
        $region36: #{conv_net_1d_2_sig_forward.1} parent=11 // pred_fallthru
          _
        // Predicated region
        $region37: #{conv_net_1d_2_sig_forward.1} parent=11 // pred_check
          %p271 = pneg %p191
        $region38: #{conv_net_1d_2_sig_forward.1} parent=11 // pred_check_branch
          %273 = sbr.rel (%p271) target = $region40
        $region39: #{conv_net_1d_2_sig_forward.1} parent=11 // pred_region
          _
        $region40: #{conv_net_1d_2_sig_forward.1} parent=11 // pred_fallthru
          _
        // Predicated region
        $region41: #{conv_net_1d_2_sig_forward.1} parent=11 // pred_check
          %p274 = pneg %p212
        $region42: #{conv_net_1d_2_sig_forward.1} parent=11 // pred_check_branch
          %276 = sbr.rel (%p274) target = $region44
        $region43: #{conv_net_1d_2_sig_forward.1} parent=11 // pred_region
          _
        $region44: #{conv_net_1d_2_sig_forward.1} parent=11 // pred_fallthru
          _
      $region12: #{conv_net_1d_2_sig_forward.1} parent=5 // pred_fallthru
        _
      %p277 = scmp.lt.s32.totalorder %s18, 2
      // Predicated region
      $region45: #{conv_net_1d_2_sig_forward.1} parent=5 // pred_check
        %p278 = pneg %p277
      $region46: #{conv_net_1d_2_sig_forward.1} parent=5 // pred_check_branch
        %280 = sbr.rel (%p278) target = $region48
      $region47: #{conv_net_1d_2_sig_forward.1} parent=5 // pred_region
        // Predicated region
        $region49: #{conv_net_1d_2_sig_forward.1} parent=47 // pred_check
          %p281 = pneg %p38
        $region50: #{conv_net_1d_2_sig_forward.1} parent=47 // pred_check_branch
          %283 = sbr.rel (%p281) target = $region52
        $region51: #{conv_net_1d_2_sig_forward.1} parent=47 // pred_region
          %p284 = scmp.lt.s32.totalorder %s18, 1
          %s285 = scalar_select %p284, %s18, 1
          %s286 = smul.addr %s285, 16
          %s287 = smul.addr %s286, 8
          %s288 = scalar_lea.vmem %s0, %s287
        $region52: #{conv_net_1d_2_sig_forward.1} parent=47 // pred_fallthru
          _
      $region48: #{conv_net_1d_2_sig_forward.1} parent=5 // pred_fallthru
        _
      %p289 = scmp.le.s32.totalorder 1, %s18
      %p290 = scmp.lt.s32.totalorder %s18, 3
      %p291 = pnand %p289, %p290
      %p292 = pneg %p291
      // Predicated region
      $region53: #{conv_net_1d_2_sig_forward.1} parent=5 // pred_check
        _
      $region54: #{conv_net_1d_2_sig_forward.1} parent=5 // pred_check_branch
        %294 = sbr.rel (%p291) target = $region56
      $region55: #{conv_net_1d_2_sig_forward.1} parent=5 // pred_region
        %s295 = ssub.s32 %s18, 1
        %p296 = scmp.lt.s32.totalorder %s23, 1
        %s297 = scalar_select %p296, %s23, 1
        %s298 = smul.addr %s297, 16
        %s299 = smul.addr %s298, 8
        %s300 = scalar_lea.vmem %s0, %s299
        %p301 = pneg %p44
        %p302 = pneg %p41
        %p303 = pneg %p65
        %p304 = pneg %p62
        %p305 = pneg %p86
        %p306 = pneg %p83
        %p307 = pneg %p107
        %p308 = pneg %p104
        %p309 = pneg %p128
        %p310 = pneg %p125
        %p311 = pneg %p149
        %p312 = pneg %p146
        %p313 = pneg %p170
        %p314 = pneg %p167
        %p315 = pneg %p191
        %p316 = pneg %p188
        %p317 = pneg %p212
        %p318 = pneg %p209
        %p319 = pneg %p238
        %p320 = pneg %p235
        %s321 = sand.u32 %s225, 1
        %s322 = scalar_lea.sflag [#allocation3], %s321
        %s323 = sand.u32 %s225, 1
        %s324 = scalar_lea.vmem [#allocation2], %s323
        %p325 = scmp.lt.s32.totalorder %s23, 1
        %s326 = scalar_select %p325, %s23, 1
        %s327 = smul.addr %s326, 16
        %s328 = smul.addr %s327, 8
        %s329 = scalar_lea.vmem %s0, %s328
        %v330 = vld [vmem:[%s1] sm:$0xff]
        %v331 = vld [vmem:[%s1 + $0x8] sm:$0xff]
        %v332 = vld [vmem:[%s1 + $0x10] sm:$0xff]
        %v333 = vld [vmem:[%s1 + $0x18] sm:$0xff]
        %v334 = vld [vmem:[%s1 + $0x20] sm:$0xff]
        %v335 = vld [vmem:[%s1 + $0x28] sm:$0xff]
        %v336 = vld [vmem:[%s1 + $0x30] sm:$0xff]
        %v337 = vld [vmem:[%s1 + $0x38] sm:$0xff]
        %v338 = vld [vmem:[%s1 + $0x40] sm:$0xff]
        %v339 = vld [vmem:[%s1 + $0x48] sm:$0xff]
        %v340 = vld [vmem:[%s329] sm:$0xff]
        %v341 = vld [vmem:[%s329 + $0x8] sm:$0xff]
        %v342 = vld [vmem:[%s329 + $0x10] sm:$0xff]
        %v343 = vld [vmem:[%s329 + $0x20] sm:$0xff]
        %v344 = vld [vmem:[%s329 + $0x28] sm:$0xff]
        %v345 = vld [vmem:[%s329 + $0x30] sm:$0xff]
        %v346 = vld [vmem:[%s329 + $0x40] sm:$0xff]
        %v347 = vld [vmem:[%s329 + $0x48] sm:$0xff]
        %v348 = vld [vmem:[%s329 + $0x50] sm:$0xff]
        %v349 = vld [vmem:[%s329 + $0x60] sm:$0x1]
        %v350 = vld [vmem:[%s329 + $0x68] sm:$0x1]
        %v351 = vld [vmem:[%s329 + $0x70] sm:$0x1]
        %s352 = scalar_lea.vmem %s1, 80
        %v353 = vld [vmem:[%s352] sm:$0xff]
        %v354 = vld [vmem:[%s352 + $0x8] sm:$0xff]
        %v355 = vld [vmem:[%s352 + $0x10] sm:$0xff]
        %v356 = vld [vmem:[%s352 + $0x18] sm:$0xff]
        %v357 = vld [vmem:[%s352 + $0x20] sm:$0xff]
        %v358 = vld [vmem:[%s352 + $0x28] sm:$0xff]
        %v359 = vld [vmem:[%s352 + $0x30] sm:$0xff]
        %v360 = vld [vmem:[%s352 + $0x38] sm:$0xff]
        %v361 = vld [vmem:[%s352 + $0x40] sm:$0xff]
        %v362 = vld [vmem:[%s352 + $0x48] sm:$0xff]
        %v363 = vld [vmem:[%s329 + $0x18] sm:$0xff]
        %v364 = vld [vmem:[%s329 + $0x38] sm:$0xff]
        %v365 = vld [vmem:[%s329 + $0x58] sm:$0xff]
        %v366 = vld [vmem:[%s329 + $0x78] sm:$0x1]
        %383 = vrot.lane.b32.xlu0 %v340, 127
        %v384 = vpop.permute.xlu0 %383
        %385 = vrot.lane.b32.xlu0 %v341, 127
        %v386 = vpop.permute.xlu0 %385
        %387 = vrot.lane.b32.xlu0 %v342, 127
        %v388 = vpop.permute.xlu0 %387
        %389 = vrot.lane.b32.xlu0 %v363, 127
        %v390 = vpop.permute.xlu0 %389
        %391 = vrot.lane.b32.xlu0 %v343, 127
        %v392 = vpop.permute.xlu0 %391
        %393 = vrot.lane.b32.xlu0 %v344, 127
        %v394 = vpop.permute.xlu0 %393
        %395 = vrot.lane.b32.xlu0 %v345, 127
        %v396 = vpop.permute.xlu0 %395
        %397 = vrot.lane.b32.xlu0 %v364, 127
        %v398 = vpop.permute.xlu0 %397
        %399 = vrot.lane.b32.xlu0 %v346, 127
        %v400 = vpop.permute.xlu0 %399
        %401 = vrot.lane.b32.xlu0 %v347, 127
        %v402 = vpop.permute.xlu0 %401
        %403 = vrot.lane.b32.xlu0 %v348, 127
        %v404 = vpop.permute.xlu0 %403
        %405 = vrot.lane.b32.xlu0 %v365, 127
        %v406 = vpop.permute.xlu0 %405
        %407 = vrot.lane.b32.xlu0 %v349, 127
        %v408 = vpop.permute.xlu0 %407
        %409 = vrot.lane.b32.xlu0 %v350, 127
        %v410 = vpop.permute.xlu0 %409
        %411 = vrot.lane.b32.xlu0 %v351, 127
        %v412 = vpop.permute.xlu0 %411
        %413 = vrot.lane.b32.xlu0 %v366, 127
        %v414 = vpop.permute.xlu0 %413
        %vm415 = vcmask 1039360
        %v416 = vsel %vm415, %v384, %v386
        %v417 = vsel %vm415, %v386, %v388
        %v418 = vsel %vm415, %v388, %v390
        %v419 = vsel %vm415, %v392, %v394
        %v420 = vsel %vm415, %v394, %v396
        %v421 = vsel %vm415, %v396, %v398
        %v422 = vsel %vm415, %v400, %v402
        %v423 = vsel %vm415, %v402, %v404
        %v424 = vsel %vm415, %v404, %v406
        %v425 = vsel %vm415, %v408, %v410
        %v426 = vsel %vm415, %v410, %v412
        %v427 = vsel %vm415, %v412, %v414
        %vm437 = vcmask 203776
        %v439 = vsel %vm437, %v353, 0
        %v442 = vsel %vm437, %v354, 0
        %v445 = vsel %vm437, %v355, 0
        %v448 = vsel %vm437, %v356, 0
        %v451 = vsel %vm437, %v357, 0
        %v454 = vsel %vm437, %v358, 0
        %v457 = vsel %vm437, %v359, 0
        %v460 = vsel %vm437, %v360, 0
        %v463 = vsel %vm437, %v361, 0
        %v466 = vsel %vm437, %v362, 0
        %vm468 = vcmask 1040384
        %v469 = vsel %vm468, %v425, 0
        %v471 = vsel %vm468, %v426, 0
        %v473 = vsel %vm468, %v427, 0
        %475 = vmatprep.subr.mxu0 %v417
        %476 = vmatpush1.msra.mxu0 %v416
        %477 = vmatprep.subr.mxu0 %v420
        %478 = vmatpush1.msra.mxu0 %v419
        %479 = vmatprep.subr.mxu0 %v423
        %480 = vmatpush1.msra.mxu0 %v422
        %481 = vmatprep.subr.mxu0 %v471
        %482 = vmatpush1.msra.mxu0 %v469
        %483 = vmatprep.subr.mxu0 0.0
        %484 = vmatpush1.msra.mxu0 0.0
        %485 = vmatprep.subr.mxu0 0.0
        %486 = vmatpush1.msra.mxu0 0.0
        %487 = vmatprep.subr.mxu0 0.0
        %488 = vmatpush1.msra.mxu0 0.0
        %489 = vmatprep.subr.mxu0 0.0
        %490 = vmatpush1.msra.mxu0 0.0
        %491 = vmatprep.subr.mxu0 0.0
        %492 = vmatpush1.msra.mxu0 0.0
        %493 = vmatprep.subr.mxu0 0.0
        %494 = vmatpush1.msra.mxu0 0.0
        %495 = vmatprep.subr.mxu0 0.0
        %496 = vmatpush1.msra.mxu0 0.0
        %497 = vmatprep.subr.mxu0 0.0
        %498 = vmatpush1.msra.mxu0 0.0
        %499 = vmatprep.subr.mxu0 0.0
        %500 = vmatpush1.msra.mxu0 0.0
        %501 = vmatprep.subr.mxu0 0.0
        %502 = vmatpush1.msra.mxu0 0.0
        %503 = vmatprep.subr.mxu0 0.0
        %504 = vmatpush1.msra.mxu0 0.0
        %505 = vmatprep.subr.mxu0 0.0
        %506 = vmatpush1.msra.mxu0 0.0
        %507 = vmatprep.subr.mxu0 0.0
        %508 = vmatpush1.msra.mxu0 0.0
        %509 = vmatprep.subr.mxu0 0.0
        %510 = vmatpush1.msra.mxu0 0.0
        %511 = vmatprep.subr.mxu0 0.0
        %512 = vmatpush1.msra.mxu0 0.0
        %513 = vmatprep.subr.mxu0 0.0
        %514 = vmatpush1.msra.mxu0 0.0
        %515 = vmatprep.subr.mxu0 0.0
        %516 = vmatpush1.msra.mxu0 0.0
        %517 = vmatprep.subr.mxu0 0.0
        %518 = vmatpush1.msra.mxu0 0.0
        %519 = vmatprep.subr.mxu0 0.0
        %520 = vmatpush1.msra.mxu0 0.0
        %521 = vmatprep.subr.mxu0 0.0
        %522 = vmatpush1.msra.mxu0 0.0
        %523 = vmatprep.subr.mxu0 0.0
        %524 = vmatpush1.msra.mxu0 0.0
        %525 = vmatprep.subr.mxu0 0.0
        %526 = vmatpush1.msra.mxu0 0.0
        %527 = vmatprep.subr.mxu0 0.0
        %528 = vmatpush1.msra.mxu0 0.0
        %529 = vmatprep.subr.mxu0 0.0
        %530 = vmatpush1.msra.mxu0 0.0
        %531 = vmatprep.subr.mxu0 0.0
        %532 = vmatpush1.msra.mxu0 0.0
        %533 = vmatprep.subr.mxu0 0.0
        %534 = vmatpush1.msra.mxu0 0.0
        %535 = vmatprep.subr.mxu0 0.0
        %536 = vmatpush1.msra.mxu0 0.0
        %537 = vmatprep.subr.mxu0 0.0
        %538 = vmatpush1.msra.mxu0 0.0
        %539 = vmatprep.mubr.f32.mxu0 0.0
        %540 = vmatmul.mubr.f32.gmra.mrb[0].mxu0 %v439
        %v541 = vpop.f32.mrb[0].mxu0
        %v542 = vadd.f32 0.0, %v541
        %v543 = vpop.f32.mrb[0].mxu0
        %v544 = vadd.f32 0.0, %v543
        %545 = vmatprep.mubr.f32.mxu0 0.0
        %546 = vmatmul.mubr.f32.gmra.mrb[0].mxu0 %v442
        %v547 = vpop.f32.mrb[0].mxu0
        %v548 = vadd.f32 0.0, %v547
        %v549 = vpop.f32.mrb[0].mxu0
        %v550 = vadd.f32 0.0, %v549
        %551 = vmatprep.mubr.f32.mxu0 0.0
        %552 = vmatmul.mubr.f32.gmra.mrb[0].mxu0 %v445
        %v553 = vpop.f32.mrb[0].mxu0
        %v554 = vadd.f32 0.0, %v553
        %v555 = vpop.f32.mrb[0].mxu0
        %v556 = vadd.f32 0.0, %v555
        %557 = vmatprep.mubr.f32.mxu0 0.0
        %558 = vmatmul.mubr.f32.gmra.mrb[0].mxu0 %v448
        %v559 = vpop.f32.mrb[0].mxu0
        %v560 = vadd.f32 0.0, %v559
        %v561 = vpop.f32.mrb[0].mxu0
        %v562 = vadd.f32 0.0, %v561
        %563 = vmatprep.mubr.f32.mxu0 0.0
        %564 = vmatmul.mubr.f32.gmra.mrb[0].mxu0 %v451
        %v565 = vpop.f32.mrb[0].mxu0
        %v566 = vadd.f32 0.0, %v565
        %v567 = vpop.f32.mrb[0].mxu0
        %v568 = vadd.f32 0.0, %v567
        %569 = vmatprep.mubr.f32.mxu0 0.0
        %570 = vmatmul.mubr.f32.gmra.mrb[0].mxu0 %v454
        %v571 = vpop.f32.mrb[0].mxu0
        %v572 = vadd.f32 0.0, %v571
        %v573 = vpop.f32.mrb[0].mxu0
        %v574 = vadd.f32 0.0, %v573
        %575 = vmatprep.mubr.f32.mxu0 0.0
        %576 = vmatmul.mubr.f32.gmra.mrb[0].mxu0 %v457
        %v577 = vpop.f32.mrb[0].mxu0
        %v578 = vadd.f32 0.0, %v577
        %v579 = vpop.f32.mrb[0].mxu0
        %v580 = vadd.f32 0.0, %v579
        %581 = vmatprep.mubr.f32.mxu0 0.0
        %582 = vmatmul.mubr.f32.gmra.mrb[0].mxu0 %v460
        %v583 = vpop.f32.mrb[0].mxu0
        %v584 = vadd.f32 0.0, %v583
        %v585 = vpop.f32.mrb[0].mxu0
        %v586 = vadd.f32 0.0, %v585
        %587 = vmatprep.mubr.f32.mxu0 0.0
        %588 = vmatmul.mubr.f32.gmra.mrb[0].mxu0 %v463
        %v589 = vpop.f32.mrb[0].mxu0
        %v590 = vadd.f32 0.0, %v589
        %v591 = vpop.f32.mrb[0].mxu0
        %v592 = vadd.f32 0.0, %v591
        %593 = vmatprep.mubr.f32.mxu0 0.0
        %594 = vmatmul.mubr.f32.gmra.mrb[0].mxu0 %v466
        %v595 = vpop.f32.mrb[0].mxu0
        %v596 = vadd.f32 0.0, %v595
        %v597 = vpop.f32.mrb[0].mxu0
        %v598 = vadd.f32 0.0, %v597
        %599 = vdwg.mxu0
        %600 = vmatprep.subr.mxu0 0.0
        %601 = vmatpush1.msra.mxu0 %v418
        %602 = vmatprep.subr.mxu0 0.0
        %603 = vmatpush1.msra.mxu0 %v421
        %604 = vmatprep.subr.mxu0 0.0
        %605 = vmatpush1.msra.mxu0 %v424
        %606 = vmatprep.subr.mxu0 0.0
        %607 = vmatpush1.msra.mxu0 %v473
        %608 = vmatprep.subr.mxu0 0.0
        %609 = vmatpush1.msra.mxu0 0.0
        %610 = vmatprep.subr.mxu0 0.0
        %611 = vmatpush1.msra.mxu0 0.0
        %612 = vmatprep.subr.mxu0 0.0
        %613 = vmatpush1.msra.mxu0 0.0
        %614 = vmatprep.subr.mxu0 0.0
        %615 = vmatpush1.msra.mxu0 0.0
        %616 = vmatprep.subr.mxu0 0.0
        %617 = vmatpush1.msra.mxu0 0.0
        %618 = vmatprep.subr.mxu0 0.0
        %619 = vmatpush1.msra.mxu0 0.0
        %620 = vmatprep.subr.mxu0 0.0
        %621 = vmatpush1.msra.mxu0 0.0
        %622 = vmatprep.subr.mxu0 0.0
        %623 = vmatpush1.msra.mxu0 0.0
        %624 = vmatprep.subr.mxu0 0.0
        %625 = vmatpush1.msra.mxu0 0.0
        %626 = vmatprep.subr.mxu0 0.0
        %627 = vmatpush1.msra.mxu0 0.0
        %628 = vmatprep.subr.mxu0 0.0
        %629 = vmatpush1.msra.mxu0 0.0
        %630 = vmatprep.subr.mxu0 0.0
        %631 = vmatpush1.msra.mxu0 0.0
        %632 = vmatprep.subr.mxu0 0.0
        %633 = vmatpush1.msra.mxu0 0.0
        %634 = vmatprep.subr.mxu0 0.0
        %635 = vmatpush1.msra.mxu0 0.0
        %636 = vmatprep.subr.mxu0 0.0
        %637 = vmatpush1.msra.mxu0 0.0
        %638 = vmatprep.subr.mxu0 0.0
        %639 = vmatpush1.msra.mxu0 0.0
        %640 = vmatprep.subr.mxu0 0.0
        %641 = vmatpush1.msra.mxu0 0.0
        %642 = vmatprep.subr.mxu0 0.0
        %643 = vmatpush1.msra.mxu0 0.0
        %644 = vmatprep.subr.mxu0 0.0
        %645 = vmatpush1.msra.mxu0 0.0
        %646 = vmatprep.subr.mxu0 0.0
        %647 = vmatpush1.msra.mxu0 0.0
        %648 = vmatprep.subr.mxu0 0.0
        %649 = vmatpush1.msra.mxu0 0.0
        %650 = vmatprep.subr.mxu0 0.0
        %651 = vmatpush1.msra.mxu0 0.0
        %652 = vmatprep.subr.mxu0 0.0
        %653 = vmatpush1.msra.mxu0 0.0
        %654 = vmatprep.subr.mxu0 0.0
        %655 = vmatpush1.msra.mxu0 0.0
        %656 = vmatprep.subr.mxu0 0.0
        %657 = vmatpush1.msra.mxu0 0.0
        %658 = vmatprep.subr.mxu0 0.0
        %659 = vmatpush1.msra.mxu0 0.0
        %660 = vmatprep.subr.mxu0 0.0
        %661 = vmatpush1.msra.mxu0 0.0
        %662 = vmatprep.subr.mxu0 0.0
        %663 = vmatpush1.msra.mxu0 0.0
        %664 = vmatprep.mubr.f32.mxu0 0.0
        %665 = vmatmul.mubr.f32.gmra.mrb[0].mxu0 %v439
        %v666 = vpop.f32.mrb[0].mxu0
        %v667 = vadd.f32 0.0, %v666
        %v668 = vpop.f32.mrb[0].mxu0
        %669 = vmatprep.mubr.f32.mxu0 0.0
        %670 = vmatmul.mubr.f32.gmra.mrb[0].mxu0 %v442
        %v671 = vpop.f32.mrb[0].mxu0
        %v672 = vadd.f32 0.0, %v671
        %v673 = vpop.f32.mrb[0].mxu0
        %674 = vmatprep.mubr.f32.mxu0 0.0
        %675 = vmatmul.mubr.f32.gmra.mrb[0].mxu0 %v445
        %v676 = vpop.f32.mrb[0].mxu0
        %v677 = vadd.f32 0.0, %v676
        %v678 = vpop.f32.mrb[0].mxu0
        %679 = vmatprep.mubr.f32.mxu0 0.0
        %680 = vmatmul.mubr.f32.gmra.mrb[0].mxu0 %v448
        %v681 = vpop.f32.mrb[0].mxu0
        %v682 = vadd.f32 0.0, %v681
        %v683 = vpop.f32.mrb[0].mxu0
        %684 = vmatprep.mubr.f32.mxu0 0.0
        %685 = vmatmul.mubr.f32.gmra.mrb[0].mxu0 %v451
        %v686 = vpop.f32.mrb[0].mxu0
        %v687 = vadd.f32 0.0, %v686
        %v688 = vpop.f32.mrb[0].mxu0
        %689 = vmatprep.mubr.f32.mxu0 0.0
        %690 = vmatmul.mubr.f32.gmra.mrb[0].mxu0 %v454
        %v691 = vpop.f32.mrb[0].mxu0
        %v692 = vadd.f32 0.0, %v691
        %v693 = vpop.f32.mrb[0].mxu0
        %694 = vmatprep.mubr.f32.mxu0 0.0
        %695 = vmatmul.mubr.f32.gmra.mrb[0].mxu0 %v457
        %v696 = vpop.f32.mrb[0].mxu0
        %v697 = vadd.f32 0.0, %v696
        %v698 = vpop.f32.mrb[0].mxu0
        %699 = vmatprep.mubr.f32.mxu0 0.0
        %700 = vmatmul.mubr.f32.gmra.mrb[0].mxu0 %v460
        %v701 = vpop.f32.mrb[0].mxu0
        %v702 = vadd.f32 0.0, %v701
        %v703 = vpop.f32.mrb[0].mxu0
        %704 = vmatprep.mubr.f32.mxu0 0.0
        %705 = vmatmul.mubr.f32.gmra.mrb[0].mxu0 %v463
        %v706 = vpop.f32.mrb[0].mxu0
        %v707 = vadd.f32 0.0, %v706
        %v708 = vpop.f32.mrb[0].mxu0
        %709 = vmatprep.mubr.f32.mxu0 0.0
        %710 = vmatmul.mubr.f32.gmra.mrb[0].mxu0 %v466
        %v711 = vpop.f32.mrb[0].mxu0
        %v712 = vadd.f32 0.0, %v711
        %v713 = vpop.f32.mrb[0].mxu0
        %714 = vdwg.mxu0
        %v716 = vsel %vm437, %v330, 0
        %v719 = vsel %vm437, %v331, 0
        %v722 = vsel %vm437, %v332, 0
        %v725 = vsel %vm437, %v333, 0
        %v728 = vsel %vm437, %v334, 0
        %v731 = vsel %vm437, %v335, 0
        %v734 = vsel %vm437, %v336, 0
        %v737 = vsel %vm437, %v337, 0
        %v740 = vsel %vm437, %v338, 0
        %v743 = vsel %vm437, %v339, 0
        %v745 = vsel %vm468, %v349, 0
        %v747 = vsel %vm468, %v350, 0
        %v749 = vsel %vm468, %v351, 0
        %751 = vmatprep.subr.mxu0 %v341
        %752 = vmatpush1.msra.mxu0 %v340
        %753 = vmatprep.subr.mxu0 %v344
        %754 = vmatpush1.msra.mxu0 %v343
        %755 = vmatprep.subr.mxu0 %v347
        %756 = vmatpush1.msra.mxu0 %v346
        %757 = vmatprep.subr.mxu0 %v747
        %758 = vmatpush1.msra.mxu0 %v745
        %759 = vmatprep.subr.mxu0 0.0
        %760 = vmatpush1.msra.mxu0 0.0
        %761 = vmatprep.subr.mxu0 0.0
        %762 = vmatpush1.msra.mxu0 0.0
        %763 = vmatprep.subr.mxu0 0.0
        %764 = vmatpush1.msra.mxu0 0.0
        %765 = vmatprep.subr.mxu0 0.0
        %766 = vmatpush1.msra.mxu0 0.0
        %767 = vmatprep.subr.mxu0 0.0
        %768 = vmatpush1.msra.mxu0 0.0
        %769 = vmatprep.subr.mxu0 0.0
        %770 = vmatpush1.msra.mxu0 0.0
        %771 = vmatprep.subr.mxu0 0.0
        %772 = vmatpush1.msra.mxu0 0.0
        %773 = vmatprep.subr.mxu0 0.0
        %774 = vmatpush1.msra.mxu0 0.0
        %775 = vmatprep.subr.mxu0 0.0
        %776 = vmatpush1.msra.mxu0 0.0
        %777 = vmatprep.subr.mxu0 0.0
        %778 = vmatpush1.msra.mxu0 0.0
        %779 = vmatprep.subr.mxu0 0.0
        %780 = vmatpush1.msra.mxu0 0.0
        %781 = vmatprep.subr.mxu0 0.0
        %782 = vmatpush1.msra.mxu0 0.0
        %783 = vmatprep.subr.mxu0 0.0
        %784 = vmatpush1.msra.mxu0 0.0
        %785 = vmatprep.subr.mxu0 0.0
        %786 = vmatpush1.msra.mxu0 0.0
        %787 = vmatprep.subr.mxu0 0.0
        %788 = vmatpush1.msra.mxu0 0.0
        %789 = vmatprep.subr.mxu0 0.0
        %790 = vmatpush1.msra.mxu0 0.0
        %791 = vmatprep.subr.mxu0 0.0
        %792 = vmatpush1.msra.mxu0 0.0
        %793 = vmatprep.subr.mxu0 0.0
        %794 = vmatpush1.msra.mxu0 0.0
        %795 = vmatprep.subr.mxu0 0.0
        %796 = vmatpush1.msra.mxu0 0.0
        %797 = vmatprep.subr.mxu0 0.0
        %798 = vmatpush1.msra.mxu0 0.0
        %799 = vmatprep.subr.mxu0 0.0
        %800 = vmatpush1.msra.mxu0 0.0
        %801 = vmatprep.subr.mxu0 0.0
        %802 = vmatpush1.msra.mxu0 0.0
        %803 = vmatprep.subr.mxu0 0.0
        %804 = vmatpush1.msra.mxu0 0.0
        %805 = vmatprep.subr.mxu0 0.0
        %806 = vmatpush1.msra.mxu0 0.0
        %807 = vmatprep.subr.mxu0 0.0
        %808 = vmatpush1.msra.mxu0 0.0
        %809 = vmatprep.subr.mxu0 0.0
        %810 = vmatpush1.msra.mxu0 0.0
        %811 = vmatprep.subr.mxu0 0.0
        %812 = vmatpush1.msra.mxu0 0.0
        %813 = vmatprep.subr.mxu0 0.0
        %814 = vmatpush1.msra.mxu0 0.0
        %815 = vmatprep.mubr.f32.mxu0 0.0
        %816 = vmatmul.mubr.f32.gmra.mrb[0].mxu0 %v716
        %v817 = vpop.f32.mrb[0].mxu0
        %v818 = vadd.f32 %v542, %v817
        %v819 = vpop.f32.mrb[0].mxu0
        %v820 = vadd.f32 %v544, %v819
        %821 = vmatprep.mubr.f32.mxu0 0.0
        %822 = vmatmul.mubr.f32.gmra.mrb[0].mxu0 %v719
        %v823 = vpop.f32.mrb[0].mxu0
        %v824 = vadd.f32 %v548, %v823
        %v825 = vpop.f32.mrb[0].mxu0
        %v826 = vadd.f32 %v550, %v825
        %827 = vmatprep.mubr.f32.mxu0 0.0
        %828 = vmatmul.mubr.f32.gmra.mrb[0].mxu0 %v722
        %v829 = vpop.f32.mrb[0].mxu0
        %v830 = vadd.f32 %v554, %v829
        %v831 = vpop.f32.mrb[0].mxu0
        %v832 = vadd.f32 %v556, %v831
        %833 = vmatprep.mubr.f32.mxu0 0.0
        %834 = vmatmul.mubr.f32.gmra.mrb[0].mxu0 %v725
        %v835 = vpop.f32.mrb[0].mxu0
        %v836 = vadd.f32 %v560, %v835
        %v837 = vpop.f32.mrb[0].mxu0
        %v838 = vadd.f32 %v562, %v837
        %839 = vmatprep.mubr.f32.mxu0 0.0
        %840 = vmatmul.mubr.f32.gmra.mrb[0].mxu0 %v728
        %v841 = vpop.f32.mrb[0].mxu0
        %v842 = vadd.f32 %v566, %v841
        %v843 = vpop.f32.mrb[0].mxu0
        %v844 = vadd.f32 %v568, %v843
        %845 = vmatprep.mubr.f32.mxu0 0.0
        %846 = vmatmul.mubr.f32.gmra.mrb[0].mxu0 %v731
        %v847 = vpop.f32.mrb[0].mxu0
        %v848 = vadd.f32 %v572, %v847
        %v849 = vpop.f32.mrb[0].mxu0
        %v850 = vadd.f32 %v574, %v849
        %851 = vmatprep.mubr.f32.mxu0 0.0
        %852 = vmatmul.mubr.f32.gmra.mrb[0].mxu0 %v734
        %v853 = vpop.f32.mrb[0].mxu0
        %v854 = vadd.f32 %v578, %v853
        %v855 = vpop.f32.mrb[0].mxu0
        %v856 = vadd.f32 %v580, %v855
        %857 = vmatprep.mubr.f32.mxu0 0.0
        %858 = vmatmul.mubr.f32.gmra.mrb[0].mxu0 %v737
        %v859 = vpop.f32.mrb[0].mxu0
        %v860 = vadd.f32 %v584, %v859
        %v861 = vpop.f32.mrb[0].mxu0
        %v862 = vadd.f32 %v586, %v861
        %863 = vmatprep.mubr.f32.mxu0 0.0
        %864 = vmatmul.mubr.f32.gmra.mrb[0].mxu0 %v740
        %v865 = vpop.f32.mrb[0].mxu0
        %v866 = vadd.f32 %v590, %v865
        %v867 = vpop.f32.mrb[0].mxu0
        %v868 = vadd.f32 %v592, %v867
        %869 = vmatprep.mubr.f32.mxu0 0.0
        %870 = vmatmul.mubr.f32.gmra.mrb[0].mxu0 %v743
        %v871 = vpop.f32.mrb[0].mxu0
        %v872 = vadd.f32 %v596, %v871
        %v873 = vpop.f32.mrb[0].mxu0
        %v874 = vadd.f32 %v598, %v873
        %875 = vdwg.mxu0
        %876 = vmatprep.subr.mxu0 0.0
        %877 = vmatpush1.msra.mxu0 %v342
        %878 = vmatprep.subr.mxu0 0.0
        %879 = vmatpush1.msra.mxu0 %v345
        %880 = vmatprep.subr.mxu0 0.0
        %881 = vmatpush1.msra.mxu0 %v348
        %882 = vmatprep.subr.mxu0 0.0
        %883 = vmatpush1.msra.mxu0 %v749
        %884 = vmatprep.subr.mxu0 0.0
        %885 = vmatpush1.msra.mxu0 0.0
        %886 = vmatprep.subr.mxu0 0.0
        %887 = vmatpush1.msra.mxu0 0.0
        %888 = vmatprep.subr.mxu0 0.0
        %889 = vmatpush1.msra.mxu0 0.0
        %890 = vmatprep.subr.mxu0 0.0
        %891 = vmatpush1.msra.mxu0 0.0
        %892 = vmatprep.subr.mxu0 0.0
        %893 = vmatpush1.msra.mxu0 0.0
        %894 = vmatprep.subr.mxu0 0.0
        %895 = vmatpush1.msra.mxu0 0.0
        %896 = vmatprep.subr.mxu0 0.0
        %897 = vmatpush1.msra.mxu0 0.0
        %898 = vmatprep.subr.mxu0 0.0
        %899 = vmatpush1.msra.mxu0 0.0
        %900 = vmatprep.subr.mxu0 0.0
        %901 = vmatpush1.msra.mxu0 0.0
        %902 = vmatprep.subr.mxu0 0.0
        %903 = vmatpush1.msra.mxu0 0.0
        %904 = vmatprep.subr.mxu0 0.0
        %905 = vmatpush1.msra.mxu0 0.0
        %906 = vmatprep.subr.mxu0 0.0
        %907 = vmatpush1.msra.mxu0 0.0
        %908 = vmatprep.subr.mxu0 0.0
        %909 = vmatpush1.msra.mxu0 0.0
        %910 = vmatprep.subr.mxu0 0.0
        %911 = vmatpush1.msra.mxu0 0.0
        %912 = vmatprep.subr.mxu0 0.0
        %913 = vmatpush1.msra.mxu0 0.0
        %914 = vmatprep.subr.mxu0 0.0
        %915 = vmatpush1.msra.mxu0 0.0
        %916 = vmatprep.subr.mxu0 0.0
        %917 = vmatpush1.msra.mxu0 0.0
        %918 = vmatprep.subr.mxu0 0.0
        %919 = vmatpush1.msra.mxu0 0.0
        %920 = vmatprep.subr.mxu0 0.0
        %921 = vmatpush1.msra.mxu0 0.0
        %922 = vmatprep.subr.mxu0 0.0
        %923 = vmatpush1.msra.mxu0 0.0
        %924 = vmatprep.subr.mxu0 0.0
        %925 = vmatpush1.msra.mxu0 0.0
        %926 = vmatprep.subr.mxu0 0.0
        %927 = vmatpush1.msra.mxu0 0.0
        %928 = vmatprep.subr.mxu0 0.0
        %929 = vmatpush1.msra.mxu0 0.0
        %930 = vmatprep.subr.mxu0 0.0
        %931 = vmatpush1.msra.mxu0 0.0
        %932 = vmatprep.subr.mxu0 0.0
        %933 = vmatpush1.msra.mxu0 0.0
        %934 = vmatprep.subr.mxu0 0.0
        %935 = vmatpush1.msra.mxu0 0.0
        %936 = vmatprep.subr.mxu0 0.0
        %937 = vmatpush1.msra.mxu0 0.0
        %938 = vmatprep.subr.mxu0 0.0
        %939 = vmatpush1.msra.mxu0 0.0
        %940 = vmatprep.mubr.f32.mxu0 0.0
        %941 = vmatmul.mubr.f32.gmra.mrb[0].mxu0 %v716
        %v942 = vpop.f32.mrb[0].mxu0
        %v943 = vadd.f32 %v667, %v942
        %v944 = vpop.f32.mrb[0].mxu0
        %945 = vmatprep.mubr.f32.mxu0 0.0
        %946 = vmatmul.mubr.f32.gmra.mrb[0].mxu0 %v719
        %v947 = vpop.f32.mrb[0].mxu0
        %v948 = vadd.f32 %v672, %v947
        %v949 = vpop.f32.mrb[0].mxu0
        %950 = vmatprep.mubr.f32.mxu0 0.0
        %951 = vmatmul.mubr.f32.gmra.mrb[0].mxu0 %v722
        %v952 = vpop.f32.mrb[0].mxu0
        %v953 = vadd.f32 %v677, %v952
        %v954 = vpop.f32.mrb[0].mxu0
        %955 = vmatprep.mubr.f32.mxu0 0.0
        %956 = vmatmul.mubr.f32.gmra.mrb[0].mxu0 %v725
        %v957 = vpop.f32.mrb[0].mxu0
        %v958 = vadd.f32 %v682, %v957
        %v959 = vpop.f32.mrb[0].mxu0
        %960 = vmatprep.mubr.f32.mxu0 0.0
        %961 = vmatmul.mubr.f32.gmra.mrb[0].mxu0 %v728
        %v962 = vpop.f32.mrb[0].mxu0
        %v963 = vadd.f32 %v687, %v962
        %v964 = vpop.f32.mrb[0].mxu0
        %965 = vmatprep.mubr.f32.mxu0 0.0
        %966 = vmatmul.mubr.f32.gmra.mrb[0].mxu0 %v731
        %v967 = vpop.f32.mrb[0].mxu0
        %v968 = vadd.f32 %v692, %v967
        %v969 = vpop.f32.mrb[0].mxu0
        %970 = vmatprep.mubr.f32.mxu0 0.0
        %971 = vmatmul.mubr.f32.gmra.mrb[0].mxu0 %v734
        %v972 = vpop.f32.mrb[0].mxu0
        %v973 = vadd.f32 %v697, %v972
        %v974 = vpop.f32.mrb[0].mxu0
        %975 = vmatprep.mubr.f32.mxu0 0.0
        %976 = vmatmul.mubr.f32.gmra.mrb[0].mxu0 %v737
        %v977 = vpop.f32.mrb[0].mxu0
        %v978 = vadd.f32 %v702, %v977
        %v979 = vpop.f32.mrb[0].mxu0
        %980 = vmatprep.mubr.f32.mxu0 0.0
        %981 = vmatmul.mubr.f32.gmra.mrb[0].mxu0 %v740
        %v982 = vpop.f32.mrb[0].mxu0
        %v983 = vadd.f32 %v707, %v982
        %v984 = vpop.f32.mrb[0].mxu0
        %985 = vmatprep.mubr.f32.mxu0 0.0
        %986 = vmatmul.mubr.f32.gmra.mrb[0].mxu0 %v743
        %v987 = vpop.f32.mrb[0].mxu0
        %v988 = vadd.f32 %v712, %v987
        %v989 = vpop.f32.mrb[0].mxu0
        %990 = vdwg.mxu0
        %s991 = scalar_lea.vmem %s1, 160
        %v992 = vld [vmem:[%s991] sm:$0xff]
        %v993 = vld [vmem:[%s991 + $0x8] sm:$0xff]
        %v994 = vld [vmem:[%s991 + $0x10] sm:$0xff]
        %v995 = vld [vmem:[%s991 + $0x18] sm:$0xff]
        %v996 = vld [vmem:[%s991 + $0x20] sm:$0xff]
        %v997 = vld [vmem:[%s991 + $0x28] sm:$0xff]
        %v998 = vld [vmem:[%s991 + $0x30] sm:$0xff]
        %v999 = vld [vmem:[%s991 + $0x38] sm:$0xff]
        %v1000 = vld [vmem:[%s991 + $0x40] sm:$0xff]
        %v1001 = vld [vmem:[%s991 + $0x48] sm:$0xff]
        %1002 = vrot.lane.b32.xlu0 %v340, 126
        %v1003 = vpop.permute.xlu0 %1002
        %1004 = vrot.lane.b32.xlu0 %v341, 126
        %v1005 = vpop.permute.xlu0 %1004
        %1006 = vrot.lane.b32.xlu0 %v342, 126
        %v1007 = vpop.permute.xlu0 %1006
        %1008 = vrot.lane.b32.xlu0 %v363, 126
        %v1009 = vpop.permute.xlu0 %1008
        %1010 = vrot.lane.b32.xlu0 %v343, 126
        %v1011 = vpop.permute.xlu0 %1010
        %1012 = vrot.lane.b32.xlu0 %v344, 126
        %v1013 = vpop.permute.xlu0 %1012
        %1014 = vrot.lane.b32.xlu0 %v345, 126
        %v1015 = vpop.permute.xlu0 %1014
        %1016 = vrot.lane.b32.xlu0 %v364, 126
        %v1017 = vpop.permute.xlu0 %1016
        %1018 = vrot.lane.b32.xlu0 %v346, 126
        %v1019 = vpop.permute.xlu0 %1018
        %1020 = vrot.lane.b32.xlu0 %v347, 126
        %v1021 = vpop.permute.xlu0 %1020
        %1022 = vrot.lane.b32.xlu0 %v348, 126
        %v1023 = vpop.permute.xlu0 %1022
        %1024 = vrot.lane.b32.xlu0 %v365, 126
        %v1025 = vpop.permute.xlu0 %1024
        %1026 = vrot.lane.b32.xlu0 %v349, 126
        %v1027 = vpop.permute.xlu0 %1026
        %1028 = vrot.lane.b32.xlu0 %v350, 126
        %v1029 = vpop.permute.xlu0 %1028
        %1030 = vrot.lane.b32.xlu0 %v351, 126
        %v1031 = vpop.permute.xlu0 %1030
        %1032 = vrot.lane.b32.xlu0 %v366, 126
        %v1033 = vpop.permute.xlu0 %1032
        %vm1034 = vcmask 1031168
        %v1035 = vsel %vm1034, %v1003, %v1005
        %v1036 = vsel %vm1034, %v1005, %v1007
        %v1037 = vsel %vm1034, %v1007, %v1009
        %v1038 = vsel %vm1034, %v1011, %v1013
        %v1039 = vsel %vm1034, %v1013, %v1015
        %v1040 = vsel %vm1034, %v1015, %v1017
        %v1041 = vsel %vm1034, %v1019, %v1021
        %v1042 = vsel %vm1034, %v1021, %v1023
        %v1043 = vsel %vm1034, %v1023, %v1025
        %v1044 = vsel %vm1034, %v1027, %v1029
        %v1045 = vsel %vm1034, %v1029, %v1031
        %v1046 = vsel %vm1034, %v1031, %v1033
        %v1057 = vsel %vm437, %v992, 0
        %v1060 = vsel %vm437, %v993, 0
        %v1063 = vsel %vm437, %v994, 0
        %v1066 = vsel %vm437, %v995, 0
        %v1069 = vsel %vm437, %v996, 0
        %v1072 = vsel %vm437, %v997, 0
        %v1075 = vsel %vm437, %v998, 0
        %v1078 = vsel %vm437, %v999, 0
        %v1081 = vsel %vm437, %v1000, 0
        %v1084 = vsel %vm437, %v1001, 0
        %v1086 = vsel %vm468, %v1044, 0
        %v1088 = vsel %vm468, %v1045, 0
        %v1090 = vsel %vm468, %v1046, 0
        %1092 = vmatprep.subr.mxu0 %v1036
        %1093 = vmatpush1.msra.mxu0 %v1035
        %1094 = vmatprep.subr.mxu0 %v1039
        %1095 = vmatpush1.msra.mxu0 %v1038
        %1096 = vmatprep.subr.mxu0 %v1042
        %1097 = vmatpush1.msra.mxu0 %v1041
        %1098 = vmatprep.subr.mxu0 %v1088
        %1099 = vmatpush1.msra.mxu0 %v1086
        %1100 = vmatprep.subr.mxu0 0.0
        %1101 = vmatpush1.msra.mxu0 0.0
        %1102 = vmatprep.subr.mxu0 0.0
        %1103 = vmatpush1.msra.mxu0 0.0
        %1104 = vmatprep.subr.mxu0 0.0
        %1105 = vmatpush1.msra.mxu0 0.0
        %1106 = vmatprep.subr.mxu0 0.0
        %1107 = vmatpush1.msra.mxu0 0.0
        %1108 = vmatprep.subr.mxu0 0.0
        %1109 = vmatpush1.msra.mxu0 0.0
        %1110 = vmatprep.subr.mxu0 0.0
        %1111 = vmatpush1.msra.mxu0 0.0
        %1112 = vmatprep.subr.mxu0 0.0
        %1113 = vmatpush1.msra.mxu0 0.0
        %1114 = vmatprep.subr.mxu0 0.0
        %1115 = vmatpush1.msra.mxu0 0.0
        %1116 = vmatprep.subr.mxu0 0.0
        %1117 = vmatpush1.msra.mxu0 0.0
        %1118 = vmatprep.subr.mxu0 0.0
        %1119 = vmatpush1.msra.mxu0 0.0
        %1120 = vmatprep.subr.mxu0 0.0
        %1121 = vmatpush1.msra.mxu0 0.0
        %1122 = vmatprep.subr.mxu0 0.0
        %1123 = vmatpush1.msra.mxu0 0.0
        %1124 = vmatprep.subr.mxu0 0.0
        %1125 = vmatpush1.msra.mxu0 0.0
        %1126 = vmatprep.subr.mxu0 0.0
        %1127 = vmatpush1.msra.mxu0 0.0
        %1128 = vmatprep.subr.mxu0 0.0
        %1129 = vmatpush1.msra.mxu0 0.0
        %1130 = vmatprep.subr.mxu0 0.0
        %1131 = vmatpush1.msra.mxu0 0.0
        %1132 = vmatprep.subr.mxu0 0.0
        %1133 = vmatpush1.msra.mxu0 0.0
        %1134 = vmatprep.subr.mxu0 0.0
        %1135 = vmatpush1.msra.mxu0 0.0
        %1136 = vmatprep.subr.mxu0 0.0
        %1137 = vmatpush1.msra.mxu0 0.0
        %1138 = vmatprep.subr.mxu0 0.0
        %1139 = vmatpush1.msra.mxu0 0.0
        %1140 = vmatprep.subr.mxu0 0.0
        %1141 = vmatpush1.msra.mxu0 0.0
        %1142 = vmatprep.subr.mxu0 0.0
        %1143 = vmatpush1.msra.mxu0 0.0
        %1144 = vmatprep.subr.mxu0 0.0
        %1145 = vmatpush1.msra.mxu0 0.0
        %1146 = vmatprep.subr.mxu0 0.0
        %1147 = vmatpush1.msra.mxu0 0.0
        %1148 = vmatprep.subr.mxu0 0.0
        %1149 = vmatpush1.msra.mxu0 0.0
        %1150 = vmatprep.subr.mxu0 0.0
        %1151 = vmatpush1.msra.mxu0 0.0
        %1152 = vmatprep.subr.mxu0 0.0
        %1153 = vmatpush1.msra.mxu0 0.0
        %1154 = vmatprep.subr.mxu0 0.0
        %1155 = vmatpush1.msra.mxu0 0.0
        %1156 = vmatprep.mubr.f32.mxu0 0.0
        %1157 = vmatmul.mubr.f32.gmra.mrb[0].mxu0 %v1057
        %v1158 = vpop.f32.mrb[0].mxu0
        %v1159 = vadd.f32 0.0, %v1158
        %v1160 = vpop.f32.mrb[0].mxu0
        %v1161 = vadd.f32 0.0, %v1160
        %1162 = vmatprep.mubr.f32.mxu0 0.0
        %1163 = vmatmul.mubr.f32.gmra.mrb[0].mxu0 %v1060
        %v1164 = vpop.f32.mrb[0].mxu0
        %v1165 = vadd.f32 0.0, %v1164
        %v1166 = vpop.f32.mrb[0].mxu0
        %v1167 = vadd.f32 0.0, %v1166
        %1168 = vmatprep.mubr.f32.mxu0 0.0
        %1169 = vmatmul.mubr.f32.gmra.mrb[0].mxu0 %v1063
        %v1170 = vpop.f32.mrb[0].mxu0
        %v1171 = vadd.f32 0.0, %v1170
        %v1172 = vpop.f32.mrb[0].mxu0
        %v1173 = vadd.f32 0.0, %v1172
        %1174 = vmatprep.mubr.f32.mxu0 0.0
        %1175 = vmatmul.mubr.f32.gmra.mrb[0].mxu0 %v1066
        %v1176 = vpop.f32.mrb[0].mxu0
        %v1177 = vadd.f32 0.0, %v1176
        %v1178 = vpop.f32.mrb[0].mxu0
        %v1179 = vadd.f32 0.0, %v1178
        %1180 = vmatprep.mubr.f32.mxu0 0.0
        %1181 = vmatmul.mubr.f32.gmra.mrb[0].mxu0 %v1069
        %v1182 = vpop.f32.mrb[0].mxu0
        %v1183 = vadd.f32 0.0, %v1182
        %v1184 = vpop.f32.mrb[0].mxu0
        %v1185 = vadd.f32 0.0, %v1184
        %1186 = vmatprep.mubr.f32.mxu0 0.0
        %1187 = vmatmul.mubr.f32.gmra.mrb[0].mxu0 %v1072
        %v1188 = vpop.f32.mrb[0].mxu0
        %v1189 = vadd.f32 0.0, %v1188
        %v1190 = vpop.f32.mrb[0].mxu0
        %v1191 = vadd.f32 0.0, %v1190
        %1192 = vmatprep.mubr.f32.mxu0 0.0
        %1193 = vmatmul.mubr.f32.gmra.mrb[0].mxu0 %v1075
        %v1194 = vpop.f32.mrb[0].mxu0
        %v1195 = vadd.f32 0.0, %v1194
        %v1196 = vpop.f32.mrb[0].mxu0
        %v1197 = vadd.f32 0.0, %v1196
        %1198 = vmatprep.mubr.f32.mxu0 0.0
        %1199 = vmatmul.mubr.f32.gmra.mrb[0].mxu0 %v1078
        %v1200 = vpop.f32.mrb[0].mxu0
        %v1201 = vadd.f32 0.0, %v1200
        %v1202 = vpop.f32.mrb[0].mxu0
        %v1203 = vadd.f32 0.0, %v1202
        %1204 = vmatprep.mubr.f32.mxu0 0.0
        %1205 = vmatmul.mubr.f32.gmra.mrb[0].mxu0 %v1081
        %v1206 = vpop.f32.mrb[0].mxu0
        %v1207 = vadd.f32 0.0, %v1206
        %v1208 = vpop.f32.mrb[0].mxu0
        %v1209 = vadd.f32 0.0, %v1208
        %1210 = vmatprep.mubr.f32.mxu0 0.0
        %1211 = vmatmul.mubr.f32.gmra.mrb[0].mxu0 %v1084
        %v1212 = vpop.f32.mrb[0].mxu0
        %v1213 = vadd.f32 0.0, %v1212
        %v1214 = vpop.f32.mrb[0].mxu0
        %v1215 = vadd.f32 0.0, %v1214
        %1216 = vdwg.mxu0
        %1217 = vmatprep.subr.mxu0 0.0
        %1218 = vmatpush1.msra.mxu0 %v1037
        %1219 = vmatprep.subr.mxu0 0.0
        %1220 = vmatpush1.msra.mxu0 %v1040
        %1221 = vmatprep.subr.mxu0 0.0
        %1222 = vmatpush1.msra.mxu0 %v1043
        %1223 = vmatprep.subr.mxu0 0.0
        %1224 = vmatpush1.msra.mxu0 %v1090
        %1225 = vmatprep.subr.mxu0 0.0
        %1226 = vmatpush1.msra.mxu0 0.0
        %1227 = vmatprep.subr.mxu0 0.0
        %1228 = vmatpush1.msra.mxu0 0.0
        %1229 = vmatprep.subr.mxu0 0.0
        %1230 = vmatpush1.msra.mxu0 0.0
        %1231 = vmatprep.subr.mxu0 0.0
        %1232 = vmatpush1.msra.mxu0 0.0
        %1233 = vmatprep.subr.mxu0 0.0
        %1234 = vmatpush1.msra.mxu0 0.0
        %1235 = vmatprep.subr.mxu0 0.0
        %1236 = vmatpush1.msra.mxu0 0.0
        %1237 = vmatprep.subr.mxu0 0.0
        %1238 = vmatpush1.msra.mxu0 0.0
        %1239 = vmatprep.subr.mxu0 0.0
        %1240 = vmatpush1.msra.mxu0 0.0
        %1241 = vmatprep.subr.mxu0 0.0
        %1242 = vmatpush1.msra.mxu0 0.0
        %1243 = vmatprep.subr.mxu0 0.0
        %1244 = vmatpush1.msra.mxu0 0.0
        %1245 = vmatprep.subr.mxu0 0.0
        %1246 = vmatpush1.msra.mxu0 0.0
        %1247 = vmatprep.subr.mxu0 0.0
        %1248 = vmatpush1.msra.mxu0 0.0
        %1249 = vmatprep.subr.mxu0 0.0
        %1250 = vmatpush1.msra.mxu0 0.0
        %1251 = vmatprep.subr.mxu0 0.0
        %1252 = vmatpush1.msra.mxu0 0.0
        %1253 = vmatprep.subr.mxu0 0.0
        %1254 = vmatpush1.msra.mxu0 0.0
        %1255 = vmatprep.subr.mxu0 0.0
        %1256 = vmatpush1.msra.mxu0 0.0
        %1257 = vmatprep.subr.mxu0 0.0
        %1258 = vmatpush1.msra.mxu0 0.0
        %1259 = vmatprep.subr.mxu0 0.0
        %1260 = vmatpush1.msra.mxu0 0.0
        %1261 = vmatprep.subr.mxu0 0.0
        %1262 = vmatpush1.msra.mxu0 0.0
        %1263 = vmatprep.subr.mxu0 0.0
        %1264 = vmatpush1.msra.mxu0 0.0
        %1265 = vmatprep.subr.mxu0 0.0
        %1266 = vmatpush1.msra.mxu0 0.0
        %1267 = vmatprep.subr.mxu0 0.0
        %1268 = vmatpush1.msra.mxu0 0.0
        %1269 = vmatprep.subr.mxu0 0.0
        %1270 = vmatpush1.msra.mxu0 0.0
        %1271 = vmatprep.subr.mxu0 0.0
        %1272 = vmatpush1.msra.mxu0 0.0
        %1273 = vmatprep.subr.mxu0 0.0
        %1274 = vmatpush1.msra.mxu0 0.0
        %1275 = vmatprep.subr.mxu0 0.0
        %1276 = vmatpush1.msra.mxu0 0.0
        %1277 = vmatprep.subr.mxu0 0.0
        %1278 = vmatpush1.msra.mxu0 0.0
        %1279 = vmatprep.subr.mxu0 0.0
        %1280 = vmatpush1.msra.mxu0 0.0
        %1281 = vmatprep.mubr.f32.mxu0 0.0
        %1282 = vmatmul.mubr.f32.gmra.mrb[0].mxu0 %v1057
        %v1283 = vpop.f32.mrb[0].mxu0
        %v1284 = vadd.f32 0.0, %v1283
        %v1285 = vpop.f32.mrb[0].mxu0
        %1286 = vmatprep.mubr.f32.mxu0 0.0
        %1287 = vmatmul.mubr.f32.gmra.mrb[0].mxu0 %v1060
        %v1288 = vpop.f32.mrb[0].mxu0
        %v1289 = vadd.f32 0.0, %v1288
        %v1290 = vpop.f32.mrb[0].mxu0
        %1291 = vmatprep.mubr.f32.mxu0 0.0
        %1292 = vmatmul.mubr.f32.gmra.mrb[0].mxu0 %v1063
        %v1293 = vpop.f32.mrb[0].mxu0
        %v1294 = vadd.f32 0.0, %v1293
        %v1295 = vpop.f32.mrb[0].mxu0
        %1296 = vmatprep.mubr.f32.mxu0 0.0
        %1297 = vmatmul.mubr.f32.gmra.mrb[0].mxu0 %v1066
        %v1298 = vpop.f32.mrb[0].mxu0
        %v1299 = vadd.f32 0.0, %v1298
        %v1300 = vpop.f32.mrb[0].mxu0
        %1301 = vmatprep.mubr.f32.mxu0 0.0
        %1302 = vmatmul.mubr.f32.gmra.mrb[0].mxu0 %v1069
        %v1303 = vpop.f32.mrb[0].mxu0
        %v1304 = vadd.f32 0.0, %v1303
        %v1305 = vpop.f32.mrb[0].mxu0
        %1306 = vmatprep.mubr.f32.mxu0 0.0
        %1307 = vmatmul.mubr.f32.gmra.mrb[0].mxu0 %v1072
        %v1308 = vpop.f32.mrb[0].mxu0
        %v1309 = vadd.f32 0.0, %v1308
        %v1310 = vpop.f32.mrb[0].mxu0
        %1311 = vmatprep.mubr.f32.mxu0 0.0
        %1312 = vmatmul.mubr.f32.gmra.mrb[0].mxu0 %v1075
        %v1313 = vpop.f32.mrb[0].mxu0
        %v1314 = vadd.f32 0.0, %v1313
        %v1315 = vpop.f32.mrb[0].mxu0
        %1316 = vmatprep.mubr.f32.mxu0 0.0
        %1317 = vmatmul.mubr.f32.gmra.mrb[0].mxu0 %v1078
        %v1318 = vpop.f32.mrb[0].mxu0
        %v1319 = vadd.f32 0.0, %v1318
        %v1320 = vpop.f32.mrb[0].mxu0
        %1321 = vmatprep.mubr.f32.mxu0 0.0
        %1322 = vmatmul.mubr.f32.gmra.mrb[0].mxu0 %v1081
        %v1323 = vpop.f32.mrb[0].mxu0
        %v1324 = vadd.f32 0.0, %v1323
        %v1325 = vpop.f32.mrb[0].mxu0
        %1326 = vmatprep.mubr.f32.mxu0 0.0
        %1327 = vmatmul.mubr.f32.gmra.mrb[0].mxu0 %v1084
        %v1328 = vpop.f32.mrb[0].mxu0
        %v1329 = vadd.f32 0.0, %v1328
        %v1330 = vpop.f32.mrb[0].mxu0
        %1331 = vdwg.mxu0
        %v1332 = vadd.f32 %v818, %v1159
        %v1333 = vadd.f32 %v820, %v1161
        %v1334 = vadd.f32 %v943, %v1284
        %v1335 = vadd.f32 %v824, %v1165
        %v1336 = vadd.f32 %v826, %v1167
        %v1337 = vadd.f32 %v948, %v1289
        %v1338 = vadd.f32 %v830, %v1171
        %v1339 = vadd.f32 %v832, %v1173
        %v1340 = vadd.f32 %v953, %v1294
        %v1341 = vadd.f32 %v836, %v1177
        %v1342 = vadd.f32 %v838, %v1179
        %v1343 = vadd.f32 %v958, %v1299
        %v1344 = vadd.f32 %v842, %v1183
        %v1345 = vadd.f32 %v844, %v1185
        %v1346 = vadd.f32 %v963, %v1304
        %v1347 = vadd.f32 %v848, %v1189
        %v1348 = vadd.f32 %v850, %v1191
        %v1349 = vadd.f32 %v968, %v1309
        %v1350 = vadd.f32 %v854, %v1195
        %v1351 = vadd.f32 %v856, %v1197
        %v1352 = vadd.f32 %v973, %v1314
        %v1353 = vadd.f32 %v860, %v1201
        %v1354 = vadd.f32 %v862, %v1203
        %v1355 = vadd.f32 %v978, %v1319
        %v1356 = vadd.f32 %v866, %v1207
        %v1357 = vadd.f32 %v868, %v1209
        %v1358 = vadd.f32 %v983, %v1324
        %v1359 = vadd.f32 %v872, %v1213
        %v1360 = vadd.f32 %v874, %v1215
        %v1361 = vadd.f32 %v988, %v1329
        %s1362 = scalar_lea.vmem %s1, 240
        %v1363 = vld [vmem:[%s1362] sm:$0xff]
        %v1364 = vld [vmem:[%s1362 + $0x8] sm:$0xff]
        %v1365 = vld [vmem:[%s1362 + $0x10] sm:$0xff]
        %v1366 = vld [vmem:[%s1362 + $0x18] sm:$0xff]
        %v1367 = vld [vmem:[%s1362 + $0x20] sm:$0xff]
        %v1368 = vld [vmem:[%s1362 + $0x28] sm:$0xff]
        %v1369 = vld [vmem:[%s1362 + $0x30] sm:$0xff]
        %v1370 = vld [vmem:[%s1362 + $0x38] sm:$0xff]
        %v1371 = vld [vmem:[%s1362 + $0x40] sm:$0xff]
        %v1372 = vld [vmem:[%s1362 + $0x48] sm:$0xff]
        %1373 = vrot.lane.b32.xlu0 %v340, 125
        %v1374 = vpop.permute.xlu0 %1373
        %1375 = vrot.lane.b32.xlu0 %v341, 125
        %v1376 = vpop.permute.xlu0 %1375
        %1377 = vrot.lane.b32.xlu0 %v342, 125
        %v1378 = vpop.permute.xlu0 %1377
        %1379 = vrot.lane.b32.xlu0 %v363, 125
        %v1380 = vpop.permute.xlu0 %1379
        %1381 = vrot.lane.b32.xlu0 %v343, 125
        %v1382 = vpop.permute.xlu0 %1381
        %1383 = vrot.lane.b32.xlu0 %v344, 125
        %v1384 = vpop.permute.xlu0 %1383
        %1385 = vrot.lane.b32.xlu0 %v345, 125
        %v1386 = vpop.permute.xlu0 %1385
        %1387 = vrot.lane.b32.xlu0 %v364, 125
        %v1388 = vpop.permute.xlu0 %1387
        %1389 = vrot.lane.b32.xlu0 %v346, 125
        %v1390 = vpop.permute.xlu0 %1389
        %1391 = vrot.lane.b32.xlu0 %v347, 125
        %v1392 = vpop.permute.xlu0 %1391
        %1393 = vrot.lane.b32.xlu0 %v348, 125
        %v1394 = vpop.permute.xlu0 %1393
        %1395 = vrot.lane.b32.xlu0 %v365, 125
        %v1396 = vpop.permute.xlu0 %1395
        %1397 = vrot.lane.b32.xlu0 %v349, 125
        %v1398 = vpop.permute.xlu0 %1397
        %1399 = vrot.lane.b32.xlu0 %v350, 125
        %v1400 = vpop.permute.xlu0 %1399
        %1401 = vrot.lane.b32.xlu0 %v351, 125
        %v1402 = vpop.permute.xlu0 %1401
        %1403 = vrot.lane.b32.xlu0 %v366, 125
        %v1404 = vpop.permute.xlu0 %1403
        %vm1405 = vcmask 1022976
        %v1406 = vsel %vm1405, %v1374, %v1376
        %v1407 = vsel %vm1405, %v1376, %v1378
        %v1408 = vsel %vm1405, %v1378, %v1380
        %v1409 = vsel %vm1405, %v1382, %v1384
        %v1410 = vsel %vm1405, %v1384, %v1386
        %v1411 = vsel %vm1405, %v1386, %v1388
        %v1412 = vsel %vm1405, %v1390, %v1392
        %v1413 = vsel %vm1405, %v1392, %v1394
        %v1414 = vsel %vm1405, %v1394, %v1396
        %v1415 = vsel %vm1405, %v1398, %v1400
        %v1416 = vsel %vm1405, %v1400, %v1402
        %v1417 = vsel %vm1405, %v1402, %v1404
        %v1428 = vsel %vm437, %v1363, 0
        %v1431 = vsel %vm437, %v1364, 0
        %v1434 = vsel %vm437, %v1365, 0
        %v1437 = vsel %vm437, %v1366, 0
        %v1440 = vsel %vm437, %v1367, 0
        %v1443 = vsel %vm437, %v1368, 0
        %v1446 = vsel %vm437, %v1369, 0
        %v1449 = vsel %vm437, %v1370, 0
        %v1452 = vsel %vm437, %v1371, 0
        %v1455 = vsel %vm437, %v1372, 0
        %v1457 = vsel %vm468, %v1415, 0
        %v1459 = vsel %vm468, %v1416, 0
        %v1461 = vsel %vm468, %v1417, 0
        %1463 = vmatprep.subr.mxu0 %v1407
        %1464 = vmatpush1.msra.mxu0 %v1406
        %1465 = vmatprep.subr.mxu0 %v1410
        %1466 = vmatpush1.msra.mxu0 %v1409
        %1467 = vmatprep.subr.mxu0 %v1413
        %1468 = vmatpush1.msra.mxu0 %v1412
        %1469 = vmatprep.subr.mxu0 %v1459
        %1470 = vmatpush1.msra.mxu0 %v1457
        %1471 = vmatprep.subr.mxu0 0.0
        %1472 = vmatpush1.msra.mxu0 0.0
        %1473 = vmatprep.subr.mxu0 0.0
        %1474 = vmatpush1.msra.mxu0 0.0
        %1475 = vmatprep.subr.mxu0 0.0
        %1476 = vmatpush1.msra.mxu0 0.0
        %1477 = vmatprep.subr.mxu0 0.0
        %1478 = vmatpush1.msra.mxu0 0.0
        %1479 = vmatprep.subr.mxu0 0.0
        %1480 = vmatpush1.msra.mxu0 0.0
        %1481 = vmatprep.subr.mxu0 0.0
        %1482 = vmatpush1.msra.mxu0 0.0
        %1483 = vmatprep.subr.mxu0 0.0
        %1484 = vmatpush1.msra.mxu0 0.0
        %1485 = vmatprep.subr.mxu0 0.0
        %1486 = vmatpush1.msra.mxu0 0.0
        %1487 = vmatprep.subr.mxu0 0.0
        %1488 = vmatpush1.msra.mxu0 0.0
        %1489 = vmatprep.subr.mxu0 0.0
        %1490 = vmatpush1.msra.mxu0 0.0
        %1491 = vmatprep.subr.mxu0 0.0
        %1492 = vmatpush1.msra.mxu0 0.0
        %1493 = vmatprep.subr.mxu0 0.0
        %1494 = vmatpush1.msra.mxu0 0.0
        %1495 = vmatprep.subr.mxu0 0.0
        %1496 = vmatpush1.msra.mxu0 0.0
        %1497 = vmatprep.subr.mxu0 0.0
        %1498 = vmatpush1.msra.mxu0 0.0
        %1499 = vmatprep.subr.mxu0 0.0
        %1500 = vmatpush1.msra.mxu0 0.0
        %1501 = vmatprep.subr.mxu0 0.0
        %1502 = vmatpush1.msra.mxu0 0.0
        %1503 = vmatprep.subr.mxu0 0.0
        %1504 = vmatpush1.msra.mxu0 0.0
        %1505 = vmatprep.subr.mxu0 0.0
        %1506 = vmatpush1.msra.mxu0 0.0
        %1507 = vmatprep.subr.mxu0 0.0
        %1508 = vmatpush1.msra.mxu0 0.0
        %1509 = vmatprep.subr.mxu0 0.0
        %1510 = vmatpush1.msra.mxu0 0.0
        %1511 = vmatprep.subr.mxu0 0.0
        %1512 = vmatpush1.msra.mxu0 0.0
        %1513 = vmatprep.subr.mxu0 0.0
        %1514 = vmatpush1.msra.mxu0 0.0
        %1515 = vmatprep.subr.mxu0 0.0
        %1516 = vmatpush1.msra.mxu0 0.0
        %1517 = vmatprep.subr.mxu0 0.0
        %1518 = vmatpush1.msra.mxu0 0.0
        %1519 = vmatprep.subr.mxu0 0.0
        %1520 = vmatpush1.msra.mxu0 0.0
        %1521 = vmatprep.subr.mxu0 0.0
        %1522 = vmatpush1.msra.mxu0 0.0
        %1523 = vmatprep.subr.mxu0 0.0
        %1524 = vmatpush1.msra.mxu0 0.0
        %1525 = vmatprep.subr.mxu0 0.0
        %1526 = vmatpush1.msra.mxu0 0.0
        %1527 = vmatprep.mubr.f32.mxu0 0.0
        %1528 = vmatmul.mubr.f32.gmra.mrb[0].mxu0 %v1428
        %v1529 = vpop.f32.mrb[0].mxu0
        %v1530 = vadd.f32 0.0, %v1529
        %v1531 = vpop.f32.mrb[0].mxu0
        %v1532 = vadd.f32 0.0, %v1531
        %1533 = vmatprep.mubr.f32.mxu0 0.0
        %1534 = vmatmul.mubr.f32.gmra.mrb[0].mxu0 %v1431
        %v1535 = vpop.f32.mrb[0].mxu0
        %v1536 = vadd.f32 0.0, %v1535
        %v1537 = vpop.f32.mrb[0].mxu0
        %v1538 = vadd.f32 0.0, %v1537
        %1539 = vmatprep.mubr.f32.mxu0 0.0
        %1540 = vmatmul.mubr.f32.gmra.mrb[0].mxu0 %v1434
        %v1541 = vpop.f32.mrb[0].mxu0
        %v1542 = vadd.f32 0.0, %v1541
        %v1543 = vpop.f32.mrb[0].mxu0
        %v1544 = vadd.f32 0.0, %v1543
        %1545 = vmatprep.mubr.f32.mxu0 0.0
        %1546 = vmatmul.mubr.f32.gmra.mrb[0].mxu0 %v1437
        %v1547 = vpop.f32.mrb[0].mxu0
        %v1548 = vadd.f32 0.0, %v1547
        %v1549 = vpop.f32.mrb[0].mxu0
        %v1550 = vadd.f32 0.0, %v1549
        %1551 = vmatprep.mubr.f32.mxu0 0.0
        %1552 = vmatmul.mubr.f32.gmra.mrb[0].mxu0 %v1440
        %v1553 = vpop.f32.mrb[0].mxu0
        %v1554 = vadd.f32 0.0, %v1553
        %v1555 = vpop.f32.mrb[0].mxu0
        %v1556 = vadd.f32 0.0, %v1555
        %1557 = vmatprep.mubr.f32.mxu0 0.0
        %1558 = vmatmul.mubr.f32.gmra.mrb[0].mxu0 %v1443
        %v1559 = vpop.f32.mrb[0].mxu0
        %v1560 = vadd.f32 0.0, %v1559
        %v1561 = vpop.f32.mrb[0].mxu0
        %v1562 = vadd.f32 0.0, %v1561
        %1563 = vmatprep.mubr.f32.mxu0 0.0
        %1564 = vmatmul.mubr.f32.gmra.mrb[0].mxu0 %v1446
        %v1565 = vpop.f32.mrb[0].mxu0
        %v1566 = vadd.f32 0.0, %v1565
        %v1567 = vpop.f32.mrb[0].mxu0
        %v1568 = vadd.f32 0.0, %v1567
        %1569 = vmatprep.mubr.f32.mxu0 0.0
        %1570 = vmatmul.mubr.f32.gmra.mrb[0].mxu0 %v1449
        %v1571 = vpop.f32.mrb[0].mxu0
        %v1572 = vadd.f32 0.0, %v1571
        %v1573 = vpop.f32.mrb[0].mxu0
        %v1574 = vadd.f32 0.0, %v1573
        %1575 = vmatprep.mubr.f32.mxu0 0.0
        %1576 = vmatmul.mubr.f32.gmra.mrb[0].mxu0 %v1452
        %v1577 = vpop.f32.mrb[0].mxu0
        %v1578 = vadd.f32 0.0, %v1577
        %v1579 = vpop.f32.mrb[0].mxu0
        %v1580 = vadd.f32 0.0, %v1579
        %1581 = vmatprep.mubr.f32.mxu0 0.0
        %1582 = vmatmul.mubr.f32.gmra.mrb[0].mxu0 %v1455
        %v1583 = vpop.f32.mrb[0].mxu0
        %v1584 = vadd.f32 0.0, %v1583
        %v1585 = vpop.f32.mrb[0].mxu0
        %v1586 = vadd.f32 0.0, %v1585
        %1587 = vdwg.mxu0
        %1588 = vmatprep.subr.mxu0 0.0
        %1589 = vmatpush1.msra.mxu0 %v1408
        %1590 = vmatprep.subr.mxu0 0.0
        %1591 = vmatpush1.msra.mxu0 %v1411
        %1592 = vmatprep.subr.mxu0 0.0
        %1593 = vmatpush1.msra.mxu0 %v1414
        %1594 = vmatprep.subr.mxu0 0.0
        %1595 = vmatpush1.msra.mxu0 %v1461
        %1596 = vmatprep.subr.mxu0 0.0
        %1597 = vmatpush1.msra.mxu0 0.0
        %1598 = vmatprep.subr.mxu0 0.0
        %1599 = vmatpush1.msra.mxu0 0.0
        %1600 = vmatprep.subr.mxu0 0.0
        %1601 = vmatpush1.msra.mxu0 0.0
        %1602 = vmatprep.subr.mxu0 0.0
        %1603 = vmatpush1.msra.mxu0 0.0
        %1604 = vmatprep.subr.mxu0 0.0
        %1605 = vmatpush1.msra.mxu0 0.0
        %1606 = vmatprep.subr.mxu0 0.0
        %1607 = vmatpush1.msra.mxu0 0.0
        %1608 = vmatprep.subr.mxu0 0.0
        %1609 = vmatpush1.msra.mxu0 0.0
        %1610 = vmatprep.subr.mxu0 0.0
        %1611 = vmatpush1.msra.mxu0 0.0
        %1612 = vmatprep.subr.mxu0 0.0
        %1613 = vmatpush1.msra.mxu0 0.0
        %1614 = vmatprep.subr.mxu0 0.0
        %1615 = vmatpush1.msra.mxu0 0.0
        %1616 = vmatprep.subr.mxu0 0.0
        %1617 = vmatpush1.msra.mxu0 0.0
        %1618 = vmatprep.subr.mxu0 0.0
        %1619 = vmatpush1.msra.mxu0 0.0
        %1620 = vmatprep.subr.mxu0 0.0
        %1621 = vmatpush1.msra.mxu0 0.0
        %1622 = vmatprep.subr.mxu0 0.0
        %1623 = vmatpush1.msra.mxu0 0.0
        %1624 = vmatprep.subr.mxu0 0.0
        %1625 = vmatpush1.msra.mxu0 0.0
        %1626 = vmatprep.subr.mxu0 0.0
        %1627 = vmatpush1.msra.mxu0 0.0
        %1628 = vmatprep.subr.mxu0 0.0
        %1629 = vmatpush1.msra.mxu0 0.0
        %1630 = vmatprep.subr.mxu0 0.0
        %1631 = vmatpush1.msra.mxu0 0.0
        %1632 = vmatprep.subr.mxu0 0.0
        %1633 = vmatpush1.msra.mxu0 0.0
        %1634 = vmatprep.subr.mxu0 0.0
        %1635 = vmatpush1.msra.mxu0 0.0
        %1636 = vmatprep.subr.mxu0 0.0
        %1637 = vmatpush1.msra.mxu0 0.0
        %1638 = vmatprep.subr.mxu0 0.0
        %1639 = vmatpush1.msra.mxu0 0.0
        %1640 = vmatprep.subr.mxu0 0.0
        %1641 = vmatpush1.msra.mxu0 0.0
        %1642 = vmatprep.subr.mxu0 0.0
        %1643 = vmatpush1.msra.mxu0 0.0
        %1644 = vmatprep.subr.mxu0 0.0
        %1645 = vmatpush1.msra.mxu0 0.0
        %1646 = vmatprep.subr.mxu0 0.0
        %1647 = vmatpush1.msra.mxu0 0.0
        %1648 = vmatprep.subr.mxu0 0.0
        %1649 = vmatpush1.msra.mxu0 0.0
        %1650 = vmatprep.subr.mxu0 0.0
        %1651 = vmatpush1.msra.mxu0 0.0
        %1652 = vmatprep.mubr.f32.mxu0 0.0
        %1653 = vmatmul.mubr.f32.gmra.mrb[0].mxu0 %v1428
        %v1654 = vpop.f32.mrb[0].mxu0
        %v1655 = vadd.f32 0.0, %v1654
        %v1656 = vpop.f32.mrb[0].mxu0
        %1657 = vmatprep.mubr.f32.mxu0 0.0
        %1658 = vmatmul.mubr.f32.gmra.mrb[0].mxu0 %v1431
        %v1659 = vpop.f32.mrb[0].mxu0
        %v1660 = vadd.f32 0.0, %v1659
        %v1661 = vpop.f32.mrb[0].mxu0
        %1662 = vmatprep.mubr.f32.mxu0 0.0
        %1663 = vmatmul.mubr.f32.gmra.mrb[0].mxu0 %v1434
        %v1664 = vpop.f32.mrb[0].mxu0
        %v1665 = vadd.f32 0.0, %v1664
        %v1666 = vpop.f32.mrb[0].mxu0
        %1667 = vmatprep.mubr.f32.mxu0 0.0
        %1668 = vmatmul.mubr.f32.gmra.mrb[0].mxu0 %v1437
        %v1669 = vpop.f32.mrb[0].mxu0
        %v1670 = vadd.f32 0.0, %v1669
        %v1671 = vpop.f32.mrb[0].mxu0
        %1672 = vmatprep.mubr.f32.mxu0 0.0
        %1673 = vmatmul.mubr.f32.gmra.mrb[0].mxu0 %v1440
        %v1674 = vpop.f32.mrb[0].mxu0
        %v1675 = vadd.f32 0.0, %v1674
        %v1676 = vpop.f32.mrb[0].mxu0
        %1677 = vmatprep.mubr.f32.mxu0 0.0
        %1678 = vmatmul.mubr.f32.gmra.mrb[0].mxu0 %v1443
        %v1679 = vpop.f32.mrb[0].mxu0
        %v1680 = vadd.f32 0.0, %v1679
        %v1681 = vpop.f32.mrb[0].mxu0
        %1682 = vmatprep.mubr.f32.mxu0 0.0
        %1683 = vmatmul.mubr.f32.gmra.mrb[0].mxu0 %v1446
        %v1684 = vpop.f32.mrb[0].mxu0
        %v1685 = vadd.f32 0.0, %v1684
        %v1686 = vpop.f32.mrb[0].mxu0
        %1687 = vmatprep.mubr.f32.mxu0 0.0
        %1688 = vmatmul.mubr.f32.gmra.mrb[0].mxu0 %v1449
        %v1689 = vpop.f32.mrb[0].mxu0
        %v1690 = vadd.f32 0.0, %v1689
        %v1691 = vpop.f32.mrb[0].mxu0
        %1692 = vmatprep.mubr.f32.mxu0 0.0
        %1693 = vmatmul.mubr.f32.gmra.mrb[0].mxu0 %v1452
        %v1694 = vpop.f32.mrb[0].mxu0
        %v1695 = vadd.f32 0.0, %v1694
        %v1696 = vpop.f32.mrb[0].mxu0
        %1697 = vmatprep.mubr.f32.mxu0 0.0
        %1698 = vmatmul.mubr.f32.gmra.mrb[0].mxu0 %v1455
        %v1699 = vpop.f32.mrb[0].mxu0
        %v1700 = vadd.f32 0.0, %v1699
        %v1701 = vpop.f32.mrb[0].mxu0
        %1702 = vdwg.mxu0
        %v1703 = vadd.f32 %v1332, %v1530
        %v1704 = vadd.f32 %v1333, %v1532
        %v1705 = vadd.f32 %v1334, %v1655
        %v1706 = vadd.f32 %v1335, %v1536
        %v1707 = vadd.f32 %v1336, %v1538
        %v1708 = vadd.f32 %v1337, %v1660
        %v1709 = vadd.f32 %v1338, %v1542
        %v1710 = vadd.f32 %v1339, %v1544
        %v1711 = vadd.f32 %v1340, %v1665
        %v1712 = vadd.f32 %v1341, %v1548
        %v1713 = vadd.f32 %v1342, %v1550
        %v1714 = vadd.f32 %v1343, %v1670
        %v1715 = vadd.f32 %v1344, %v1554
        %v1716 = vadd.f32 %v1345, %v1556
        %v1717 = vadd.f32 %v1346, %v1675
        %v1718 = vadd.f32 %v1347, %v1560
        %v1719 = vadd.f32 %v1348, %v1562
        %v1720 = vadd.f32 %v1349, %v1680
        %v1721 = vadd.f32 %v1350, %v1566
        %v1722 = vadd.f32 %v1351, %v1568
        %v1723 = vadd.f32 %v1352, %v1685
        %v1724 = vadd.f32 %v1353, %v1572
        %v1725 = vadd.f32 %v1354, %v1574
        %v1726 = vadd.f32 %v1355, %v1690
        %v1727 = vadd.f32 %v1356, %v1578
        %v1728 = vadd.f32 %v1357, %v1580
        %v1729 = vadd.f32 %v1358, %v1695
        %v1730 = vadd.f32 %v1359, %v1584
        %v1731 = vadd.f32 %v1360, %v1586
        %v1732 = vadd.f32 %v1361, %v1700
        %s1733 = scalar_lea.vmem %s1, 320
        %v1734 = vld [vmem:[%s1733] sm:$0xff]
        %v1735 = vld [vmem:[%s1733 + $0x8] sm:$0xff]
        %v1736 = vld [vmem:[%s1733 + $0x10] sm:$0xff]
        %v1737 = vld [vmem:[%s1733 + $0x18] sm:$0xff]
        %v1738 = vld [vmem:[%s1733 + $0x20] sm:$0xff]
        %v1739 = vld [vmem:[%s1733 + $0x28] sm:$0xff]
        %v1740 = vld [vmem:[%s1733 + $0x30] sm:$0xff]
        %v1741 = vld [vmem:[%s1733 + $0x38] sm:$0xff]
        %v1742 = vld [vmem:[%s1733 + $0x40] sm:$0xff]
        %v1743 = vld [vmem:[%s1733 + $0x48] sm:$0xff]
        %1744 = vrot.lane.b32.xlu0 %v340, 124
        %v1745 = vpop.permute.xlu0 %1744
        %1746 = vrot.lane.b32.xlu0 %v341, 124
        %v1747 = vpop.permute.xlu0 %1746
        %1748 = vrot.lane.b32.xlu0 %v342, 124
        %v1749 = vpop.permute.xlu0 %1748
        %1750 = vrot.lane.b32.xlu0 %v363, 124
        %v1751 = vpop.permute.xlu0 %1750
        %1752 = vrot.lane.b32.xlu0 %v343, 124
        %v1753 = vpop.permute.xlu0 %1752
        %1754 = vrot.lane.b32.xlu0 %v344, 124
        %v1755 = vpop.permute.xlu0 %1754
        %1756 = vrot.lane.b32.xlu0 %v345, 124
        %v1757 = vpop.permute.xlu0 %1756
        %1758 = vrot.lane.b32.xlu0 %v364, 124
        %v1759 = vpop.permute.xlu0 %1758
        %1760 = vrot.lane.b32.xlu0 %v346, 124
        %v1761 = vpop.permute.xlu0 %1760
        %1762 = vrot.lane.b32.xlu0 %v347, 124
        %v1763 = vpop.permute.xlu0 %1762
        %1764 = vrot.lane.b32.xlu0 %v348, 124
        %v1765 = vpop.permute.xlu0 %1764
        %1766 = vrot.lane.b32.xlu0 %v365, 124
        %v1767 = vpop.permute.xlu0 %1766
        %1768 = vrot.lane.b32.xlu0 %v349, 124
        %v1769 = vpop.permute.xlu0 %1768
        %1770 = vrot.lane.b32.xlu0 %v350, 124
        %v1771 = vpop.permute.xlu0 %1770
        %1772 = vrot.lane.b32.xlu0 %v351, 124
        %v1773 = vpop.permute.xlu0 %1772
        %1774 = vrot.lane.b32.xlu0 %v366, 124
        %v1775 = vpop.permute.xlu0 %1774
        %vm1776 = vcmask 1014784
        %v1777 = vsel %vm1776, %v1745, %v1747
        %v1778 = vsel %vm1776, %v1747, %v1749
        %v1779 = vsel %vm1776, %v1749, %v1751
        %v1780 = vsel %vm1776, %v1753, %v1755
        %v1781 = vsel %vm1776, %v1755, %v1757
        %v1782 = vsel %vm1776, %v1757, %v1759
        %v1783 = vsel %vm1776, %v1761, %v1763
        %v1784 = vsel %vm1776, %v1763, %v1765
        %v1785 = vsel %vm1776, %v1765, %v1767
        %v1786 = vsel %vm1776, %v1769, %v1771
        %v1787 = vsel %vm1776, %v1771, %v1773
        %v1788 = vsel %vm1776, %v1773, %v1775
        %v1799 = vsel %vm437, %v1734, 0
        %v1802 = vsel %vm437, %v1735, 0
        %v1805 = vsel %vm437, %v1736, 0
        %v1808 = vsel %vm437, %v1737, 0
        %v1811 = vsel %vm437, %v1738, 0
        %v1814 = vsel %vm437, %v1739, 0
        %v1817 = vsel %vm437, %v1740, 0
        %v1820 = vsel %vm437, %v1741, 0
        %v1823 = vsel %vm437, %v1742, 0
        %v1826 = vsel %vm437, %v1743, 0
        %v1828 = vsel %vm468, %v1786, 0
        %v1830 = vsel %vm468, %v1787, 0
        %v1832 = vsel %vm468, %v1788, 0
        %1834 = vmatprep.subr.mxu0 %v1778
        %1835 = vmatpush1.msra.mxu0 %v1777
        %1836 = vmatprep.subr.mxu0 %v1781
        %1837 = vmatpush1.msra.mxu0 %v1780
        %1838 = vmatprep.subr.mxu0 %v1784
        %1839 = vmatpush1.msra.mxu0 %v1783
        %1840 = vmatprep.subr.mxu0 %v1830
        %1841 = vmatpush1.msra.mxu0 %v1828
        %1842 = vmatprep.subr.mxu0 0.0
        %1843 = vmatpush1.msra.mxu0 0.0
        %1844 = vmatprep.subr.mxu0 0.0
        %1845 = vmatpush1.msra.mxu0 0.0
        %1846 = vmatprep.subr.mxu0 0.0
        %1847 = vmatpush1.msra.mxu0 0.0
        %1848 = vmatprep.subr.mxu0 0.0
        %1849 = vmatpush1.msra.mxu0 0.0
        %1850 = vmatprep.subr.mxu0 0.0
        %1851 = vmatpush1.msra.mxu0 0.0
        %1852 = vmatprep.subr.mxu0 0.0
        %1853 = vmatpush1.msra.mxu0 0.0
        %1854 = vmatprep.subr.mxu0 0.0
        %1855 = vmatpush1.msra.mxu0 0.0
        %1856 = vmatprep.subr.mxu0 0.0
        %1857 = vmatpush1.msra.mxu0 0.0
        %1858 = vmatprep.subr.mxu0 0.0
        %1859 = vmatpush1.msra.mxu0 0.0
        %1860 = vmatprep.subr.mxu0 0.0
        %1861 = vmatpush1.msra.mxu0 0.0
        %1862 = vmatprep.subr.mxu0 0.0
        %1863 = vmatpush1.msra.mxu0 0.0
        %1864 = vmatprep.subr.mxu0 0.0
        %1865 = vmatpush1.msra.mxu0 0.0
        %1866 = vmatprep.subr.mxu0 0.0
        %1867 = vmatpush1.msra.mxu0 0.0
        %1868 = vmatprep.subr.mxu0 0.0
        %1869 = vmatpush1.msra.mxu0 0.0
        %1870 = vmatprep.subr.mxu0 0.0
        %1871 = vmatpush1.msra.mxu0 0.0
        %1872 = vmatprep.subr.mxu0 0.0
        %1873 = vmatpush1.msra.mxu0 0.0
        %1874 = vmatprep.subr.mxu0 0.0
        %1875 = vmatpush1.msra.mxu0 0.0
        %1876 = vmatprep.subr.mxu0 0.0
        %1877 = vmatpush1.msra.mxu0 0.0
        %1878 = vmatprep.subr.mxu0 0.0
        %1879 = vmatpush1.msra.mxu0 0.0
        %1880 = vmatprep.subr.mxu0 0.0
        %1881 = vmatpush1.msra.mxu0 0.0
        %1882 = vmatprep.subr.mxu0 0.0
        %1883 = vmatpush1.msra.mxu0 0.0
        %1884 = vmatprep.subr.mxu0 0.0
        %1885 = vmatpush1.msra.mxu0 0.0
        %1886 = vmatprep.subr.mxu0 0.0
        %1887 = vmatpush1.msra.mxu0 0.0
        %1888 = vmatprep.subr.mxu0 0.0
        %1889 = vmatpush1.msra.mxu0 0.0
        %1890 = vmatprep.subr.mxu0 0.0
        %1891 = vmatpush1.msra.mxu0 0.0
        %1892 = vmatprep.subr.mxu0 0.0
        %1893 = vmatpush1.msra.mxu0 0.0
        %1894 = vmatprep.subr.mxu0 0.0
        %1895 = vmatpush1.msra.mxu0 0.0
        %1896 = vmatprep.subr.mxu0 0.0
        %1897 = vmatpush1.msra.mxu0 0.0
        %1898 = vmatprep.mubr.f32.mxu0 0.0
        %1899 = vmatmul.mubr.f32.gmra.mrb[0].mxu0 %v1799
        %v1900 = vpop.f32.mrb[0].mxu0
        %v1901 = vadd.f32 0.0, %v1900
        %v1902 = vpop.f32.mrb[0].mxu0
        %v1903 = vadd.f32 0.0, %v1902
        %1904 = vmatprep.mubr.f32.mxu0 0.0
        %1905 = vmatmul.mubr.f32.gmra.mrb[0].mxu0 %v1802
        %v1906 = vpop.f32.mrb[0].mxu0
        %v1907 = vadd.f32 0.0, %v1906
        %v1908 = vpop.f32.mrb[0].mxu0
        %v1909 = vadd.f32 0.0, %v1908
        %1910 = vmatprep.mubr.f32.mxu0 0.0
        %1911 = vmatmul.mubr.f32.gmra.mrb[0].mxu0 %v1805
        %v1912 = vpop.f32.mrb[0].mxu0
        %v1913 = vadd.f32 0.0, %v1912
        %v1914 = vpop.f32.mrb[0].mxu0
        %v1915 = vadd.f32 0.0, %v1914
        %1916 = vmatprep.mubr.f32.mxu0 0.0
        %1917 = vmatmul.mubr.f32.gmra.mrb[0].mxu0 %v1808
        %v1918 = vpop.f32.mrb[0].mxu0
        %v1919 = vadd.f32 0.0, %v1918
        %v1920 = vpop.f32.mrb[0].mxu0
        %v1921 = vadd.f32 0.0, %v1920
        %1922 = vmatprep.mubr.f32.mxu0 0.0
        %1923 = vmatmul.mubr.f32.gmra.mrb[0].mxu0 %v1811
        %v1924 = vpop.f32.mrb[0].mxu0
        %v1925 = vadd.f32 0.0, %v1924
        %v1926 = vpop.f32.mrb[0].mxu0
        %v1927 = vadd.f32 0.0, %v1926
        %1928 = vmatprep.mubr.f32.mxu0 0.0
        %1929 = vmatmul.mubr.f32.gmra.mrb[0].mxu0 %v1814
        %v1930 = vpop.f32.mrb[0].mxu0
        %v1931 = vadd.f32 0.0, %v1930
        %v1932 = vpop.f32.mrb[0].mxu0
        %v1933 = vadd.f32 0.0, %v1932
        %1934 = vmatprep.mubr.f32.mxu0 0.0
        %1935 = vmatmul.mubr.f32.gmra.mrb[0].mxu0 %v1817
        %v1936 = vpop.f32.mrb[0].mxu0
        %v1937 = vadd.f32 0.0, %v1936
        %v1938 = vpop.f32.mrb[0].mxu0
        %v1939 = vadd.f32 0.0, %v1938
        %1940 = vmatprep.mubr.f32.mxu0 0.0
        %1941 = vmatmul.mubr.f32.gmra.mrb[0].mxu0 %v1820
        %v1942 = vpop.f32.mrb[0].mxu0
        %v1943 = vadd.f32 0.0, %v1942
        %v1944 = vpop.f32.mrb[0].mxu0
        %v1945 = vadd.f32 0.0, %v1944
        %1946 = vmatprep.mubr.f32.mxu0 0.0
        %1947 = vmatmul.mubr.f32.gmra.mrb[0].mxu0 %v1823
        %v1948 = vpop.f32.mrb[0].mxu0
        %v1949 = vadd.f32 0.0, %v1948
        %v1950 = vpop.f32.mrb[0].mxu0
        %v1951 = vadd.f32 0.0, %v1950
        %1952 = vmatprep.mubr.f32.mxu0 0.0
        %1953 = vmatmul.mubr.f32.gmra.mrb[0].mxu0 %v1826
        %v1954 = vpop.f32.mrb[0].mxu0
        %v1955 = vadd.f32 0.0, %v1954
        %v1956 = vpop.f32.mrb[0].mxu0
        %v1957 = vadd.f32 0.0, %v1956
        %1958 = vdwg.mxu0
        %1959 = vmatprep.subr.mxu0 0.0
        %1960 = vmatpush1.msra.mxu0 %v1779
        %1961 = vmatprep.subr.mxu0 0.0
        %1962 = vmatpush1.msra.mxu0 %v1782
        %1963 = vmatprep.subr.mxu0 0.0
        %1964 = vmatpush1.msra.mxu0 %v1785
        %1965 = vmatprep.subr.mxu0 0.0
        %1966 = vmatpush1.msra.mxu0 %v1832
        %1967 = vmatprep.subr.mxu0 0.0
        %1968 = vmatpush1.msra.mxu0 0.0
        %1969 = vmatprep.subr.mxu0 0.0
        %1970 = vmatpush1.msra.mxu0 0.0
        %1971 = vmatprep.subr.mxu0 0.0
        %1972 = vmatpush1.msra.mxu0 0.0
        %1973 = vmatprep.subr.mxu0 0.0
        %1974 = vmatpush1.msra.mxu0 0.0
        %1975 = vmatprep.subr.mxu0 0.0
        %1976 = vmatpush1.msra.mxu0 0.0
        %1977 = vmatprep.subr.mxu0 0.0
        %1978 = vmatpush1.msra.mxu0 0.0
        %1979 = vmatprep.subr.mxu0 0.0
        %1980 = vmatpush1.msra.mxu0 0.0
        %1981 = vmatprep.subr.mxu0 0.0
        %1982 = vmatpush1.msra.mxu0 0.0
        %1983 = vmatprep.subr.mxu0 0.0
        %1984 = vmatpush1.msra.mxu0 0.0
        %1985 = vmatprep.subr.mxu0 0.0
        %1986 = vmatpush1.msra.mxu0 0.0
        %1987 = vmatprep.subr.mxu0 0.0
        %1988 = vmatpush1.msra.mxu0 0.0
        %1989 = vmatprep.subr.mxu0 0.0
        %1990 = vmatpush1.msra.mxu0 0.0
        %1991 = vmatprep.subr.mxu0 0.0
        %1992 = vmatpush1.msra.mxu0 0.0
        %1993 = vmatprep.subr.mxu0 0.0
        %1994 = vmatpush1.msra.mxu0 0.0
        %1995 = vmatprep.subr.mxu0 0.0
        %1996 = vmatpush1.msra.mxu0 0.0
        %1997 = vmatprep.subr.mxu0 0.0
        %1998 = vmatpush1.msra.mxu0 0.0
        %1999 = vmatprep.subr.mxu0 0.0
        %2000 = vmatpush1.msra.mxu0 0.0
        %2001 = vmatprep.subr.mxu0 0.0
        %2002 = vmatpush1.msra.mxu0 0.0
        %2003 = vmatprep.subr.mxu0 0.0
        %2004 = vmatpush1.msra.mxu0 0.0
        %2005 = vmatprep.subr.mxu0 0.0
        %2006 = vmatpush1.msra.mxu0 0.0
        %2007 = vmatprep.subr.mxu0 0.0
        %2008 = vmatpush1.msra.mxu0 0.0
        %2009 = vmatprep.subr.mxu0 0.0
        %2010 = vmatpush1.msra.mxu0 0.0
        %2011 = vmatprep.subr.mxu0 0.0
        %2012 = vmatpush1.msra.mxu0 0.0
        %2013 = vmatprep.subr.mxu0 0.0
        %2014 = vmatpush1.msra.mxu0 0.0
        %2015 = vmatprep.subr.mxu0 0.0
        %2016 = vmatpush1.msra.mxu0 0.0
        %2017 = vmatprep.subr.mxu0 0.0
        %2018 = vmatpush1.msra.mxu0 0.0
        %2019 = vmatprep.subr.mxu0 0.0
        %2020 = vmatpush1.msra.mxu0 0.0
        %2021 = vmatprep.subr.mxu0 0.0
        %2022 = vmatpush1.msra.mxu0 0.0
        %2023 = vmatprep.mubr.f32.mxu0 0.0
        %2024 = vmatmul.mubr.f32.gmra.mrb[0].mxu0 %v1799
        %v2025 = vpop.f32.mrb[0].mxu0
        %v2026 = vadd.f32 0.0, %v2025
        %v2027 = vpop.f32.mrb[0].mxu0
        %2028 = vmatprep.mubr.f32.mxu0 0.0
        %2029 = vmatmul.mubr.f32.gmra.mrb[0].mxu0 %v1802
        %v2030 = vpop.f32.mrb[0].mxu0
        %v2031 = vadd.f32 0.0, %v2030
        %v2032 = vpop.f32.mrb[0].mxu0
        %2033 = vmatprep.mubr.f32.mxu0 0.0
        %2034 = vmatmul.mubr.f32.gmra.mrb[0].mxu0 %v1805
        %v2035 = vpop.f32.mrb[0].mxu0
        %v2036 = vadd.f32 0.0, %v2035
        %v2037 = vpop.f32.mrb[0].mxu0
        %2038 = vmatprep.mubr.f32.mxu0 0.0
        %2039 = vmatmul.mubr.f32.gmra.mrb[0].mxu0 %v1808
        %v2040 = vpop.f32.mrb[0].mxu0
        %v2041 = vadd.f32 0.0, %v2040
        %v2042 = vpop.f32.mrb[0].mxu0
        %2043 = vmatprep.mubr.f32.mxu0 0.0
        %2044 = vmatmul.mubr.f32.gmra.mrb[0].mxu0 %v1811
        %v2045 = vpop.f32.mrb[0].mxu0
        %v2046 = vadd.f32 0.0, %v2045
        %v2047 = vpop.f32.mrb[0].mxu0
        %2048 = vmatprep.mubr.f32.mxu0 0.0
        %2049 = vmatmul.mubr.f32.gmra.mrb[0].mxu0 %v1814
        %v2050 = vpop.f32.mrb[0].mxu0
        %v2051 = vadd.f32 0.0, %v2050
        %v2052 = vpop.f32.mrb[0].mxu0
        %2053 = vmatprep.mubr.f32.mxu0 0.0
        %2054 = vmatmul.mubr.f32.gmra.mrb[0].mxu0 %v1817
        %v2055 = vpop.f32.mrb[0].mxu0
        %v2056 = vadd.f32 0.0, %v2055
        %v2057 = vpop.f32.mrb[0].mxu0
        %2058 = vmatprep.mubr.f32.mxu0 0.0
        %2059 = vmatmul.mubr.f32.gmra.mrb[0].mxu0 %v1820
        %v2060 = vpop.f32.mrb[0].mxu0
        %v2061 = vadd.f32 0.0, %v2060
        %v2062 = vpop.f32.mrb[0].mxu0
        %2063 = vmatprep.mubr.f32.mxu0 0.0
        %2064 = vmatmul.mubr.f32.gmra.mrb[0].mxu0 %v1823
        %v2065 = vpop.f32.mrb[0].mxu0
        %v2066 = vadd.f32 0.0, %v2065
        %v2067 = vpop.f32.mrb[0].mxu0
        %2068 = vmatprep.mubr.f32.mxu0 0.0
        %2069 = vmatmul.mubr.f32.gmra.mrb[0].mxu0 %v1826
        %v2070 = vpop.f32.mrb[0].mxu0
        %v2071 = vadd.f32 0.0, %v2070
        %v2072 = vpop.f32.mrb[0].mxu0
        %2073 = vdwg.mxu0
        %v2074 = vadd.f32 %v1703, %v1901
        %v2075 = vadd.f32 %v1704, %v1903
        %v2076 = vadd.f32 %v1705, %v2026
        %v2077 = vadd.f32 %v1706, %v1907
        %v2078 = vadd.f32 %v1707, %v1909
        %v2079 = vadd.f32 %v1708, %v2031
        %v2080 = vadd.f32 %v1709, %v1913
        %v2081 = vadd.f32 %v1710, %v1915
        %v2082 = vadd.f32 %v1711, %v2036
        %v2083 = vadd.f32 %v1712, %v1919
        %v2084 = vadd.f32 %v1713, %v1921
        %v2085 = vadd.f32 %v1714, %v2041
        %v2086 = vadd.f32 %v1715, %v1925
        %v2087 = vadd.f32 %v1716, %v1927
        %v2088 = vadd.f32 %v1717, %v2046
        %v2089 = vadd.f32 %v1718, %v1931
        %v2090 = vadd.f32 %v1719, %v1933
        %v2091 = vadd.f32 %v1720, %v2051
        %v2092 = vadd.f32 %v1721, %v1937
        %v2093 = vadd.f32 %v1722, %v1939
        %v2094 = vadd.f32 %v1723, %v2056
        %v2095 = vadd.f32 %v1724, %v1943
        %v2096 = vadd.f32 %v1725, %v1945
        %v2097 = vadd.f32 %v1726, %v2061
        %v2098 = vadd.f32 %v1727, %v1949
        %v2099 = vadd.f32 %v1728, %v1951
        %v2100 = vadd.f32 %v1729, %v2066
        %v2101 = vadd.f32 %v1730, %v1955
        %v2102 = vadd.f32 %v1731, %v1957
        %v2103 = vadd.f32 %v1732, %v2071
        %v2104 = vmax.f32 %v2074, %v2080
        %v2105 = vmax.f32 %v2075, %v2081
        %v2106 = vmax.f32 %v2076, %v2082
        %v2107 = vmax.f32 %v2077, %v2083
        %v2108 = vmax.f32 %v2078, %v2084
        %v2109 = vmax.f32 %v2079, %v2085
        %v2110 = vmax.f32 %v2104, %v2086
        %v2111 = vmax.f32 %v2105, %v2087
        %v2112 = vmax.f32 %v2106, %v2088
        %v2113 = vmax.f32 %v2107, %v2089
        %v2114 = vmax.f32 %v2108, %v2090
        %v2115 = vmax.f32 %v2109, %v2091
        %v2116 = vmax.f32 %v2110, %v2092
        %v2117 = vmax.f32 %v2111, %v2093
        %v2118 = vmax.f32 %v2112, %v2094
        %v2119 = vmax.f32 %v2113, %v2095
        %v2120 = vmax.f32 %v2114, %v2096
        %v2121 = vmax.f32 %v2115, %v2097
        %v2122 = vmax.f32 %v2116, %v2098
        %v2123 = vmax.f32 %v2117, %v2099
        %v2124 = vmax.f32 %v2118, %v2100
        %v2125 = vmax.f32 %v2119, %v2101
        %v2126 = vmax.f32 %v2120, %v2102
        %v2127 = vmax.f32 %v2121, %v2103
        %v2128 = vld [vmem:[%s2] sm:$0xff]
        %v2129 = vld [vmem:[%s2 + $0x8] sm:$0xff]
        %2131 = vset.pattern.permute.xlu0 0
        %2132 = vperm.xlu0 %2131, %v2128
        %v2133 = vpop.permute.xlu0 %2132
        %2136 = vset.pattern.permute.xlu0 0
        %2137 = vperm.xlu0 %2136, %v2129
        %v2138 = vpop.permute.xlu0 %2137
        %v2140 = vadd.f32 %v2122, %v2133
        %v2141 = vadd.f32 %v2123, %v2133
        %v2142 = vadd.f32 %v2124, %v2133
        %v2143 = vadd.f32 %v2125, %v2138
        %v2144 = vadd.f32 %v2126, %v2138
        %v2145 = vadd.f32 %v2127, %v2138
        %v2146 = vmax.f32 %v2140, 0.0
        %v2147 = vmax.f32 %v2141, 0.0
        %v2148 = vmax.f32 %v2142, 0.0
        %v2149 = vmax.f32 %v2143, 0.0
        %v2150 = vmax.f32 %v2144, 0.0
        %v2151 = vmax.f32 %v2145, 0.0
        %v2152 = vld [vmem:[%s3] sm:$0xff]
        %v2153 = vld [vmem:[%s3 + $0x8] sm:$0xff]
        %v2154 = vld [vmem:[%s3 + $0x10] sm:$0xff]
        %v2155 = vld [vmem:[%s3 + $0x18] sm:$0xff]
        %v2156 = vld [vmem:[%s3 + $0x20] sm:$0xff]
        %s2157 = scalar_lea.vmem %s3, 40
        %v2158 = vld [vmem:[%s2157] sm:$0xff]
        %v2159 = vld [vmem:[%s2157 + $0x8] sm:$0xff]
        %v2160 = vld [vmem:[%s2157 + $0x10] sm:$0xff]
        %v2161 = vld [vmem:[%s2157 + $0x18] sm:$0xff]
        %v2162 = vld [vmem:[%s2157 + $0x20] sm:$0xff]
        %2169 = vrot.lane.b32.xlu0 %v2146, 127
        %v2170 = vpop.permute.xlu0 %2169
        %2171 = vrot.lane.b32.xlu0 %v2147, 127
        %v2172 = vpop.permute.xlu0 %2171
        %2173 = vrot.lane.b32.xlu0 %v2148, 127
        %v2174 = vpop.permute.xlu0 %2173
        %2175 = vrot.lane.b32.xlu0 %v2149, 127
        %v2176 = vpop.permute.xlu0 %2175
        %2177 = vrot.lane.b32.xlu0 %v2150, 127
        %v2178 = vpop.permute.xlu0 %2177
        %2179 = vrot.lane.b32.xlu0 %v2151, 127
        %v2180 = vpop.permute.xlu0 %2179
        %v2181 = vsel %vm415, %v2170, %v2172
        %v2182 = vsel %vm415, %v2172, %v2174
        %v2183 = vsel %vm415, %v2176, %v2178
        %v2184 = vsel %vm415, %v2178, %v2180
        %vm2189 = vcmask 130048
        %v2191 = vsel %vm2189, %v2158, 0
        %v2194 = vsel %vm2189, %v2159, 0
        %v2197 = vsel %vm2189, %v2160, 0
        %v2200 = vsel %vm2189, %v2161, 0
        %v2203 = vsel %vm2189, %v2162, 0
        %2205 = vmatprep.subr.mxu0 %v2182
        %2206 = vmatpush1.msra.mxu0 %v2181
        %2207 = vmatprep.subr.mxu0 %v2184
        %2208 = vmatpush1.msra.mxu0 %v2183
        %2209 = vmatprep.subr.mxu0 0.0
        %2210 = vmatpush1.msra.mxu0 0.0
        %2211 = vmatprep.subr.mxu0 0.0
        %2212 = vmatpush1.msra.mxu0 0.0
        %2213 = vmatprep.subr.mxu0 0.0
        %2214 = vmatpush1.msra.mxu0 0.0
        %2215 = vmatprep.subr.mxu0 0.0
        %2216 = vmatpush1.msra.mxu0 0.0
        %2217 = vmatprep.subr.mxu0 0.0
        %2218 = vmatpush1.msra.mxu0 0.0
        %2219 = vmatprep.subr.mxu0 0.0
        %2220 = vmatpush1.msra.mxu0 0.0
        %2221 = vmatprep.subr.mxu0 0.0
        %2222 = vmatpush1.msra.mxu0 0.0
        %2223 = vmatprep.subr.mxu0 0.0
        %2224 = vmatpush1.msra.mxu0 0.0
        %2225 = vmatprep.subr.mxu0 0.0
        %2226 = vmatpush1.msra.mxu0 0.0
        %2227 = vmatprep.subr.mxu0 0.0
        %2228 = vmatpush1.msra.mxu0 0.0
        %2229 = vmatprep.subr.mxu0 0.0
        %2230 = vmatpush1.msra.mxu0 0.0
        %2231 = vmatprep.subr.mxu0 0.0
        %2232 = vmatpush1.msra.mxu0 0.0
        %2233 = vmatprep.subr.mxu0 0.0
        %2234 = vmatpush1.msra.mxu0 0.0
        %2235 = vmatprep.subr.mxu0 0.0
        %2236 = vmatpush1.msra.mxu0 0.0
        %2237 = vmatprep.subr.mxu0 0.0
        %2238 = vmatpush1.msra.mxu0 0.0
        %2239 = vmatprep.subr.mxu0 0.0
        %2240 = vmatpush1.msra.mxu0 0.0
        %2241 = vmatprep.subr.mxu0 0.0
        %2242 = vmatpush1.msra.mxu0 0.0
        %2243 = vmatprep.subr.mxu0 0.0
        %2244 = vmatpush1.msra.mxu0 0.0
        %2245 = vmatprep.subr.mxu0 0.0
        %2246 = vmatpush1.msra.mxu0 0.0
        %2247 = vmatprep.subr.mxu0 0.0
        %2248 = vmatpush1.msra.mxu0 0.0
        %2249 = vmatprep.subr.mxu0 0.0
        %2250 = vmatpush1.msra.mxu0 0.0
        %2251 = vmatprep.subr.mxu0 0.0
        %2252 = vmatpush1.msra.mxu0 0.0
        %2253 = vmatprep.subr.mxu0 0.0
        %2254 = vmatpush1.msra.mxu0 0.0
        %2255 = vmatprep.subr.mxu0 0.0
        %2256 = vmatpush1.msra.mxu0 0.0
        %2257 = vmatprep.subr.mxu0 0.0
        %2258 = vmatpush1.msra.mxu0 0.0
        %2259 = vmatprep.subr.mxu0 0.0
        %2260 = vmatpush1.msra.mxu0 0.0
        %2261 = vmatprep.subr.mxu0 0.0
        %2262 = vmatpush1.msra.mxu0 0.0
        %2263 = vmatprep.subr.mxu0 0.0
        %2264 = vmatpush1.msra.mxu0 0.0
        %2265 = vmatprep.subr.mxu0 0.0
        %2266 = vmatpush1.msra.mxu0 0.0
        %2267 = vmatprep.subr.mxu0 0.0
        %2268 = vmatpush1.msra.mxu0 0.0
        %2269 = vmatprep.mubr.f32.mxu0 0.0
        %2270 = vmatmul.mubr.f32.gmra.mrb[0].mxu0 %v2191
        %v2271 = vpop.f32.mrb[0].mxu0
        %v2272 = vadd.f32 0.0, %v2271
        %v2273 = vpop.f32.mrb[0].mxu0
        %v2274 = vadd.f32 0.0, %v2273
        %2275 = vmatprep.mubr.f32.mxu0 0.0
        %2276 = vmatmul.mubr.f32.gmra.mrb[0].mxu0 %v2194
        %v2277 = vpop.f32.mrb[0].mxu0
        %v2278 = vadd.f32 0.0, %v2277
        %v2279 = vpop.f32.mrb[0].mxu0
        %v2280 = vadd.f32 0.0, %v2279
        %2281 = vmatprep.mubr.f32.mxu0 0.0
        %2282 = vmatmul.mubr.f32.gmra.mrb[0].mxu0 %v2197
        %v2283 = vpop.f32.mrb[0].mxu0
        %v2284 = vadd.f32 0.0, %v2283
        %v2285 = vpop.f32.mrb[0].mxu0
        %v2286 = vadd.f32 0.0, %v2285
        %2287 = vmatprep.mubr.f32.mxu0 0.0
        %2288 = vmatmul.mubr.f32.gmra.mrb[0].mxu0 %v2200
        %v2289 = vpop.f32.mrb[0].mxu0
        %v2290 = vadd.f32 0.0, %v2289
        %v2291 = vpop.f32.mrb[0].mxu0
        %v2292 = vadd.f32 0.0, %v2291
        %2293 = vmatprep.mubr.f32.mxu0 0.0
        %2294 = vmatmul.mubr.f32.gmra.mrb[0].mxu0 %v2203
        %v2295 = vpop.f32.mrb[0].mxu0
        %v2296 = vadd.f32 0.0, %v2295
        %v2297 = vpop.f32.mrb[0].mxu0
        %v2298 = vadd.f32 0.0, %v2297
        %2299 = vdwg.mxu0
        %v2301 = vsel %vm2189, %v2152, 0
        %v2304 = vsel %vm2189, %v2153, 0
        %v2307 = vsel %vm2189, %v2154, 0
        %v2310 = vsel %vm2189, %v2155, 0
        %v2313 = vsel %vm2189, %v2156, 0
        %2315 = vmatprep.subr.mxu0 %v2147
        %2316 = vmatpush1.msra.mxu0 %v2146
        %2317 = vmatprep.subr.mxu0 %v2150
        %2318 = vmatpush1.msra.mxu0 %v2149
        %2319 = vmatprep.subr.mxu0 0.0
        %2320 = vmatpush1.msra.mxu0 0.0
        %2321 = vmatprep.subr.mxu0 0.0
        %2322 = vmatpush1.msra.mxu0 0.0
        %2323 = vmatprep.subr.mxu0 0.0
        %2324 = vmatpush1.msra.mxu0 0.0
        %2325 = vmatprep.subr.mxu0 0.0
        %2326 = vmatpush1.msra.mxu0 0.0
        %2327 = vmatprep.subr.mxu0 0.0
        %2328 = vmatpush1.msra.mxu0 0.0
        %2329 = vmatprep.subr.mxu0 0.0
        %2330 = vmatpush1.msra.mxu0 0.0
        %2331 = vmatprep.subr.mxu0 0.0
        %2332 = vmatpush1.msra.mxu0 0.0
        %2333 = vmatprep.subr.mxu0 0.0
        %2334 = vmatpush1.msra.mxu0 0.0
        %2335 = vmatprep.subr.mxu0 0.0
        %2336 = vmatpush1.msra.mxu0 0.0
        %2337 = vmatprep.subr.mxu0 0.0
        %2338 = vmatpush1.msra.mxu0 0.0
        %2339 = vmatprep.subr.mxu0 0.0
        %2340 = vmatpush1.msra.mxu0 0.0
        %2341 = vmatprep.subr.mxu0 0.0
        %2342 = vmatpush1.msra.mxu0 0.0
        %2343 = vmatprep.subr.mxu0 0.0
        %2344 = vmatpush1.msra.mxu0 0.0
        %2345 = vmatprep.subr.mxu0 0.0
        %2346 = vmatpush1.msra.mxu0 0.0
        %2347 = vmatprep.subr.mxu0 0.0
        %2348 = vmatpush1.msra.mxu0 0.0
        %2349 = vmatprep.subr.mxu0 0.0
        %2350 = vmatpush1.msra.mxu0 0.0
        %2351 = vmatprep.subr.mxu0 0.0
        %2352 = vmatpush1.msra.mxu0 0.0
        %2353 = vmatprep.subr.mxu0 0.0
        %2354 = vmatpush1.msra.mxu0 0.0
        %2355 = vmatprep.subr.mxu0 0.0
        %2356 = vmatpush1.msra.mxu0 0.0
        %2357 = vmatprep.subr.mxu0 0.0
        %2358 = vmatpush1.msra.mxu0 0.0
        %2359 = vmatprep.subr.mxu0 0.0
        %2360 = vmatpush1.msra.mxu0 0.0
        %2361 = vmatprep.subr.mxu0 0.0
        %2362 = vmatpush1.msra.mxu0 0.0
        %2363 = vmatprep.subr.mxu0 0.0
        %2364 = vmatpush1.msra.mxu0 0.0
        %2365 = vmatprep.subr.mxu0 0.0
        %2366 = vmatpush1.msra.mxu0 0.0
        %2367 = vmatprep.subr.mxu0 0.0
        %2368 = vmatpush1.msra.mxu0 0.0
        %2369 = vmatprep.subr.mxu0 0.0
        %2370 = vmatpush1.msra.mxu0 0.0
        %2371 = vmatprep.subr.mxu0 0.0
        %2372 = vmatpush1.msra.mxu0 0.0
        %2373 = vmatprep.subr.mxu0 0.0
        %2374 = vmatpush1.msra.mxu0 0.0
        %2375 = vmatprep.subr.mxu0 0.0
        %2376 = vmatpush1.msra.mxu0 0.0
        %2377 = vmatprep.subr.mxu0 0.0
        %2378 = vmatpush1.msra.mxu0 0.0
        %2379 = vmatprep.mubr.f32.mxu0 0.0
        %2380 = vmatmul.mubr.f32.gmra.mrb[0].mxu0 %v2301
        %v2381 = vpop.f32.mrb[0].mxu0
        %v2382 = vadd.f32 %v2272, %v2381
        %v2383 = vpop.f32.mrb[0].mxu0
        %v2384 = vadd.f32 %v2274, %v2383
        %2385 = vmatprep.mubr.f32.mxu0 0.0
        %2386 = vmatmul.mubr.f32.gmra.mrb[0].mxu0 %v2304
        %v2387 = vpop.f32.mrb[0].mxu0
        %v2388 = vadd.f32 %v2278, %v2387
        %v2389 = vpop.f32.mrb[0].mxu0
        %v2390 = vadd.f32 %v2280, %v2389
        %2391 = vmatprep.mubr.f32.mxu0 0.0
        %2392 = vmatmul.mubr.f32.gmra.mrb[0].mxu0 %v2307
        %v2393 = vpop.f32.mrb[0].mxu0
        %v2394 = vadd.f32 %v2284, %v2393
        %v2395 = vpop.f32.mrb[0].mxu0
        %v2396 = vadd.f32 %v2286, %v2395
        %2397 = vmatprep.mubr.f32.mxu0 0.0
        %2398 = vmatmul.mubr.f32.gmra.mrb[0].mxu0 %v2310
        %v2399 = vpop.f32.mrb[0].mxu0
        %v2400 = vadd.f32 %v2290, %v2399
        %v2401 = vpop.f32.mrb[0].mxu0
        %v2402 = vadd.f32 %v2292, %v2401
        %2403 = vmatprep.mubr.f32.mxu0 0.0
        %2404 = vmatmul.mubr.f32.gmra.mrb[0].mxu0 %v2313
        %v2405 = vpop.f32.mrb[0].mxu0
        %v2406 = vadd.f32 %v2296, %v2405
        %v2407 = vpop.f32.mrb[0].mxu0
        %v2408 = vadd.f32 %v2298, %v2407
        %2409 = vdwg.mxu0
        %s2410 = scalar_lea.vmem %s3, 80
        %v2411 = vld [vmem:[%s2410] sm:$0xff]
        %v2412 = vld [vmem:[%s2410 + $0x8] sm:$0xff]
        %v2413 = vld [vmem:[%s2410 + $0x10] sm:$0xff]
        %v2414 = vld [vmem:[%s2410 + $0x18] sm:$0xff]
        %v2415 = vld [vmem:[%s2410 + $0x20] sm:$0xff]
        %2416 = vrot.lane.b32.xlu0 %v2146, 126
        %v2417 = vpop.permute.xlu0 %2416
        %2418 = vrot.lane.b32.xlu0 %v2147, 126
        %v2419 = vpop.permute.xlu0 %2418
        %2420 = vrot.lane.b32.xlu0 %v2148, 126
        %v2421 = vpop.permute.xlu0 %2420
        %2422 = vrot.lane.b32.xlu0 %v2149, 126
        %v2423 = vpop.permute.xlu0 %2422
        %2424 = vrot.lane.b32.xlu0 %v2150, 126
        %v2425 = vpop.permute.xlu0 %2424
        %2426 = vrot.lane.b32.xlu0 %v2151, 126
        %v2427 = vpop.permute.xlu0 %2426
        %v2428 = vsel %vm1034, %v2417, %v2419
        %v2429 = vsel %vm1034, %v2419, %v2421
        %v2430 = vsel %vm1034, %v2423, %v2425
        %v2431 = vsel %vm1034, %v2425, %v2427
        %v2437 = vsel %vm2189, %v2411, 0
        %v2440 = vsel %vm2189, %v2412, 0
        %v2443 = vsel %vm2189, %v2413, 0
        %v2446 = vsel %vm2189, %v2414, 0
        %v2449 = vsel %vm2189, %v2415, 0
        %2451 = vmatprep.subr.mxu0 %v2429
        %2452 = vmatpush1.msra.mxu0 %v2428
        %2453 = vmatprep.subr.mxu0 %v2431
        %2454 = vmatpush1.msra.mxu0 %v2430
        %2455 = vmatprep.subr.mxu0 0.0
        %2456 = vmatpush1.msra.mxu0 0.0
        %2457 = vmatprep.subr.mxu0 0.0
        %2458 = vmatpush1.msra.mxu0 0.0
        %2459 = vmatprep.subr.mxu0 0.0
        %2460 = vmatpush1.msra.mxu0 0.0
        %2461 = vmatprep.subr.mxu0 0.0
        %2462 = vmatpush1.msra.mxu0 0.0
        %2463 = vmatprep.subr.mxu0 0.0
        %2464 = vmatpush1.msra.mxu0 0.0
        %2465 = vmatprep.subr.mxu0 0.0
        %2466 = vmatpush1.msra.mxu0 0.0
        %2467 = vmatprep.subr.mxu0 0.0
        %2468 = vmatpush1.msra.mxu0 0.0
        %2469 = vmatprep.subr.mxu0 0.0
        %2470 = vmatpush1.msra.mxu0 0.0
        %2471 = vmatprep.subr.mxu0 0.0
        %2472 = vmatpush1.msra.mxu0 0.0
        %2473 = vmatprep.subr.mxu0 0.0
        %2474 = vmatpush1.msra.mxu0 0.0
        %2475 = vmatprep.subr.mxu0 0.0
        %2476 = vmatpush1.msra.mxu0 0.0
        %2477 = vmatprep.subr.mxu0 0.0
        %2478 = vmatpush1.msra.mxu0 0.0
        %2479 = vmatprep.subr.mxu0 0.0
        %2480 = vmatpush1.msra.mxu0 0.0
        %2481 = vmatprep.subr.mxu0 0.0
        %2482 = vmatpush1.msra.mxu0 0.0
        %2483 = vmatprep.subr.mxu0 0.0
        %2484 = vmatpush1.msra.mxu0 0.0
        %2485 = vmatprep.subr.mxu0 0.0
        %2486 = vmatpush1.msra.mxu0 0.0
        %2487 = vmatprep.subr.mxu0 0.0
        %2488 = vmatpush1.msra.mxu0 0.0
        %2489 = vmatprep.subr.mxu0 0.0
        %2490 = vmatpush1.msra.mxu0 0.0
        %2491 = vmatprep.subr.mxu0 0.0
        %2492 = vmatpush1.msra.mxu0 0.0
        %2493 = vmatprep.subr.mxu0 0.0
        %2494 = vmatpush1.msra.mxu0 0.0
        %2495 = vmatprep.subr.mxu0 0.0
        %2496 = vmatpush1.msra.mxu0 0.0
        %2497 = vmatprep.subr.mxu0 0.0
        %2498 = vmatpush1.msra.mxu0 0.0
        %2499 = vmatprep.subr.mxu0 0.0
        %2500 = vmatpush1.msra.mxu0 0.0
        %2501 = vmatprep.subr.mxu0 0.0
        %2502 = vmatpush1.msra.mxu0 0.0
        %2503 = vmatprep.subr.mxu0 0.0
        %2504 = vmatpush1.msra.mxu0 0.0
        %2505 = vmatprep.subr.mxu0 0.0
        %2506 = vmatpush1.msra.mxu0 0.0
        %2507 = vmatprep.subr.mxu0 0.0
        %2508 = vmatpush1.msra.mxu0 0.0
        %2509 = vmatprep.subr.mxu0 0.0
        %2510 = vmatpush1.msra.mxu0 0.0
        %2511 = vmatprep.subr.mxu0 0.0
        %2512 = vmatpush1.msra.mxu0 0.0
        %2513 = vmatprep.subr.mxu0 0.0
        %2514 = vmatpush1.msra.mxu0 0.0
        %2515 = vmatprep.mubr.f32.mxu0 0.0
        %2516 = vmatmul.mubr.f32.gmra.mrb[0].mxu0 %v2437
        %v2517 = vpop.f32.mrb[0].mxu0
        %v2518 = vadd.f32 0.0, %v2517
        %v2519 = vpop.f32.mrb[0].mxu0
        %v2520 = vadd.f32 0.0, %v2519
        %2521 = vmatprep.mubr.f32.mxu0 0.0
        %2522 = vmatmul.mubr.f32.gmra.mrb[0].mxu0 %v2440
        %v2523 = vpop.f32.mrb[0].mxu0
        %v2524 = vadd.f32 0.0, %v2523
        %v2525 = vpop.f32.mrb[0].mxu0
        %v2526 = vadd.f32 0.0, %v2525
        %2527 = vmatprep.mubr.f32.mxu0 0.0
        %2528 = vmatmul.mubr.f32.gmra.mrb[0].mxu0 %v2443
        %v2529 = vpop.f32.mrb[0].mxu0
        %v2530 = vadd.f32 0.0, %v2529
        %v2531 = vpop.f32.mrb[0].mxu0
        %v2532 = vadd.f32 0.0, %v2531
        %2533 = vmatprep.mubr.f32.mxu0 0.0
        %2534 = vmatmul.mubr.f32.gmra.mrb[0].mxu0 %v2446
        %v2535 = vpop.f32.mrb[0].mxu0
        %v2536 = vadd.f32 0.0, %v2535
        %v2537 = vpop.f32.mrb[0].mxu0
        %v2538 = vadd.f32 0.0, %v2537
        %2539 = vmatprep.mubr.f32.mxu0 0.0
        %2540 = vmatmul.mubr.f32.gmra.mrb[0].mxu0 %v2449
        %v2541 = vpop.f32.mrb[0].mxu0
        %v2542 = vadd.f32 0.0, %v2541
        %v2543 = vpop.f32.mrb[0].mxu0
        %v2544 = vadd.f32 0.0, %v2543
        %2545 = vdwg.mxu0
        %v2546 = vadd.f32 %v2382, %v2518
        %v2547 = vadd.f32 %v2384, %v2520
        %v2548 = vadd.f32 %v2388, %v2524
        %v2549 = vadd.f32 %v2390, %v2526
        %v2550 = vadd.f32 %v2394, %v2530
        %v2551 = vadd.f32 %v2396, %v2532
        %v2552 = vadd.f32 %v2400, %v2536
        %v2553 = vadd.f32 %v2402, %v2538
        %v2554 = vadd.f32 %v2406, %v2542
        %v2555 = vadd.f32 %v2408, %v2544
        %v2556 = vmax.f32 %v2546, %v2548
        %v2557 = vmax.f32 %v2547, %v2549
        %v2558 = vmax.f32 %v2556, %v2550
        %v2559 = vmax.f32 %v2557, %v2551
        %v2560 = vmax.f32 %v2558, %v2552
        %v2561 = vmax.f32 %v2559, %v2553
        %v2562 = vmax.f32 %v2560, %v2554
        %v2563 = vmax.f32 %v2561, %v2555
        %v2564 = vld [vmem:[%s4] sm:$0xff]
        %2566 = vset.pattern.permute.xlu0 0
        %2567 = vperm.xlu0 %2566, %v2564
        %v2568 = vpop.permute.xlu0 %2567
        %v2570 = vadd.f32 %v2562, %v2568
        %v2571 = vadd.f32 %v2563, %v2568
        %v2572 = vmax.f32 %v2570, 0.0
        %v2573 = vmax.f32 %v2571, 0.0
        %v2574 = vld [vmem:[%s5] sm:$0xff]
        %v2575 = vld [vmem:[%s5 + $0x8] sm:$0xff]
        %v2576 = vld [vmem:[%s5 + $0x10] sm:$0xff]
        %v2577 = vld [vmem:[%s5 + $0x18] sm:$0xff]
        %v2578 = vld [vmem:[%s5 + $0x20] sm:$0xff]
        %v2579 = vld [vmem:[%s5 + $0x28] sm:$0xff]
        %v2580 = vld [vmem:[%s5 + $0x30] sm:$0xff]
        %v2581 = vld [vmem:[%s5 + $0x38] sm:$0xff]
        %v2582 = vld [vmem:[%s5 + $0x40] sm:$0xff]
        %v2583 = vld [vmem:[%s5 + $0x48] sm:$0xff]
        %v2584 = vld [vmem:[%s5 + $0x50] sm:$0xff]
        %v2585 = vld [vmem:[%s5 + $0x58] sm:$0xff]
        %v2586 = vld [vmem:[%s5 + $0x60] sm:$0xff]
        %v2587 = vld [vmem:[%s5 + $0x68] sm:$0xff]
        %v2588 = vld [vmem:[%s5 + $0x70] sm:$0xff]
        %v2589 = vld [vmem:[%s5 + $0x78] sm:$0xff]
        %v2590 = vld [vmem:[%s5 + $0x80] sm:$0xff]
        %v2591 = vld [vmem:[%s5 + $0x88] sm:$0xff]
        %v2592 = vld [vmem:[%s5 + $0x90] sm:$0xff]
        %v2593 = vld [vmem:[%s5 + $0x98] sm:$0xff]
        %v2594 = vld [vmem:[%s5 + $0xa0] sm:$0xff]
        %v2595 = vld [vmem:[%s5 + $0xa8] sm:$0xff]
        %v2596 = vld [vmem:[%s5 + $0xb0] sm:$0xff]
        %v2597 = vld [vmem:[%s5 + $0xb8] sm:$0xff]
        %v2598 = vld [vmem:[%s5 + $0xc0] sm:$0xff]
        %v2599 = vld [vmem:[%s5 + $0xc8] sm:$0xff]
        %v2600 = vld [vmem:[%s5 + $0xd0] sm:$0xff]
        %v2601 = vld [vmem:[%s5 + $0xd8] sm:$0xff]
        %v2602 = vld [vmem:[%s5 + $0xe0] sm:$0xff]
        %v2603 = vld [vmem:[%s5 + $0xe8] sm:$0xff]
        %v2604 = vld [vmem:[%s5 + $0xf0] sm:$0xff]
        %v2605 = vld [vmem:[%s5 + $0xf8] sm:$0xff]
        %s2606 = scalar_lea.vmem %s5, 256
        %v2607 = vld [vmem:[%s2606] sm:$0xff]
        %v2608 = vld [vmem:[%s2606 + $0x8] sm:$0xff]
        %v2609 = vld [vmem:[%s2606 + $0x10] sm:$0xff]
        %v2610 = vld [vmem:[%s2606 + $0x18] sm:$0xff]
        %v2611 = vld [vmem:[%s2606 + $0x20] sm:$0xff]
        %v2612 = vld [vmem:[%s2606 + $0x28] sm:$0xff]
        %v2613 = vld [vmem:[%s2606 + $0x30] sm:$0xff]
        %v2614 = vld [vmem:[%s2606 + $0x38] sm:$0xff]
        %v2615 = vld [vmem:[%s2606 + $0x40] sm:$0xff]
        %v2616 = vld [vmem:[%s2606 + $0x48] sm:$0xff]
        %v2617 = vld [vmem:[%s2606 + $0x50] sm:$0xff]
        %v2618 = vld [vmem:[%s2606 + $0x58] sm:$0xff]
        %v2619 = vld [vmem:[%s2606 + $0x60] sm:$0xff]
        %v2620 = vld [vmem:[%s2606 + $0x68] sm:$0xff]
        %v2621 = vld [vmem:[%s2606 + $0x70] sm:$0xff]
        %v2622 = vld [vmem:[%s2606 + $0x78] sm:$0xff]
        %v2623 = vld [vmem:[%s2606 + $0x80] sm:$0xff]
        %v2624 = vld [vmem:[%s2606 + $0x88] sm:$0xff]
        %v2625 = vld [vmem:[%s2606 + $0x90] sm:$0xff]
        %v2626 = vld [vmem:[%s2606 + $0x98] sm:$0xff]
        %v2627 = vld [vmem:[%s2606 + $0xa0] sm:$0xff]
        %v2628 = vld [vmem:[%s2606 + $0xa8] sm:$0xff]
        %v2629 = vld [vmem:[%s2606 + $0xb0] sm:$0xff]
        %v2630 = vld [vmem:[%s2606 + $0xb8] sm:$0xff]
        %v2631 = vld [vmem:[%s2606 + $0xc0] sm:$0xff]
        %v2632 = vld [vmem:[%s2606 + $0xc8] sm:$0xff]
        %v2633 = vld [vmem:[%s2606 + $0xd0] sm:$0xff]
        %v2634 = vld [vmem:[%s2606 + $0xd8] sm:$0xff]
        %v2635 = vld [vmem:[%s2606 + $0xe0] sm:$0xff]
        %v2636 = vld [vmem:[%s2606 + $0xe8] sm:$0xff]
        %v2637 = vld [vmem:[%s2606 + $0xf0] sm:$0xff]
        %v2638 = vld [vmem:[%s2606 + $0xf8] sm:$0xff]
        %v2641 = vrot.slane %v2572, 1
        %v2642 = vrot.slane %v2573, 1
        %2645 = vmatprep.subr.mxu0 0.0
        %2646 = vmatpush1.msra.mxu0 %v2607
        %2647 = vmatprep.subr.mxu0 0.0
        %2648 = vmatpush1.msra.mxu0 %v2608
        %2649 = vmatprep.subr.mxu0 0.0
        %2650 = vmatpush1.msra.mxu0 %v2609
        %2651 = vmatprep.subr.mxu0 0.0
        %2652 = vmatpush1.msra.mxu0 %v2610
        %2653 = vmatprep.subr.mxu0 0.0
        %2654 = vmatpush1.msra.mxu0 %v2611
        %2655 = vmatprep.subr.mxu0 0.0
        %2656 = vmatpush1.msra.mxu0 %v2612
        %2657 = vmatprep.subr.mxu0 0.0
        %2658 = vmatpush1.msra.mxu0 %v2613
        %2659 = vmatprep.subr.mxu0 0.0
        %2660 = vmatpush1.msra.mxu0 %v2614
        %2661 = vmatprep.subr.mxu0 0.0
        %2662 = vmatpush1.msra.mxu0 %v2615
        %2663 = vmatprep.subr.mxu0 0.0
        %2664 = vmatpush1.msra.mxu0 %v2616
        %2665 = vmatprep.subr.mxu0 0.0
        %2666 = vmatpush1.msra.mxu0 %v2617
        %2667 = vmatprep.subr.mxu0 0.0
        %2668 = vmatpush1.msra.mxu0 %v2618
        %2669 = vmatprep.subr.mxu0 0.0
        %2670 = vmatpush1.msra.mxu0 %v2619
        %2671 = vmatprep.subr.mxu0 0.0
        %2672 = vmatpush1.msra.mxu0 %v2620
        %2673 = vmatprep.subr.mxu0 0.0
        %2674 = vmatpush1.msra.mxu0 %v2621
        %2675 = vmatprep.subr.mxu0 0.0
        %2676 = vmatpush1.msra.mxu0 %v2622
        %2677 = vmatprep.subr.mxu0 0.0
        %2678 = vmatpush1.msra.mxu0 %v2623
        %2679 = vmatprep.subr.mxu0 0.0
        %2680 = vmatpush1.msra.mxu0 %v2624
        %2681 = vmatprep.subr.mxu0 0.0
        %2682 = vmatpush1.msra.mxu0 %v2625
        %2683 = vmatprep.subr.mxu0 0.0
        %2684 = vmatpush1.msra.mxu0 %v2626
        %2685 = vmatprep.subr.mxu0 0.0
        %2686 = vmatpush1.msra.mxu0 %v2627
        %2687 = vmatprep.subr.mxu0 0.0
        %2688 = vmatpush1.msra.mxu0 %v2628
        %2689 = vmatprep.subr.mxu0 0.0
        %2690 = vmatpush1.msra.mxu0 %v2629
        %2691 = vmatprep.subr.mxu0 0.0
        %2692 = vmatpush1.msra.mxu0 %v2630
        %2693 = vmatprep.subr.mxu0 0.0
        %2694 = vmatpush1.msra.mxu0 %v2631
        %2695 = vmatprep.subr.mxu0 0.0
        %2696 = vmatpush1.msra.mxu0 %v2632
        %2697 = vmatprep.subr.mxu0 0.0
        %2698 = vmatpush1.msra.mxu0 %v2633
        %2699 = vmatprep.subr.mxu0 0.0
        %2700 = vmatpush1.msra.mxu0 %v2634
        %2701 = vmatprep.subr.mxu0 0.0
        %2702 = vmatpush1.msra.mxu0 %v2635
        %2703 = vmatprep.subr.mxu0 0.0
        %2704 = vmatpush1.msra.mxu0 %v2636
        %2705 = vmatprep.subr.mxu0 0.0
        %2706 = vmatpush1.msra.mxu0 %v2637
        %2707 = vmatprep.subr.mxu0 0.0
        %2708 = vmatpush1.msra.mxu0 %v2638
        %2709 = vmatprep.mubr.f32.mxu0 %v2642
        %2710 = vmatmul.mubr.f32.gmra.mrb[0].mxu0 %v2641
        %v2711 = vpop.f32.mrb[0].mxu0
        %v2712 = vadd.f32 0.0, %v2711
        %v2713 = vpop.f32.mrb[0].mxu0
        %2714 = vdwg.mxu0
        %2715 = vmatprep.subr.mxu0 0.0
        %2716 = vmatpush1.msra.mxu0 %v2574
        %2717 = vmatprep.subr.mxu0 0.0
        %2718 = vmatpush1.msra.mxu0 %v2575
        %2719 = vmatprep.subr.mxu0 0.0
        %2720 = vmatpush1.msra.mxu0 %v2576
        %2721 = vmatprep.subr.mxu0 0.0
        %2722 = vmatpush1.msra.mxu0 %v2577
        %2723 = vmatprep.subr.mxu0 0.0
        %2724 = vmatpush1.msra.mxu0 %v2578
        %2725 = vmatprep.subr.mxu0 0.0
        %2726 = vmatpush1.msra.mxu0 %v2579
        %2727 = vmatprep.subr.mxu0 0.0
        %2728 = vmatpush1.msra.mxu0 %v2580
        %2729 = vmatprep.subr.mxu0 0.0
        %2730 = vmatpush1.msra.mxu0 %v2581
        %2731 = vmatprep.subr.mxu0 0.0
        %2732 = vmatpush1.msra.mxu0 %v2582
        %2733 = vmatprep.subr.mxu0 0.0
        %2734 = vmatpush1.msra.mxu0 %v2583
        %2735 = vmatprep.subr.mxu0 0.0
        %2736 = vmatpush1.msra.mxu0 %v2584
        %2737 = vmatprep.subr.mxu0 0.0
        %2738 = vmatpush1.msra.mxu0 %v2585
        %2739 = vmatprep.subr.mxu0 0.0
        %2740 = vmatpush1.msra.mxu0 %v2586
        %2741 = vmatprep.subr.mxu0 0.0
        %2742 = vmatpush1.msra.mxu0 %v2587
        %2743 = vmatprep.subr.mxu0 0.0
        %2744 = vmatpush1.msra.mxu0 %v2588
        %2745 = vmatprep.subr.mxu0 0.0
        %2746 = vmatpush1.msra.mxu0 %v2589
        %2747 = vmatprep.subr.mxu0 0.0
        %2748 = vmatpush1.msra.mxu0 %v2590
        %2749 = vmatprep.subr.mxu0 0.0
        %2750 = vmatpush1.msra.mxu0 %v2591
        %2751 = vmatprep.subr.mxu0 0.0
        %2752 = vmatpush1.msra.mxu0 %v2592
        %2753 = vmatprep.subr.mxu0 0.0
        %2754 = vmatpush1.msra.mxu0 %v2593
        %2755 = vmatprep.subr.mxu0 0.0
        %2756 = vmatpush1.msra.mxu0 %v2594
        %2757 = vmatprep.subr.mxu0 0.0
        %2758 = vmatpush1.msra.mxu0 %v2595
        %2759 = vmatprep.subr.mxu0 0.0
        %2760 = vmatpush1.msra.mxu0 %v2596
        %2761 = vmatprep.subr.mxu0 0.0
        %2762 = vmatpush1.msra.mxu0 %v2597
        %2763 = vmatprep.subr.mxu0 0.0
        %2764 = vmatpush1.msra.mxu0 %v2598
        %2765 = vmatprep.subr.mxu0 0.0
        %2766 = vmatpush1.msra.mxu0 %v2599
        %2767 = vmatprep.subr.mxu0 0.0
        %2768 = vmatpush1.msra.mxu0 %v2600
        %2769 = vmatprep.subr.mxu0 0.0
        %2770 = vmatpush1.msra.mxu0 %v2601
        %2771 = vmatprep.subr.mxu0 0.0
        %2772 = vmatpush1.msra.mxu0 %v2602
        %2773 = vmatprep.subr.mxu0 0.0
        %2774 = vmatpush1.msra.mxu0 %v2603
        %2775 = vmatprep.subr.mxu0 0.0
        %2776 = vmatpush1.msra.mxu0 %v2604
        %2777 = vmatprep.subr.mxu0 0.0
        %2778 = vmatpush1.msra.mxu0 %v2605
        %2779 = vmatprep.mubr.f32.mxu0 %v2573
        %2780 = vmatmul.mubr.f32.gmra.mrb[0].mxu0 %v2572
        %v2781 = vpop.f32.mrb[0].mxu0
        %v2782 = vadd.f32 %v2712, %v2781
        %v2783 = vpop.f32.mrb[0].mxu0
        %2784 = vdwg.mxu0
        %s2785 = scalar_lea.vmem %s5, 512
        %v2786 = vld [vmem:[%s2785] sm:$0xff]
        %v2787 = vld [vmem:[%s2785 + $0x8] sm:$0xff]
        %v2788 = vld [vmem:[%s2785 + $0x10] sm:$0xff]
        %v2789 = vld [vmem:[%s2785 + $0x18] sm:$0xff]
        %v2790 = vld [vmem:[%s2785 + $0x20] sm:$0xff]
        %v2791 = vld [vmem:[%s2785 + $0x28] sm:$0xff]
        %v2792 = vld [vmem:[%s2785 + $0x30] sm:$0xff]
        %v2793 = vld [vmem:[%s2785 + $0x38] sm:$0xff]
        %v2794 = vld [vmem:[%s2785 + $0x40] sm:$0xff]
        %v2795 = vld [vmem:[%s2785 + $0x48] sm:$0xff]
        %v2796 = vld [vmem:[%s2785 + $0x50] sm:$0xff]
        %v2797 = vld [vmem:[%s2785 + $0x58] sm:$0xff]
        %v2798 = vld [vmem:[%s2785 + $0x60] sm:$0xff]
        %v2799 = vld [vmem:[%s2785 + $0x68] sm:$0xff]
        %v2800 = vld [vmem:[%s2785 + $0x70] sm:$0xff]
        %v2801 = vld [vmem:[%s2785 + $0x78] sm:$0xff]
        %v2802 = vld [vmem:[%s2785 + $0x80] sm:$0xff]
        %v2803 = vld [vmem:[%s2785 + $0x88] sm:$0xff]
        %v2804 = vld [vmem:[%s2785 + $0x90] sm:$0xff]
        %v2805 = vld [vmem:[%s2785 + $0x98] sm:$0xff]
        %v2806 = vld [vmem:[%s2785 + $0xa0] sm:$0xff]
        %v2807 = vld [vmem:[%s2785 + $0xa8] sm:$0xff]
        %v2808 = vld [vmem:[%s2785 + $0xb0] sm:$0xff]
        %v2809 = vld [vmem:[%s2785 + $0xb8] sm:$0xff]
        %v2810 = vld [vmem:[%s2785 + $0xc0] sm:$0xff]
        %v2811 = vld [vmem:[%s2785 + $0xc8] sm:$0xff]
        %v2812 = vld [vmem:[%s2785 + $0xd0] sm:$0xff]
        %v2813 = vld [vmem:[%s2785 + $0xd8] sm:$0xff]
        %v2814 = vld [vmem:[%s2785 + $0xe0] sm:$0xff]
        %v2815 = vld [vmem:[%s2785 + $0xe8] sm:$0xff]
        %v2816 = vld [vmem:[%s2785 + $0xf0] sm:$0xff]
        %v2817 = vld [vmem:[%s2785 + $0xf8] sm:$0xff]
        %v2818 = vrot.slane %v2572, 2
        %v2819 = vrot.slane %v2573, 2
        %2822 = vmatprep.subr.mxu0 0.0
        %2823 = vmatpush1.msra.mxu0 %v2786
        %2824 = vmatprep.subr.mxu0 0.0
        %2825 = vmatpush1.msra.mxu0 %v2787
        %2826 = vmatprep.subr.mxu0 0.0
        %2827 = vmatpush1.msra.mxu0 %v2788
        %2828 = vmatprep.subr.mxu0 0.0
        %2829 = vmatpush1.msra.mxu0 %v2789
        %2830 = vmatprep.subr.mxu0 0.0
        %2831 = vmatpush1.msra.mxu0 %v2790
        %2832 = vmatprep.subr.mxu0 0.0
        %2833 = vmatpush1.msra.mxu0 %v2791
        %2834 = vmatprep.subr.mxu0 0.0
        %2835 = vmatpush1.msra.mxu0 %v2792
        %2836 = vmatprep.subr.mxu0 0.0
        %2837 = vmatpush1.msra.mxu0 %v2793
        %2838 = vmatprep.subr.mxu0 0.0
        %2839 = vmatpush1.msra.mxu0 %v2794
        %2840 = vmatprep.subr.mxu0 0.0
        %2841 = vmatpush1.msra.mxu0 %v2795
        %2842 = vmatprep.subr.mxu0 0.0
        %2843 = vmatpush1.msra.mxu0 %v2796
        %2844 = vmatprep.subr.mxu0 0.0
        %2845 = vmatpush1.msra.mxu0 %v2797
        %2846 = vmatprep.subr.mxu0 0.0
        %2847 = vmatpush1.msra.mxu0 %v2798
        %2848 = vmatprep.subr.mxu0 0.0
        %2849 = vmatpush1.msra.mxu0 %v2799
        %2850 = vmatprep.subr.mxu0 0.0
        %2851 = vmatpush1.msra.mxu0 %v2800
        %2852 = vmatprep.subr.mxu0 0.0
        %2853 = vmatpush1.msra.mxu0 %v2801
        %2854 = vmatprep.subr.mxu0 0.0
        %2855 = vmatpush1.msra.mxu0 %v2802
        %2856 = vmatprep.subr.mxu0 0.0
        %2857 = vmatpush1.msra.mxu0 %v2803
        %2858 = vmatprep.subr.mxu0 0.0
        %2859 = vmatpush1.msra.mxu0 %v2804
        %2860 = vmatprep.subr.mxu0 0.0
        %2861 = vmatpush1.msra.mxu0 %v2805
        %2862 = vmatprep.subr.mxu0 0.0
        %2863 = vmatpush1.msra.mxu0 %v2806
        %2864 = vmatprep.subr.mxu0 0.0
        %2865 = vmatpush1.msra.mxu0 %v2807
        %2866 = vmatprep.subr.mxu0 0.0
        %2867 = vmatpush1.msra.mxu0 %v2808
        %2868 = vmatprep.subr.mxu0 0.0
        %2869 = vmatpush1.msra.mxu0 %v2809
        %2870 = vmatprep.subr.mxu0 0.0
        %2871 = vmatpush1.msra.mxu0 %v2810
        %2872 = vmatprep.subr.mxu0 0.0
        %2873 = vmatpush1.msra.mxu0 %v2811
        %2874 = vmatprep.subr.mxu0 0.0
        %2875 = vmatpush1.msra.mxu0 %v2812
        %2876 = vmatprep.subr.mxu0 0.0
        %2877 = vmatpush1.msra.mxu0 %v2813
        %2878 = vmatprep.subr.mxu0 0.0
        %2879 = vmatpush1.msra.mxu0 %v2814
        %2880 = vmatprep.subr.mxu0 0.0
        %2881 = vmatpush1.msra.mxu0 %v2815
        %2882 = vmatprep.subr.mxu0 0.0
        %2883 = vmatpush1.msra.mxu0 %v2816
        %2884 = vmatprep.subr.mxu0 0.0
        %2885 = vmatpush1.msra.mxu0 %v2817
        %2886 = vmatprep.mubr.f32.mxu0 %v2819
        %2887 = vmatmul.mubr.f32.gmra.mrb[0].mxu0 %v2818
        %v2888 = vpop.f32.mrb[0].mxu0
        %v2889 = vadd.f32 0.0, %v2888
        %v2890 = vpop.f32.mrb[0].mxu0
        %2891 = vdwg.mxu0
        %v2892 = vadd.f32 %v2782, %v2889
        %s2893 = scalar_lea.vmem %s5, 768
        %v2894 = vld [vmem:[%s2893] sm:$0xff]
        %v2895 = vld [vmem:[%s2893 + $0x8] sm:$0xff]
        %v2896 = vld [vmem:[%s2893 + $0x10] sm:$0xff]
        %v2897 = vld [vmem:[%s2893 + $0x18] sm:$0xff]
        %v2898 = vld [vmem:[%s2893 + $0x20] sm:$0xff]
        %v2899 = vld [vmem:[%s2893 + $0x28] sm:$0xff]
        %v2900 = vld [vmem:[%s2893 + $0x30] sm:$0xff]
        %v2901 = vld [vmem:[%s2893 + $0x38] sm:$0xff]
        %v2902 = vld [vmem:[%s2893 + $0x40] sm:$0xff]
        %v2903 = vld [vmem:[%s2893 + $0x48] sm:$0xff]
        %v2904 = vld [vmem:[%s2893 + $0x50] sm:$0xff]
        %v2905 = vld [vmem:[%s2893 + $0x58] sm:$0xff]
        %v2906 = vld [vmem:[%s2893 + $0x60] sm:$0xff]
        %v2907 = vld [vmem:[%s2893 + $0x68] sm:$0xff]
        %v2908 = vld [vmem:[%s2893 + $0x70] sm:$0xff]
        %v2909 = vld [vmem:[%s2893 + $0x78] sm:$0xff]
        %v2910 = vld [vmem:[%s2893 + $0x80] sm:$0xff]
        %v2911 = vld [vmem:[%s2893 + $0x88] sm:$0xff]
        %v2912 = vld [vmem:[%s2893 + $0x90] sm:$0xff]
        %v2913 = vld [vmem:[%s2893 + $0x98] sm:$0xff]
        %v2914 = vld [vmem:[%s2893 + $0xa0] sm:$0xff]
        %v2915 = vld [vmem:[%s2893 + $0xa8] sm:$0xff]
        %v2916 = vld [vmem:[%s2893 + $0xb0] sm:$0xff]
        %v2917 = vld [vmem:[%s2893 + $0xb8] sm:$0xff]
        %v2918 = vld [vmem:[%s2893 + $0xc0] sm:$0xff]
        %v2919 = vld [vmem:[%s2893 + $0xc8] sm:$0xff]
        %v2920 = vld [vmem:[%s2893 + $0xd0] sm:$0xff]
        %v2921 = vld [vmem:[%s2893 + $0xd8] sm:$0xff]
        %v2922 = vld [vmem:[%s2893 + $0xe0] sm:$0xff]
        %v2923 = vld [vmem:[%s2893 + $0xe8] sm:$0xff]
        %v2924 = vld [vmem:[%s2893 + $0xf0] sm:$0xff]
        %v2925 = vld [vmem:[%s2893 + $0xf8] sm:$0xff]
        %v2926 = vrot.slane %v2572, 3
        %v2927 = vrot.slane %v2573, 3
        %2930 = vmatprep.subr.mxu0 0.0
        %2931 = vmatpush1.msra.mxu0 %v2894
        %2932 = vmatprep.subr.mxu0 0.0
        %2933 = vmatpush1.msra.mxu0 %v2895
        %2934 = vmatprep.subr.mxu0 0.0
        %2935 = vmatpush1.msra.mxu0 %v2896
        %2936 = vmatprep.subr.mxu0 0.0
        %2937 = vmatpush1.msra.mxu0 %v2897
        %2938 = vmatprep.subr.mxu0 0.0
        %2939 = vmatpush1.msra.mxu0 %v2898
        %2940 = vmatprep.subr.mxu0 0.0
        %2941 = vmatpush1.msra.mxu0 %v2899
        %2942 = vmatprep.subr.mxu0 0.0
        %2943 = vmatpush1.msra.mxu0 %v2900
        %2944 = vmatprep.subr.mxu0 0.0
        %2945 = vmatpush1.msra.mxu0 %v2901
        %2946 = vmatprep.subr.mxu0 0.0
        %2947 = vmatpush1.msra.mxu0 %v2902
        %2948 = vmatprep.subr.mxu0 0.0
        %2949 = vmatpush1.msra.mxu0 %v2903
        %2950 = vmatprep.subr.mxu0 0.0
        %2951 = vmatpush1.msra.mxu0 %v2904
        %2952 = vmatprep.subr.mxu0 0.0
        %2953 = vmatpush1.msra.mxu0 %v2905
        %2954 = vmatprep.subr.mxu0 0.0
        %2955 = vmatpush1.msra.mxu0 %v2906
        %2956 = vmatprep.subr.mxu0 0.0
        %2957 = vmatpush1.msra.mxu0 %v2907
        %2958 = vmatprep.subr.mxu0 0.0
        %2959 = vmatpush1.msra.mxu0 %v2908
        %2960 = vmatprep.subr.mxu0 0.0
        %2961 = vmatpush1.msra.mxu0 %v2909
        %2962 = vmatprep.subr.mxu0 0.0
        %2963 = vmatpush1.msra.mxu0 %v2910
        %2964 = vmatprep.subr.mxu0 0.0
        %2965 = vmatpush1.msra.mxu0 %v2911
        %2966 = vmatprep.subr.mxu0 0.0
        %2967 = vmatpush1.msra.mxu0 %v2912
        %2968 = vmatprep.subr.mxu0 0.0
        %2969 = vmatpush1.msra.mxu0 %v2913
        %2970 = vmatprep.subr.mxu0 0.0
        %2971 = vmatpush1.msra.mxu0 %v2914
        %2972 = vmatprep.subr.mxu0 0.0
        %2973 = vmatpush1.msra.mxu0 %v2915
        %2974 = vmatprep.subr.mxu0 0.0
        %2975 = vmatpush1.msra.mxu0 %v2916
        %2976 = vmatprep.subr.mxu0 0.0
        %2977 = vmatpush1.msra.mxu0 %v2917
        %2978 = vmatprep.subr.mxu0 0.0
        %2979 = vmatpush1.msra.mxu0 %v2918
        %2980 = vmatprep.subr.mxu0 0.0
        %2981 = vmatpush1.msra.mxu0 %v2919
        %2982 = vmatprep.subr.mxu0 0.0
        %2983 = vmatpush1.msra.mxu0 %v2920
        %2984 = vmatprep.subr.mxu0 0.0
        %2985 = vmatpush1.msra.mxu0 %v2921
        %2986 = vmatprep.subr.mxu0 0.0
        %2987 = vmatpush1.msra.mxu0 %v2922
        %2988 = vmatprep.subr.mxu0 0.0
        %2989 = vmatpush1.msra.mxu0 %v2923
        %2990 = vmatprep.subr.mxu0 0.0
        %2991 = vmatpush1.msra.mxu0 %v2924
        %2992 = vmatprep.subr.mxu0 0.0
        %2993 = vmatpush1.msra.mxu0 %v2925
        %2994 = vmatprep.mubr.f32.mxu0 %v2927
        %2995 = vmatmul.mubr.f32.gmra.mrb[0].mxu0 %v2926
        %v2996 = vpop.f32.mrb[0].mxu0
        %v2997 = vadd.f32 0.0, %v2996
        %v2998 = vpop.f32.mrb[0].mxu0
        %2999 = vdwg.mxu0
        %v3000 = vadd.f32 %v2892, %v2997
        %s3001 = scalar_lea.vmem %s5, 1024
        %v3002 = vld [vmem:[%s3001] sm:$0xff]
        %v3003 = vld [vmem:[%s3001 + $0x8] sm:$0xff]
        %v3004 = vld [vmem:[%s3001 + $0x10] sm:$0xff]
        %v3005 = vld [vmem:[%s3001 + $0x18] sm:$0xff]
        %v3006 = vld [vmem:[%s3001 + $0x20] sm:$0xff]
        %v3007 = vld [vmem:[%s3001 + $0x28] sm:$0xff]
        %v3008 = vld [vmem:[%s3001 + $0x30] sm:$0xff]
        %v3009 = vld [vmem:[%s3001 + $0x38] sm:$0xff]
        %v3010 = vld [vmem:[%s3001 + $0x40] sm:$0xff]
        %v3011 = vld [vmem:[%s3001 + $0x48] sm:$0xff]
        %v3012 = vld [vmem:[%s3001 + $0x50] sm:$0xff]
        %v3013 = vld [vmem:[%s3001 + $0x58] sm:$0xff]
        %v3014 = vld [vmem:[%s3001 + $0x60] sm:$0xff]
        %v3015 = vld [vmem:[%s3001 + $0x68] sm:$0xff]
        %v3016 = vld [vmem:[%s3001 + $0x70] sm:$0xff]
        %v3017 = vld [vmem:[%s3001 + $0x78] sm:$0xff]
        %v3018 = vld [vmem:[%s3001 + $0x80] sm:$0xff]
        %v3019 = vld [vmem:[%s3001 + $0x88] sm:$0xff]
        %v3020 = vld [vmem:[%s3001 + $0x90] sm:$0xff]
        %v3021 = vld [vmem:[%s3001 + $0x98] sm:$0xff]
        %v3022 = vld [vmem:[%s3001 + $0xa0] sm:$0xff]
        %v3023 = vld [vmem:[%s3001 + $0xa8] sm:$0xff]
        %v3024 = vld [vmem:[%s3001 + $0xb0] sm:$0xff]
        %v3025 = vld [vmem:[%s3001 + $0xb8] sm:$0xff]
        %v3026 = vld [vmem:[%s3001 + $0xc0] sm:$0xff]
        %v3027 = vld [vmem:[%s3001 + $0xc8] sm:$0xff]
        %v3028 = vld [vmem:[%s3001 + $0xd0] sm:$0xff]
        %v3029 = vld [vmem:[%s3001 + $0xd8] sm:$0xff]
        %v3030 = vld [vmem:[%s3001 + $0xe0] sm:$0xff]
        %v3031 = vld [vmem:[%s3001 + $0xe8] sm:$0xff]
        %v3032 = vld [vmem:[%s3001 + $0xf0] sm:$0xff]
        %v3033 = vld [vmem:[%s3001 + $0xf8] sm:$0xff]
        %v3034 = vrot.slane %v2572, 4
        %v3035 = vrot.slane %v2573, 4
        %3038 = vmatprep.subr.mxu0 0.0
        %3039 = vmatpush1.msra.mxu0 %v3002
        %3040 = vmatprep.subr.mxu0 0.0
        %3041 = vmatpush1.msra.mxu0 %v3003
        %3042 = vmatprep.subr.mxu0 0.0
        %3043 = vmatpush1.msra.mxu0 %v3004
        %3044 = vmatprep.subr.mxu0 0.0
        %3045 = vmatpush1.msra.mxu0 %v3005
        %3046 = vmatprep.subr.mxu0 0.0
        %3047 = vmatpush1.msra.mxu0 %v3006
        %3048 = vmatprep.subr.mxu0 0.0
        %3049 = vmatpush1.msra.mxu0 %v3007
        %3050 = vmatprep.subr.mxu0 0.0
        %3051 = vmatpush1.msra.mxu0 %v3008
        %3052 = vmatprep.subr.mxu0 0.0
        %3053 = vmatpush1.msra.mxu0 %v3009
        %3054 = vmatprep.subr.mxu0 0.0
        %3055 = vmatpush1.msra.mxu0 %v3010
        %3056 = vmatprep.subr.mxu0 0.0
        %3057 = vmatpush1.msra.mxu0 %v3011
        %3058 = vmatprep.subr.mxu0 0.0
        %3059 = vmatpush1.msra.mxu0 %v3012
        %3060 = vmatprep.subr.mxu0 0.0
        %3061 = vmatpush1.msra.mxu0 %v3013
        %3062 = vmatprep.subr.mxu0 0.0
        %3063 = vmatpush1.msra.mxu0 %v3014
        %3064 = vmatprep.subr.mxu0 0.0
        %3065 = vmatpush1.msra.mxu0 %v3015
        %3066 = vmatprep.subr.mxu0 0.0
        %3067 = vmatpush1.msra.mxu0 %v3016
        %3068 = vmatprep.subr.mxu0 0.0
        %3069 = vmatpush1.msra.mxu0 %v3017
        %3070 = vmatprep.subr.mxu0 0.0
        %3071 = vmatpush1.msra.mxu0 %v3018
        %3072 = vmatprep.subr.mxu0 0.0
        %3073 = vmatpush1.msra.mxu0 %v3019
        %3074 = vmatprep.subr.mxu0 0.0
        %3075 = vmatpush1.msra.mxu0 %v3020
        %3076 = vmatprep.subr.mxu0 0.0
        %3077 = vmatpush1.msra.mxu0 %v3021
        %3078 = vmatprep.subr.mxu0 0.0
        %3079 = vmatpush1.msra.mxu0 %v3022
        %3080 = vmatprep.subr.mxu0 0.0
        %3081 = vmatpush1.msra.mxu0 %v3023
        %3082 = vmatprep.subr.mxu0 0.0
        %3083 = vmatpush1.msra.mxu0 %v3024
        %3084 = vmatprep.subr.mxu0 0.0
        %3085 = vmatpush1.msra.mxu0 %v3025
        %3086 = vmatprep.subr.mxu0 0.0
        %3087 = vmatpush1.msra.mxu0 %v3026
        %3088 = vmatprep.subr.mxu0 0.0
        %3089 = vmatpush1.msra.mxu0 %v3027
        %3090 = vmatprep.subr.mxu0 0.0
        %3091 = vmatpush1.msra.mxu0 %v3028
        %3092 = vmatprep.subr.mxu0 0.0
        %3093 = vmatpush1.msra.mxu0 %v3029
        %3094 = vmatprep.subr.mxu0 0.0
        %3095 = vmatpush1.msra.mxu0 %v3030
        %3096 = vmatprep.subr.mxu0 0.0
        %3097 = vmatpush1.msra.mxu0 %v3031
        %3098 = vmatprep.subr.mxu0 0.0
        %3099 = vmatpush1.msra.mxu0 %v3032
        %3100 = vmatprep.subr.mxu0 0.0
        %3101 = vmatpush1.msra.mxu0 %v3033
        %3102 = vmatprep.mubr.f32.mxu0 %v3035
        %3103 = vmatmul.mubr.f32.gmra.mrb[0].mxu0 %v3034
        %v3104 = vpop.f32.mrb[0].mxu0
        %v3105 = vadd.f32 0.0, %v3104
        %v3106 = vpop.f32.mrb[0].mxu0
        %3107 = vdwg.mxu0
        %v3108 = vadd.f32 %v3000, %v3105
        %s3109 = scalar_lea.vmem %s5, 1280
        %v3110 = vld [vmem:[%s3109] sm:$0xff]
        %v3111 = vld [vmem:[%s3109 + $0x8] sm:$0xff]
        %v3112 = vld [vmem:[%s3109 + $0x10] sm:$0xff]
        %v3113 = vld [vmem:[%s3109 + $0x18] sm:$0xff]
        %v3114 = vld [vmem:[%s3109 + $0x20] sm:$0xff]
        %v3115 = vld [vmem:[%s3109 + $0x28] sm:$0xff]
        %v3116 = vld [vmem:[%s3109 + $0x30] sm:$0xff]
        %v3117 = vld [vmem:[%s3109 + $0x38] sm:$0xff]
        %v3118 = vld [vmem:[%s3109 + $0x40] sm:$0xff]
        %v3119 = vld [vmem:[%s3109 + $0x48] sm:$0xff]
        %v3120 = vld [vmem:[%s3109 + $0x50] sm:$0xff]
        %v3121 = vld [vmem:[%s3109 + $0x58] sm:$0xff]
        %v3122 = vld [vmem:[%s3109 + $0x60] sm:$0xff]
        %v3123 = vld [vmem:[%s3109 + $0x68] sm:$0xff]
        %v3124 = vld [vmem:[%s3109 + $0x70] sm:$0xff]
        %v3125 = vld [vmem:[%s3109 + $0x78] sm:$0xff]
        %v3126 = vld [vmem:[%s3109 + $0x80] sm:$0xff]
        %v3127 = vld [vmem:[%s3109 + $0x88] sm:$0xff]
        %v3128 = vld [vmem:[%s3109 + $0x90] sm:$0xff]
        %v3129 = vld [vmem:[%s3109 + $0x98] sm:$0xff]
        %v3130 = vld [vmem:[%s3109 + $0xa0] sm:$0xff]
        %v3131 = vld [vmem:[%s3109 + $0xa8] sm:$0xff]
        %v3132 = vld [vmem:[%s3109 + $0xb0] sm:$0xff]
        %v3133 = vld [vmem:[%s3109 + $0xb8] sm:$0xff]
        %v3134 = vld [vmem:[%s3109 + $0xc0] sm:$0xff]
        %v3135 = vld [vmem:[%s3109 + $0xc8] sm:$0xff]
        %v3136 = vld [vmem:[%s3109 + $0xd0] sm:$0xff]
        %v3137 = vld [vmem:[%s3109 + $0xd8] sm:$0xff]
        %v3138 = vld [vmem:[%s3109 + $0xe0] sm:$0xff]
        %v3139 = vld [vmem:[%s3109 + $0xe8] sm:$0xff]
        %v3140 = vld [vmem:[%s3109 + $0xf0] sm:$0xff]
        %v3141 = vld [vmem:[%s3109 + $0xf8] sm:$0xff]
        %v3142 = vrot.slane %v2572, 5
        %v3143 = vrot.slane %v2573, 5
        %3146 = vmatprep.subr.mxu0 0.0
        %3147 = vmatpush1.msra.mxu0 %v3110
        %3148 = vmatprep.subr.mxu0 0.0
        %3149 = vmatpush1.msra.mxu0 %v3111
        %3150 = vmatprep.subr.mxu0 0.0
        %3151 = vmatpush1.msra.mxu0 %v3112
        %3152 = vmatprep.subr.mxu0 0.0
        %3153 = vmatpush1.msra.mxu0 %v3113
        %3154 = vmatprep.subr.mxu0 0.0
        %3155 = vmatpush1.msra.mxu0 %v3114
        %3156 = vmatprep.subr.mxu0 0.0
        %3157 = vmatpush1.msra.mxu0 %v3115
        %3158 = vmatprep.subr.mxu0 0.0
        %3159 = vmatpush1.msra.mxu0 %v3116
        %3160 = vmatprep.subr.mxu0 0.0
        %3161 = vmatpush1.msra.mxu0 %v3117
        %3162 = vmatprep.subr.mxu0 0.0
        %3163 = vmatpush1.msra.mxu0 %v3118
        %3164 = vmatprep.subr.mxu0 0.0
        %3165 = vmatpush1.msra.mxu0 %v3119
        %3166 = vmatprep.subr.mxu0 0.0
        %3167 = vmatpush1.msra.mxu0 %v3120
        %3168 = vmatprep.subr.mxu0 0.0
        %3169 = vmatpush1.msra.mxu0 %v3121
        %3170 = vmatprep.subr.mxu0 0.0
        %3171 = vmatpush1.msra.mxu0 %v3122
        %3172 = vmatprep.subr.mxu0 0.0
        %3173 = vmatpush1.msra.mxu0 %v3123
        %3174 = vmatprep.subr.mxu0 0.0
        %3175 = vmatpush1.msra.mxu0 %v3124
        %3176 = vmatprep.subr.mxu0 0.0
        %3177 = vmatpush1.msra.mxu0 %v3125
        %3178 = vmatprep.subr.mxu0 0.0
        %3179 = vmatpush1.msra.mxu0 %v3126
        %3180 = vmatprep.subr.mxu0 0.0
        %3181 = vmatpush1.msra.mxu0 %v3127
        %3182 = vmatprep.subr.mxu0 0.0
        %3183 = vmatpush1.msra.mxu0 %v3128
        %3184 = vmatprep.subr.mxu0 0.0
        %3185 = vmatpush1.msra.mxu0 %v3129
        %3186 = vmatprep.subr.mxu0 0.0
        %3187 = vmatpush1.msra.mxu0 %v3130
        %3188 = vmatprep.subr.mxu0 0.0
        %3189 = vmatpush1.msra.mxu0 %v3131
        %3190 = vmatprep.subr.mxu0 0.0
        %3191 = vmatpush1.msra.mxu0 %v3132
        %3192 = vmatprep.subr.mxu0 0.0
        %3193 = vmatpush1.msra.mxu0 %v3133
        %3194 = vmatprep.subr.mxu0 0.0
        %3195 = vmatpush1.msra.mxu0 %v3134
        %3196 = vmatprep.subr.mxu0 0.0
        %3197 = vmatpush1.msra.mxu0 %v3135
        %3198 = vmatprep.subr.mxu0 0.0
        %3199 = vmatpush1.msra.mxu0 %v3136
        %3200 = vmatprep.subr.mxu0 0.0
        %3201 = vmatpush1.msra.mxu0 %v3137
        %3202 = vmatprep.subr.mxu0 0.0
        %3203 = vmatpush1.msra.mxu0 %v3138
        %3204 = vmatprep.subr.mxu0 0.0
        %3205 = vmatpush1.msra.mxu0 %v3139
        %3206 = vmatprep.subr.mxu0 0.0
        %3207 = vmatpush1.msra.mxu0 %v3140
        %3208 = vmatprep.subr.mxu0 0.0
        %3209 = vmatpush1.msra.mxu0 %v3141
        %3210 = vmatprep.mubr.f32.mxu0 %v3143
        %3211 = vmatmul.mubr.f32.gmra.mrb[0].mxu0 %v3142
        %v3212 = vpop.f32.mrb[0].mxu0
        %v3213 = vadd.f32 0.0, %v3212
        %v3214 = vpop.f32.mrb[0].mxu0
        %3215 = vdwg.mxu0
        %v3216 = vadd.f32 %v3108, %v3213
        %v3217 = vld [vmem:[%s6] sm:$0x1]
        %v3218 = vadd.f32 %v3216, %v3217
        %v3219 = vmax.f32 %v3218, 0.0
        %v3220 = vld [vmem:[%s7] sm:$0xff]
        %v3221 = vld [vmem:[%s7 + $0x8] sm:$0xff]
        %v3222 = vld [vmem:[%s7 + $0x10] sm:$0xff]
        %v3223 = vld [vmem:[%s7 + $0x18] sm:$0xff]
        %v3224 = vld [vmem:[%s7 + $0x20] sm:$0xff]
        %v3225 = vld [vmem:[%s7 + $0x28] sm:$0xff]
        %v3226 = vld [vmem:[%s7 + $0x30] sm:$0xff]
        %v3227 = vld [vmem:[%s7 + $0x38] sm:$0xff]
        %v3228 = vld [vmem:[%s7 + $0x40] sm:$0xff]
        %v3229 = vld [vmem:[%s7 + $0x48] sm:$0xff]
        %v3230 = vld [vmem:[%s7 + $0x50] sm:$0xff]
        %v3231 = vld [vmem:[%s7 + $0x58] sm:$0xff]
        %v3232 = vld [vmem:[%s7 + $0x60] sm:$0xff]
        %v3233 = vld [vmem:[%s7 + $0x68] sm:$0xff]
        %v3234 = vld [vmem:[%s7 + $0x70] sm:$0xff]
        %v3235 = vld [vmem:[%s7 + $0x78] sm:$0xff]
        %v3236 = vld [vmem:[%s8] sm:$0x1]
        %3237 = vmatprep.subr.mxu0 0.0
        %3238 = vmatpush1.msra.mxu0 %v3220
        %3239 = vmatprep.subr.mxu0 0.0
        %3240 = vmatpush1.msra.mxu0 %v3221
        %3241 = vmatprep.subr.mxu0 0.0
        %3242 = vmatpush1.msra.mxu0 %v3222
        %3243 = vmatprep.subr.mxu0 0.0
        %3244 = vmatpush1.msra.mxu0 %v3223
        %3245 = vmatprep.subr.mxu0 0.0
        %3246 = vmatpush1.msra.mxu0 %v3224
        %3247 = vmatprep.subr.mxu0 0.0
        %3248 = vmatpush1.msra.mxu0 %v3225
        %3249 = vmatprep.subr.mxu0 0.0
        %3250 = vmatpush1.msra.mxu0 %v3226
        %3251 = vmatprep.subr.mxu0 0.0
        %3252 = vmatpush1.msra.mxu0 %v3227
        %3253 = vmatprep.subr.mxu0 0.0
        %3254 = vmatpush1.msra.mxu0 %v3228
        %3255 = vmatprep.subr.mxu0 0.0
        %3256 = vmatpush1.msra.mxu0 %v3229
        %3257 = vmatprep.subr.mxu0 0.0
        %3258 = vmatpush1.msra.mxu0 %v3230
        %3259 = vmatprep.subr.mxu0 0.0
        %3260 = vmatpush1.msra.mxu0 %v3231
        %3261 = vmatprep.subr.mxu0 0.0
        %3262 = vmatpush1.msra.mxu0 %v3232
        %3263 = vmatprep.subr.mxu0 0.0
        %3264 = vmatpush1.msra.mxu0 %v3233
        %3265 = vmatprep.subr.mxu0 0.0
        %3266 = vmatpush1.msra.mxu0 %v3234
        %3267 = vmatprep.subr.mxu0 0.0
        %3268 = vmatpush1.msra.mxu0 %v3235
        %3269 = vmatprep.subr.mxu0 0.0
        %3270 = vmatpush1.msra.mxu0 0.0
        %3271 = vmatprep.subr.mxu0 0.0
        %3272 = vmatpush1.msra.mxu0 0.0
        %3273 = vmatprep.subr.mxu0 0.0
        %3274 = vmatpush1.msra.mxu0 0.0
        %3275 = vmatprep.subr.mxu0 0.0
        %3276 = vmatpush1.msra.mxu0 0.0
        %3277 = vmatprep.subr.mxu0 0.0
        %3278 = vmatpush1.msra.mxu0 0.0
        %3279 = vmatprep.subr.mxu0 0.0
        %3280 = vmatpush1.msra.mxu0 0.0
        %3281 = vmatprep.subr.mxu0 0.0
        %3282 = vmatpush1.msra.mxu0 0.0
        %3283 = vmatprep.subr.mxu0 0.0
        %3284 = vmatpush1.msra.mxu0 0.0
        %3285 = vmatprep.subr.mxu0 0.0
        %3286 = vmatpush1.msra.mxu0 0.0
        %3287 = vmatprep.subr.mxu0 0.0
        %3288 = vmatpush1.msra.mxu0 0.0
        %3289 = vmatprep.subr.mxu0 0.0
        %3290 = vmatpush1.msra.mxu0 0.0
        %3291 = vmatprep.subr.mxu0 0.0
        %3292 = vmatpush1.msra.mxu0 0.0
        %3293 = vmatprep.subr.mxu0 0.0
        %3294 = vmatpush1.msra.mxu0 0.0
        %3295 = vmatprep.subr.mxu0 0.0
        %3296 = vmatpush1.msra.mxu0 0.0
        %3297 = vmatprep.subr.mxu0 0.0
        %3298 = vmatpush1.msra.mxu0 0.0
        %3299 = vmatprep.subr.mxu0 0.0
        %3300 = vmatpush1.msra.mxu0 0.0
        %3301 = vmatprep.mubr.f32.mxu0 0.0
        %3302 = vmatmul.mubr.f32.gmra.mrb[0].mxu0 %v3219
        %v3303 = vpop.f32.mrb[0].mxu0
        %v3304 = vadd.f32 %v3236, %v3303
        %v3305 = vpop.f32.mrb[0].mxu0
        %3306 = vdwg.mxu0
        %v3307 = vsub.f32 0.0, %v3304
        %v3308 = vmul.f32 %v3307, 1.442695
        %v3309 = vpow.pop %v3308
        %v3310 = vadd.f32 %v3309, 1.0
        %v3311 = vrcp.pop %v3310
        %v3312 = vmul.f32 1.0, %v3311
        %vm3313 = vcmask 712704
        %3314 = vst.msk [vmem:[%s324] sm:$0x1] %vm3313, %v3312
        %s3315 = sand.u32 %s225, 1
        %s3316 = scalar_lea.sflag [#allocation3], %s3315
        %s3317 = sand.u32 %s225, 1
        %s3318 = scalar_lea.vmem [#allocation2], %s3317
        // Predicated region
        $region57: #{conv_net_1d_2_sig_forward.1} parent=55 // pred_check
          %p3319 = pneg %p235
        $region58: #{conv_net_1d_2_sig_forward.1} parent=55 // pred_check_branch
          %3321 = sbr.rel (%p3319) target = $region60
        $region59: #{conv_net_1d_2_sig_forward.1} parent=55 // pred_region
          %s3323 = ssub.s32 16, 16
          %3324 = vsyncadd %s3316, %s3323
          %s3325 = smul.addr %s23, 16
          %s3326 = scalar_lea.hbm %s9, %s3325
          %s3328 = sshll.u32 %s3318, 4
          %s3329 = int_to_ptr.vmem [resolvable:$true] %s3328
          %3331 = dma.vmem_to_hbm [thread:$0]  %s3329, 16, %s3326, %s3316
        $region60: #{conv_net_1d_2_sig_forward.1} parent=55 // pred_fallthru
          _
      $region56: #{conv_net_1d_2_sig_forward.1} parent=5 // pred_fallthru
        _
      %p3332 = scmp.le.s32.totalorder 2, %s18
      // Predicated region
      $region61: #{conv_net_1d_2_sig_forward.1} parent=5 // pred_check
        %p3333 = pneg %p3332
      $region62: #{conv_net_1d_2_sig_forward.1} parent=5 // pred_check_branch
        %3335 = sbr.rel (%p3333) target = $region64
      $region63: #{conv_net_1d_2_sig_forward.1} parent=5 // pred_region
        %s3336 = ssub.s32 %s18, 2
        // Predicated region
        $region65: #{conv_net_1d_2_sig_forward.1} parent=63 // pred_check
          %p3337 = pneg %p241
        $region66: #{conv_net_1d_2_sig_forward.1} parent=63 // pred_check_branch
          %3339 = sbr.rel (%p3337) target = $region68
        $region67: #{conv_net_1d_2_sig_forward.1} parent=63 // pred_region
          %s3340 = sand.u32 %s226, 1
          %s3341 = scalar_lea.sflag [#allocation3], %s3340
          %s3342 = sand.u32 %s226, 1
          %s3343 = scalar_lea.vmem [#allocation2], %s3342
          %3344 = dma.done %s3341, 16
        $region68: #{conv_net_1d_2_sig_forward.1} parent=63 // pred_fallthru
          _
      $region64: #{conv_net_1d_2_sig_forward.1} parent=5 // pred_fallthru
        _
    $region6: #{conv_net_1d_2_sig_forward.1} parent=1 // loop_footer
      %s22 = sadd.s32 1, %s18
    $region7: #{conv_net_1d_2_sig_forward.1} parent=1 // loop_footer_branch
      %17 = sbr.rel target = $region3
    $region8: #{conv_net_1d_2_sig_forward.1} parent=1 // loop_exit
      _
    %3345 = vsyncpa [#allocation3], 1
    %s3346 = scalar_lea.sflag [#allocation3], 1
    %3347 = vsyncpa %s3346, 1

</llo_original>
